<compile_context>
chip_gen: v5e
topology: v5e:2x2
jax: 0.10.0
libtpu: 0.0.40
codegen_flags: <defaults>
</compile_context>

<pallas_src>
import functools

import jax
import jax.numpy as jnp
from jax import lax
from jax.experimental import pallas as pl
from jax.experimental.pallas import tpu as pltpu


def _round_up(x, m):
    return (x + m - 1) // m * m


def _vmem_ceiling_bytes():
    """Generation-aware VMEM budget (~84% of physical per-core VMEM).

    v5e/v6e (128 MiB) -> ~107 MiB; v7x (64 MiB) -> ~53 MiB.  Falls back to a
    conservative value if the hardware query is unavailable.
    """
    try:
        cap = int(pltpu.get_tpu_info().vmem_capacity_bytes)
    except Exception:
        cap = 64 * 1024 * 1024
    return max(32 * 1024 * 1024, min(int(cap * 0.84), 112 * 1024 * 1024))


def _bottleneck_kernel(x_ref, w1_ref, s1_ref, b1_ref, w2_ref, s2_ref, b2_ref,
                       w3_ref, s3_ref, b3_ref, o_ref, mid_ref):
    """One (batch, row-block) grid step.

    x_ref : (1, H, W, Cin_p)   bf16 full-image block (auto double-buffered)
    w1    : (Cin_p, Cw_p)      bf16 1x1 conv weights
    w2    : (9, Cw_p, Cw_p)    bf16 3x3 conv weights, tap-major (ky*3+kx)
    w3    : (Cw_p, Cout_p)     bf16 1x1 conv weights
    s*/b* : (1, C)             f32 folded BN scale / bias
    o_ref : (1, TH, W, Cout_p) bf16 output row block
    mid   : (H+2, W+2, Cw_p)   bf16 scratch: conv1 output with zero border
    """
    t = pl.program_id(1)

    H = x_ref.shape[1]
    W = x_ref.shape[2]
    Cin = x_ref.shape[3]
    TH = o_ref.shape[1]
    Cmid = mid_ref.shape[2]
    Cout = o_ref.shape[3]

    # ---- conv1 (1x1) + BN1 + ReLU over the whole image --------------------
    # (With row_blocks > 1 conv1 is recomputed per block; default is 1 block.)
    x_flat = x_ref[0].reshape(H * W, Cin)
    acc1 = jnp.dot(x_flat, w1_ref[...], preferred_element_type=jnp.float32)
    h1 = jnp.maximum(acc1 * s1_ref[...] + b1_ref[...], 0.0)
    mid_ref[1:H + 1, 1:W + 1, :] = h1.astype(mid_ref.dtype).reshape(H, W, Cmid)

    # conv2's zero padding: border rows/columns of the persistent scratch.
    # Written every step (cheap) so the row-block axis stays safe when it is
    # sharded across TensorCores.
    zrow = jnp.zeros((W + 2, Cmid), mid_ref.dtype)
    mid_ref[0, :, :] = zrow
    mid_ref[H + 1, :, :] = zrow
    zcol = jnp.zeros((H + 2, 1, Cmid), mid_ref.dtype)
    mid_ref[:, 0:1, :] = zcol
    mid_ref[:, W + 1:W + 2, :] = zcol

    # ---- conv2 (3x3) + BN2 + ReLU for this row block ----------------------
    # Nine accumulating MXU matmuls straight from `mid` slices (no im2col
    # scratch), f32 accumulation.
    row0 = pl.multiple_of(t * TH, TH)
    acc2 = None
    for ky in range(3):
        for kx in range(3):
            lhs = mid_ref[pl.ds(row0 + ky, TH), kx:kx + W, :]
            p = jnp.dot(lhs.reshape(TH * W, Cmid), w2_ref[ky * 3 + kx],
                        preferred_element_type=jnp.float32)
            acc2 = p if acc2 is None else acc2 + p
    h2 = jnp.maximum(acc2 * s2_ref[...] + b2_ref[...], 0.0).astype(jnp.bfloat16)

    # ---- conv3 (1x1) + BN3 + residual + ReLU ------------------------------
    acc3 = jnp.dot(h2, w3_ref[...], preferred_element_type=jnp.float32)
    identity = x_ref[0, pl.ds(row0, TH)].reshape(TH * W, Cin).astype(jnp.float32)
    y = jnp.maximum(acc3 * s3_ref[...] + b3_ref[...] + identity, 0.0)
    o_ref[0] = y.reshape(TH, W, Cout).astype(o_ref.dtype)


@functools.partial(jax.jit, static_argnames=("row_blocks",))
def bottleneck_forward(x_nchw, w1, g1, be1, m1, v1, w2, g2, be2, m2, v2,
                       w3, g3, be3, m3, v3, eps=1e-5, *, row_blocks=1):
    """Bottleneck forward. x_nchw: (N, Cin, H, W) f32, conv weights in PyTorch
    OIHW layout. Returns (N, Cout, H, W) f32.

    row_blocks > 1 splits conv2/conv3 rows over a second (parallel) grid axis
    so both v7x TensorCores are fed even at batch 1 (conv1 is recomputed per
    block).  Default 1 (whole image per step)."""
    N, Cin, H, W = x_nchw.shape
    Cw = w1.shape[0]          # width
    Cout = w3.shape[0]        # planes * expansion

    assert w1.shape == (Cw, Cin, 1, 1)
    assert w2.shape == (Cw, Cw, 3, 3), "only stride=1, groups=1, dilation=1"
    assert w3.shape == (Cout, Cw, 1, 1)
    assert Cin == Cout, ("downsample=None requires inplanes == planes*expansion "
                         "for the residual add")
    assert H % row_blocks == 0, "H must be divisible by row_blocks"
    # TODO(synk): stride!=1 / groups!=1 / dilation!=1 / downsample branch of the
    # PyTorch module are not implemented in this kernel.
    # TODO(synk): images too large for a full-image VMEM tile would need a
    # halo-DMA row-tiled variant; all real ResNet152 bottleneck shapes fit.

    T = row_blocks
    TH = H // T

    # Lane-dense layout: pad all channel dims to multiples of 128.
    Cin_p = _round_up(Cin, 128)
    Cw_p = _round_up(Cw, 128)
    Cout_p = _round_up(Cout, 128)

    # NCHW -> NHWC, bf16 MXU operands, zero-pad channels.
    # TODO(synk): in a full network keep activations NHWC/bf16/channel-padded
    # across blocks and pre-pack weights once, so these per-call HBM passes
    # (and the output transpose below) disappear.
    x = jnp.transpose(x_nchw, (0, 2, 3, 1)).astype(jnp.bfloat16)
    x = jnp.pad(x, ((0, 0), (0, 0), (0, 0), (0, Cin_p - Cin)))

    # Conv weights: OIHW (PyTorch) -> matmul layouts, zero-padded, bf16.
    w1m = jnp.pad(w1.reshape(Cw, Cin).T,
                  ((0, Cin_p - Cin), (0, Cw_p - Cw))).astype(jnp.bfloat16)
    w2h = jnp.transpose(w2, (2, 3, 1, 0))                   # (3,3,Cw,Cw) HWIO
    w2h = jnp.pad(w2h, ((0, 0), (0, 0), (0, Cw_p - Cw), (0, Cw_p - Cw)))
    w2m = w2h.reshape(9, Cw_p, Cw_p).astype(jnp.bfloat16)   # tap-major
    w3m = jnp.pad(w3.reshape(Cout, Cw).T,
                  ((0, Cw_p - Cw), (0, Cout_p - Cout))).astype(jnp.bfloat16)

    # Fold eval-mode BatchNorm into per-channel scale/bias (f32), pad with 0.
    def fold_bn(g, b, m, v, cp):
        s = g / jnp.sqrt(v + eps)
        bias = b - m * s
        pad = ((0, cp - s.shape[0]),)
        return (jnp.pad(s, pad).reshape(1, cp).astype(jnp.float32),
                jnp.pad(bias, pad).reshape(1, cp).astype(jnp.float32))

    s1, b1 = fold_bn(g1, be1, m1, v1, Cw_p)
    s2, b2 = fold_bn(g2, be2, m2, v2, Cw_p)
    s3, b3 = fold_bn(g3, be3, m3, v3, Cout_p)

    # Advisory cost estimate.
    flops = 2 * N * H * W * (Cin_p * Cw_p + 9 * Cw_p * Cw_p + Cw_p * Cout_p)
    bytes_accessed = (x.size * 2 + N * H * W * Cout_p * 2 +
                      (w1m.size + w2m.size + w3m.size) * 2 +
                      (s1.size + b1.size + s2.size + b2.size +
                       s3.size + b3.size) * 4)
    cost = pl.CostEstimate(flops=int(flops), transcendentals=0,
                           bytes_accessed=int(bytes_accessed))

    # Generation-aware VMEM budget with headroom below physical capacity.
    x_blk = H * W * Cin_p * 2
    o_blk = TH * W * Cout_p * 2
    w_bytes = (w1m.size + w2m.size + w3m.size) * 2 + 6 * max(Cw_p, Cout_p) * 4
    mid_bytes = (H + 2) * (W + 2) * Cw_p * 2
    tmp_bytes = (H * W * Cw_p * 6 +
                 TH * W * (Cw_p * 6 + Cout_p * 8 + Cin_p * 4))
    needed = 2 * (x_blk + o_blk) + 2 * w_bytes + mid_bytes + tmp_bytes
    vmem_limit = int(min(_vmem_ceiling_bytes(),
                         max(32 * 1024 * 1024, int(needed * 1.25))))

    out_nhwc = pl.pallas_call(
        _bottleneck_kernel,
        out_shape=jax.ShapeDtypeStruct((N, H, W, Cout_p), jnp.bfloat16),
        grid_spec=pltpu.PrefetchScalarGridSpec(
            num_scalar_prefetch=0,
            grid=(N, T),
            in_specs=[
                pl.BlockSpec((1, H, W, Cin_p), lambda n, t: (n, 0, 0, 0)),  # x
                pl.BlockSpec((Cin_p, Cw_p), lambda n, t: (0, 0)),           # w1
                pl.BlockSpec((1, Cw_p), lambda n, t: (0, 0)),               # s1
                pl.BlockSpec((1, Cw_p), lambda n, t: (0, 0)),               # b1
                pl.BlockSpec((9, Cw_p, Cw_p), lambda n, t: (0, 0, 0)),      # w2
                pl.BlockSpec((1, Cw_p), lambda n, t: (0, 0)),               # s2
                pl.BlockSpec((1, Cw_p), lambda n, t: (0, 0)),               # b2
                pl.BlockSpec((Cw_p, Cout_p), lambda n, t: (0, 0)),          # w3
                pl.BlockSpec((1, Cout_p), lambda n, t: (0, 0)),             # s3
                pl.BlockSpec((1, Cout_p), lambda n, t: (0, 0)),             # b3
            ],
            out_specs=pl.BlockSpec((1, TH, W, Cout_p),
                                   lambda n, t: (n, t, 0, 0)),
            scratch_shapes=[
                pltpu.VMEM((H + 2, W + 2, Cw_p), jnp.bfloat16),             # mid
            ]),
        compiler_params=pltpu.CompilerParams(
            dimension_semantics=("parallel", "parallel"),
            vmem_limit_bytes=vmem_limit),
        cost_estimate=cost,
    )(x, w1m, s1, b1, w2m, s2, b2, w3m, s3, b3)

    # Drop channel padding, cast back to f32, NHWC -> NCHW for the caller.
    return jnp.transpose(out_nhwc[..., :Cout].astype(jnp.float32), (0, 3, 1, 2))


def _reference_forward(x_nchw, params, eps=1e-5):
    """Pure-JAX f32 reference (lax.conv) with identical semantics."""
    (w1, g1, be1, m1, v1, w2, g2, be2, m2, v2, w3, g3, be3, m3, v3) = params
    x = jnp.transpose(x_nchw, (0, 2, 3, 1)).astype(jnp.float32)
    dn = ("NHWC", "HWIO", "NHWC")

    def conv(inp, w_oihw, padding):
        w = jnp.transpose(w_oihw, (2, 3, 1, 0)).astype(jnp.float32)
        return lax.conv_general_dilated(inp, w, (1, 1), padding,
                                        dimension_numbers=dn)

    def bn(inp, g, b, m, v):
        return (inp - m) / jnp.sqrt(v + eps) * g + b

    out = jnp.maximum(bn(conv(x, w1, "VALID"), g1, be1, m1, v1), 0.0)
    out = jnp.maximum(bn(conv(out, w2, "SAME"), g2, be2, m2, v2), 0.0)
    out = bn(conv(out, w3, "VALID"), g3, be3, m3, v3)
    out = jnp.maximum(out + x, 0.0)
    return jnp.transpose(out, (0, 3, 1, 2))


if __name__ == "__main__":
    # Small Bottleneck: inplanes=32, planes=8 -> width=8, out = planes*4 = 32.
    N, H, W = 2, 16, 16
    inplanes, planes = 32, 8
    width, cout = planes, planes * 4

    key = jax.random.PRNGKey(0)
    ks = jax.random.split(key, 8)

    x = jax.random.normal(ks[0], (N, inplanes, H, W), jnp.float32)

    # Conv weights in PyTorch OIHW layout (bias=False in the module).
    w1 = 0.1 * jax.random.normal(ks[1], (width, inplanes, 1, 1), jnp.float32)
    w2 = 0.1 * jax.random.normal(ks[2], (width, width, 3, 3), jnp.float32)
    w3 = 0.1 * jax.random.normal(ks[3], (cout, width, 1, 1), jnp.float32)

    def bn_params(k, c):
        k1, k2, k3, k4 = jax.random.split(k, 4)
        g = 1.0 + 0.1 * jax.random.normal(k1, (c,), jnp.float32)
        b = 0.1 * jax.random.normal(k2, (c,), jnp.float32)
        m = 0.05 * jax.random.normal(k3, (c,), jnp.float32)
        v = 1.0 + 0.1 * jax.nn.softplus(jax.random.normal(k4, (c,), jnp.float32))
        return g, b, m, v

    g1, be1, m1, v1 = bn_params(ks[4], width)
    g2, be2, m2, v2 = bn_params(ks[5], width)
    g3, be3, m3, v3 = bn_params(ks[6], cout)

    params = (w1, g1, be1, m1, v1, w2, g2, be2, m2, v2, w3, g3, be3, m3, v3)
    ref = _reference_forward(x, params)

    # Default path: whole image per grid step (row_blocks=1).
    out = bottleneck_forward(x, *params)
    out = jax.block_until_ready(out)
    assert out.shape == (N, cout, H, W)
    max_err = float(jnp.max(jnp.abs(out - ref)))
    # bf16 MXU operands / bf16 output (f32 accumulation) -> loosened tolerance.
    assert jnp.allclose(out, ref, atol=5e-2, rtol=5e-2), (
        f"mismatch vs reference (row_blocks=1), max abs err {max_err}")

    # Row-split path (feeds both v7x TensorCores at batch 1).
    out2 = bottleneck_forward(x, *params, row_blocks=2)
    out2 = jax.block_until_ready(out2)
    max_err2 = float(jnp.max(jnp.abs(out2 - ref)))
    assert jnp.allclose(out2, ref, atol=5e-2, rtol=5e-2), (
        f"mismatch vs reference (row_blocks=2), max abs err {max_err2}")

    print("KERNEL_OK")
</pallas_src>

<mosaic_0001>
module attributes {stable_mosaic.version = 11 : i64} {
  func.func @_bottleneck_kernel(%arg0: i32, %arg1: i32, %arg2: memref<1x16x16x128xbf16, #tpu.memory_space<vmem>>, %arg3: memref<128x128xbf16, #tpu.memory_space<vmem>>, %arg4: memref<1x128xf32, #tpu.memory_space<vmem>>, %arg5: memref<1x128xf32, #tpu.memory_space<vmem>>, %arg6: memref<9x128x128xbf16, #tpu.memory_space<vmem>>, %arg7: memref<1x128xf32, #tpu.memory_space<vmem>>, %arg8: memref<1x128xf32, #tpu.memory_space<vmem>>, %arg9: memref<128x128xbf16, #tpu.memory_space<vmem>>, %arg10: memref<1x128xf32, #tpu.memory_space<vmem>>, %arg11: memref<1x128xf32, #tpu.memory_space<vmem>>, %arg12: memref<1x16x16x128xbf16, #tpu.memory_space<vmem>>, %arg13: memref<18x18x128xbf16, #tpu.memory_space<vmem>>) attributes {dimension_semantics = [#tpu.dimension_semantics<parallel>, #tpu.dimension_semantics<parallel>], iteration_bounds = array<i64: 2, 1>, scalar_prefetch = 0 : i64, scratch_operands = 1 : i64, tpu.core_type = #tpu.core_type<tc>, window_params = [{transform_indices = @transform_0, window_bounds = array<i64: 1, 16, 16, 128>}, {pipeline_mode = #tpu.pipeline_mode<synchronous>, transform_indices = @transform_1, window_bounds = array<i64: 128, 128>}, {pipeline_mode = #tpu.pipeline_mode<synchronous>, transform_indices = @transform_2, window_bounds = array<i64: 1, 128>}, {pipeline_mode = #tpu.pipeline_mode<synchronous>, transform_indices = @transform_3, window_bounds = array<i64: 1, 128>}, {pipeline_mode = #tpu.pipeline_mode<synchronous>, transform_indices = @transform_4, window_bounds = array<i64: 9, 128, 128>}, {pipeline_mode = #tpu.pipeline_mode<synchronous>, transform_indices = @transform_5, window_bounds = array<i64: 1, 128>}, {pipeline_mode = #tpu.pipeline_mode<synchronous>, transform_indices = @transform_6, window_bounds = array<i64: 1, 128>}, {pipeline_mode = #tpu.pipeline_mode<synchronous>, transform_indices = @transform_7, window_bounds = array<i64: 128, 128>}, {pipeline_mode = #tpu.pipeline_mode<synchronous>, transform_indices = @transform_8, window_bounds = array<i64: 1, 128>}, {pipeline_mode = #tpu.pipeline_mode<synchronous>, transform_indices = @transform_9, window_bounds = array<i64: 1, 128>}, {transform_indices = @transform_10, window_bounds = array<i64: 1, 16, 16, 128>}]} {
    %c0 = arith.constant 0 : index
    %c0_0 = arith.constant 0 : index
    %c0_1 = arith.constant 0 : index
    %c0_2 = arith.constant 0 : index
    %0 = vector.load %arg2[%c0, %c0_0, %c0_1, %c0_2] : memref<1x16x16x128xbf16, #tpu.memory_space<vmem>>, vector<1x16x16x128xbf16>
    %1 = vector.shape_cast %0 : vector<1x16x16x128xbf16> to vector<16x16x128xbf16>
    %2 = vector.shape_cast %1 : vector<16x16x128xbf16> to vector<256x128xbf16>
    %c0_3 = arith.constant 0 : index
    %c0_4 = arith.constant 0 : index
    %3 = vector.load %arg3[%c0_3, %c0_4] : memref<128x128xbf16, #tpu.memory_space<vmem>>, vector<128x128xbf16>
    %cst = arith.constant dense<0.000000e+00> : vector<256x128xf32>
    %4 = tpu.matmul %2, %3, %cst {dimension_numbers = #tpu.dot_dimension_numbers<[1], [0], [0], [1], [0, 0, 1, 1], [], []>} : vector<256x128xbf16>, vector<128x128xbf16>, vector<256x128xf32> -> vector<256x128xf32>
    %c0_5 = arith.constant 0 : index
    %c0_6 = arith.constant 0 : index
    %5 = vector.load %arg4[%c0_5, %c0_6] : memref<1x128xf32, #tpu.memory_space<vmem>>, vector<1x128xf32>
    %6 = vector.broadcast %5 : vector<1x128xf32> to vector<256x128xf32>
    %7 = arith.mulf %4, %6 : vector<256x128xf32>
    %c0_7 = arith.constant 0 : index
    %c0_8 = arith.constant 0 : index
    %8 = vector.load %arg5[%c0_7, %c0_8] : memref<1x128xf32, #tpu.memory_space<vmem>>, vector<1x128xf32>
    %9 = vector.broadcast %8 : vector<1x128xf32> to vector<256x128xf32>
    %10 = arith.addf %7, %9 : vector<256x128xf32>
    %cst_9 = arith.constant 0.000000e+00 : f32
    %11 = vector.broadcast %cst_9 : f32 to vector<256x128xf32>
    %12 = arith.maximumf %10, %11 : vector<256x128xf32>
    %13 = arith.truncf %12 : vector<256x128xf32> to vector<256x128xbf16>
    %14 = vector.shape_cast %13 : vector<256x128xbf16> to vector<16x16x128xbf16>
    %c1 = arith.constant 1 : index
    %c1_10 = arith.constant 1 : index
    %c0_11 = arith.constant 0 : index
    %15 = vector.load %arg13[%c1, %c1_10, %c0_11] : memref<18x18x128xbf16, #tpu.memory_space<vmem>>, vector<16x16x128xbf16>
    tpu.vector_store %arg13[%c1, %c1_10, %c0_11], %14 {strides = array<i32>} : memref<18x18x128xbf16, #tpu.memory_space<vmem>>, vector<16x16x128xbf16>,
    %cst_12 = arith.constant 0.000000e+00 : bf16
    %16 = vector.broadcast %cst_12 : bf16 to vector<18x128xbf16>
    %c0_13 = arith.constant 0 : index
    %c0_14 = arith.constant 0 : index
    %c0_15 = arith.constant 0 : index
    %17 = vector.load %arg13[%c0_13, %c0_14, %c0_15] : memref<18x18x128xbf16, #tpu.memory_space<vmem>>, vector<1x18x128xbf16>
    %18 = vector.shape_cast %17 : vector<1x18x128xbf16> to vector<18x128xbf16>
    %19 = vector.shape_cast %16 : vector<18x128xbf16> to vector<1x18x128xbf16>
    tpu.vector_store %arg13[%c0_13, %c0_14, %c0_15], %19 {strides = array<i32>} : memref<18x18x128xbf16, #tpu.memory_space<vmem>>, vector<1x18x128xbf16>,
    %c17 = arith.constant 17 : index
    %c0_16 = arith.constant 0 : index
    %c0_17 = arith.constant 0 : index
    %20 = vector.load %arg13[%c17, %c0_16, %c0_17] : memref<18x18x128xbf16, #tpu.memory_space<vmem>>, vector<1x18x128xbf16>
    %21 = vector.shape_cast %20 : vector<1x18x128xbf16> to vector<18x128xbf16>
    %22 = vector.shape_cast %16 : vector<18x128xbf16> to vector<1x18x128xbf16>
    tpu.vector_store %arg13[%c17, %c0_16, %c0_17], %22 {strides = array<i32>} : memref<18x18x128xbf16, #tpu.memory_space<vmem>>, vector<1x18x128xbf16>,
    %cst_18 = arith.constant 0.000000e+00 : bf16
    %23 = vector.broadcast %cst_18 : bf16 to vector<18x1x128xbf16>
    %c0_19 = arith.constant 0 : index
    %c0_20 = arith.constant 0 : index
    %c0_21 = arith.constant 0 : index
    %24 = vector.load %arg13[%c0_19, %c0_20, %c0_21] : memref<18x18x128xbf16, #tpu.memory_space<vmem>>, vector<18x1x128xbf16>
    tpu.vector_store %arg13[%c0_19, %c0_20, %c0_21], %23 {strides = array<i32>} : memref<18x18x128xbf16, #tpu.memory_space<vmem>>, vector<18x1x128xbf16>,
    %c0_22 = arith.constant 0 : index
    %c17_23 = arith.constant 17 : index
    %c0_24 = arith.constant 0 : index
    %25 = vector.load %arg13[%c0_22, %c17_23, %c0_24] : memref<18x18x128xbf16, #tpu.memory_space<vmem>>, vector<18x1x128xbf16>
    tpu.vector_store %arg13[%c0_22, %c17_23, %c0_24], %23 {strides = array<i32>} : memref<18x18x128xbf16, #tpu.memory_space<vmem>>, vector<18x1x128xbf16>,
    %c16_i32 = arith.constant 16 : i32
    %26 = arith.muli %arg1, %c16_i32 : i32
    %27 = tpu.assume_multiple %26, 16 : i32
    %c0_i32 = arith.constant 0 : i32
    %28 = arith.addi %27, %c0_i32 : i32
    %29 = arith.index_cast %28 : i32 to index
    %c0_25 = arith.constant 0 : index
    %c0_26 = arith.constant 0 : index
    %30 = vector.load %arg13[%29, %c0_25, %c0_26] : memref<18x18x128xbf16, #tpu.memory_space<vmem>>, vector<16x16x128xbf16>
    %31 = vector.shape_cast %30 : vector<16x16x128xbf16> to vector<256x128xbf16>
    %c0_27 = arith.constant 0 : index
    %c0_28 = arith.constant 0 : index
    %c0_29 = arith.constant 0 : index
    %32 = vector.load %arg6[%c0_27, %c0_28, %c0_29] : memref<9x128x128xbf16, #tpu.memory_space<vmem>>, vector<1x128x128xbf16>
    %33 = vector.shape_cast %32 : vector<1x128x128xbf16> to vector<128x128xbf16>
    %cst_30 = arith.constant dense<0.000000e+00> : vector<256x128xf32>
    %34 = tpu.matmul %31, %33, %cst_30 {dimension_numbers = #tpu.dot_dimension_numbers<[1], [0], [0], [1], [0, 0, 1, 1], [], []>} : vector<256x128xbf16>, vector<128x128xbf16>, vector<256x128xf32> -> vector<256x128xf32>
    %c0_i32_31 = arith.constant 0 : i32
    %35 = arith.addi %27, %c0_i32_31 : i32
    %36 = arith.index_cast %35 : i32 to index
    %c1_32 = arith.constant 1 : index
    %c0_33 = arith.constant 0 : index
    %37 = vector.load %arg13[%36, %c1_32, %c0_33] : memref<18x18x128xbf16, #tpu.memory_space<vmem>>, vector<16x16x128xbf16>
    %38 = vector.shape_cast %37 : vector<16x16x128xbf16> to vector<256x128xbf16>
    %c1_34 = arith.constant 1 : index
    %c0_35 = arith.constant 0 : index
    %c0_36 = arith.constant 0 : index
    %39 = vector.load %arg6[%c1_34, %c0_35, %c0_36] : memref<9x128x128xbf16, #tpu.memory_space<vmem>>, vector<1x128x128xbf16>
    %40 = vector.shape_cast %39 : vector<1x128x128xbf16> to vector<128x128xbf16>
    %cst_37 = arith.constant dense<0.000000e+00> : vector<256x128xf32>
    %41 = tpu.matmul %38, %40, %cst_37 {dimension_numbers = #tpu.dot_dimension_numbers<[1], [0], [0], [1], [0, 0, 1, 1], [], []>} : vector<256x128xbf16>, vector<128x128xbf16>, vector<256x128xf32> -> vector<256x128xf32>
    %42 = arith.addf %34, %41 : vector<256x128xf32>
    %c0_i32_38 = arith.constant 0 : i32
    %43 = arith.addi %27, %c0_i32_38 : i32
    %44 = arith.index_cast %43 : i32 to index
    %c2 = arith.constant 2 : index
    %c0_39 = arith.constant 0 : index
    %45 = vector.load %arg13[%44, %c2, %c0_39] : memref<18x18x128xbf16, #tpu.memory_space<vmem>>, vector<16x16x128xbf16>
    %46 = vector.shape_cast %45 : vector<16x16x128xbf16> to vector<256x128xbf16>
    %c2_40 = arith.constant 2 : index
    %c0_41 = arith.constant 0 : index
    %c0_42 = arith.constant 0 : index
    %47 = vector.load %arg6[%c2_40, %c0_41, %c0_42] : memref<9x128x128xbf16, #tpu.memory_space<vmem>>, vector<1x128x128xbf16>
    %48 = vector.shape_cast %47 : vector<1x128x128xbf16> to vector<128x128xbf16>
    %cst_43 = arith.constant dense<0.000000e+00> : vector<256x128xf32>
    %49 = tpu.matmul %46, %48, %cst_43 {dimension_numbers = #tpu.dot_dimension_numbers<[1], [0], [0], [1], [0, 0, 1, 1], [], []>} : vector<256x128xbf16>, vector<128x128xbf16>, vector<256x128xf32> -> vector<256x128xf32>
    %50 = arith.addf %42, %49 : vector<256x128xf32>
    %c1_i32 = arith.constant 1 : i32
    %51 = arith.addi %27, %c1_i32 : i32
    %52 = arith.index_cast %51 : i32 to index
    %c0_44 = arith.constant 0 : index
    %c0_45 = arith.constant 0 : index
    %53 = vector.load %arg13[%52, %c0_44, %c0_45] : memref<18x18x128xbf16, #tpu.memory_space<vmem>>, vector<16x16x128xbf16>
    %54 = vector.shape_cast %53 : vector<16x16x128xbf16> to vector<256x128xbf16>
    %c3 = arith.constant 3 : index
    %c0_46 = arith.constant 0 : index
    %c0_47 = arith.constant 0 : index
    %55 = vector.load %arg6[%c3, %c0_46, %c0_47] : memref<9x128x128xbf16, #tpu.memory_space<vmem>>, vector<1x128x128xbf16>
    %56 = vector.shape_cast %55 : vector<1x128x128xbf16> to vector<128x128xbf16>
    %cst_48 = arith.constant dense<0.000000e+00> : vector<256x128xf32>
    %57 = tpu.matmul %54, %56, %cst_48 {dimension_numbers = #tpu.dot_dimension_numbers<[1], [0], [0], [1], [0, 0, 1, 1], [], []>} : vector<256x128xbf16>, vector<128x128xbf16>, vector<256x128xf32> -> vector<256x128xf32>
    %58 = arith.addf %50, %57 : vector<256x128xf32>
    %c1_i32_49 = arith.constant 1 : i32
    %59 = arith.addi %27, %c1_i32_49 : i32
    %60 = arith.index_cast %59 : i32 to index
    %c1_50 = arith.constant 1 : index
    %c0_51 = arith.constant 0 : index
    %61 = vector.load %arg13[%60, %c1_50, %c0_51] : memref<18x18x128xbf16, #tpu.memory_space<vmem>>, vector<16x16x128xbf16>
    %62 = vector.shape_cast %61 : vector<16x16x128xbf16> to vector<256x128xbf16>
    %c4 = arith.constant 4 : index
    %c0_52 = arith.constant 0 : index
    %c0_53 = arith.constant 0 : index
    %63 = vector.load %arg6[%c4, %c0_52, %c0_53] : memref<9x128x128xbf16, #tpu.memory_space<vmem>>, vector<1x128x128xbf16>
    %64 = vector.shape_cast %63 : vector<1x128x128xbf16> to vector<128x128xbf16>
    %cst_54 = arith.constant dense<0.000000e+00> : vector<256x128xf32>
    %65 = tpu.matmul %62, %64, %cst_54 {dimension_numbers = #tpu.dot_dimension_numbers<[1], [0], [0], [1], [0, 0, 1, 1], [], []>} : vector<256x128xbf16>, vector<128x128xbf16>, vector<256x128xf32> -> vector<256x128xf32>
    %66 = arith.addf %58, %65 : vector<256x128xf32>
    %c1_i32_55 = arith.constant 1 : i32
    %67 = arith.addi %27, %c1_i32_55 : i32
    %68 = arith.index_cast %67 : i32 to index
    %c2_56 = arith.constant 2 : index
    %c0_57 = arith.constant 0 : index
    %69 = vector.load %arg13[%68, %c2_56, %c0_57] : memref<18x18x128xbf16, #tpu.memory_space<vmem>>, vector<16x16x128xbf16>
    %70 = vector.shape_cast %69 : vector<16x16x128xbf16> to vector<256x128xbf16>
    %c5 = arith.constant 5 : index
    %c0_58 = arith.constant 0 : index
    %c0_59 = arith.constant 0 : index
    %71 = vector.load %arg6[%c5, %c0_58, %c0_59] : memref<9x128x128xbf16, #tpu.memory_space<vmem>>, vector<1x128x128xbf16>
    %72 = vector.shape_cast %71 : vector<1x128x128xbf16> to vector<128x128xbf16>
    %cst_60 = arith.constant dense<0.000000e+00> : vector<256x128xf32>
    %73 = tpu.matmul %70, %72, %cst_60 {dimension_numbers = #tpu.dot_dimension_numbers<[1], [0], [0], [1], [0, 0, 1, 1], [], []>} : vector<256x128xbf16>, vector<128x128xbf16>, vector<256x128xf32> -> vector<256x128xf32>
    %74 = arith.addf %66, %73 : vector<256x128xf32>
    %c2_i32 = arith.constant 2 : i32
    %75 = arith.addi %27, %c2_i32 : i32
    %76 = arith.index_cast %75 : i32 to index
    %c0_61 = arith.constant 0 : index
    %c0_62 = arith.constant 0 : index
    %77 = vector.load %arg13[%76, %c0_61, %c0_62] : memref<18x18x128xbf16, #tpu.memory_space<vmem>>, vector<16x16x128xbf16>
    %78 = vector.shape_cast %77 : vector<16x16x128xbf16> to vector<256x128xbf16>
    %c6 = arith.constant 6 : index
    %c0_63 = arith.constant 0 : index
    %c0_64 = arith.constant 0 : index
    %79 = vector.load %arg6[%c6, %c0_63, %c0_64] : memref<9x128x128xbf16, #tpu.memory_space<vmem>>, vector<1x128x128xbf16>
    %80 = vector.shape_cast %79 : vector<1x128x128xbf16> to vector<128x128xbf16>
    %cst_65 = arith.constant dense<0.000000e+00> : vector<256x128xf32>
    %81 = tpu.matmul %78, %80, %cst_65 {dimension_numbers = #tpu.dot_dimension_numbers<[1], [0], [0], [1], [0, 0, 1, 1], [], []>} : vector<256x128xbf16>, vector<128x128xbf16>, vector<256x128xf32> -> vector<256x128xf32>
    %82 = arith.addf %74, %81 : vector<256x128xf32>
    %c2_i32_66 = arith.constant 2 : i32
    %83 = arith.addi %27, %c2_i32_66 : i32
    %84 = arith.index_cast %83 : i32 to index
    %c1_67 = arith.constant 1 : index
    %c0_68 = arith.constant 0 : index
    %85 = vector.load %arg13[%84, %c1_67, %c0_68] : memref<18x18x128xbf16, #tpu.memory_space<vmem>>, vector<16x16x128xbf16>
    %86 = vector.shape_cast %85 : vector<16x16x128xbf16> to vector<256x128xbf16>
    %c7 = arith.constant 7 : index
    %c0_69 = arith.constant 0 : index
    %c0_70 = arith.constant 0 : index
    %87 = vector.load %arg6[%c7, %c0_69, %c0_70] : memref<9x128x128xbf16, #tpu.memory_space<vmem>>, vector<1x128x128xbf16>
    %88 = vector.shape_cast %87 : vector<1x128x128xbf16> to vector<128x128xbf16>
    %cst_71 = arith.constant dense<0.000000e+00> : vector<256x128xf32>
    %89 = tpu.matmul %86, %88, %cst_71 {dimension_numbers = #tpu.dot_dimension_numbers<[1], [0], [0], [1], [0, 0, 1, 1], [], []>} : vector<256x128xbf16>, vector<128x128xbf16>, vector<256x128xf32> -> vector<256x128xf32>
    %90 = arith.addf %82, %89 : vector<256x128xf32>
    %c2_i32_72 = arith.constant 2 : i32
    %91 = arith.addi %27, %c2_i32_72 : i32
    %92 = arith.index_cast %91 : i32 to index
    %c2_73 = arith.constant 2 : index
    %c0_74 = arith.constant 0 : index
    %93 = vector.load %arg13[%92, %c2_73, %c0_74] : memref<18x18x128xbf16, #tpu.memory_space<vmem>>, vector<16x16x128xbf16>
    %94 = vector.shape_cast %93 : vector<16x16x128xbf16> to vector<256x128xbf16>
    %c8 = arith.constant 8 : index
    %c0_75 = arith.constant 0 : index
    %c0_76 = arith.constant 0 : index
    %95 = vector.load %arg6[%c8, %c0_75, %c0_76] : memref<9x128x128xbf16, #tpu.memory_space<vmem>>, vector<1x128x128xbf16>
    %96 = vector.shape_cast %95 : vector<1x128x128xbf16> to vector<128x128xbf16>
    %cst_77 = arith.constant dense<0.000000e+00> : vector<256x128xf32>
    %97 = tpu.matmul %94, %96, %cst_77 {dimension_numbers = #tpu.dot_dimension_numbers<[1], [0], [0], [1], [0, 0, 1, 1], [], []>} : vector<256x128xbf16>, vector<128x128xbf16>, vector<256x128xf32> -> vector<256x128xf32>
    %98 = arith.addf %90, %97 : vector<256x128xf32>
    %c0_78 = arith.constant 0 : index
    %c0_79 = arith.constant 0 : index
    %99 = vector.load %arg7[%c0_78, %c0_79] : memref<1x128xf32, #tpu.memory_space<vmem>>, vector<1x128xf32>
    %100 = vector.broadcast %99 : vector<1x128xf32> to vector<256x128xf32>
    %101 = arith.mulf %98, %100 : vector<256x128xf32>
    %c0_80 = arith.constant 0 : index
    %c0_81 = arith.constant 0 : index
    %102 = vector.load %arg8[%c0_80, %c0_81] : memref<1x128xf32, #tpu.memory_space<vmem>>, vector<1x128xf32>
    %103 = vector.broadcast %102 : vector<1x128xf32> to vector<256x128xf32>
    %104 = arith.addf %101, %103 : vector<256x128xf32>
    %cst_82 = arith.constant 0.000000e+00 : f32
    %105 = vector.broadcast %cst_82 : f32 to vector<256x128xf32>
    %106 = arith.maximumf %104, %105 : vector<256x128xf32>
    %107 = arith.truncf %106 : vector<256x128xf32> to vector<256x128xbf16>
    %c0_83 = arith.constant 0 : index
    %c0_84 = arith.constant 0 : index
    %108 = vector.load %arg9[%c0_83, %c0_84] : memref<128x128xbf16, #tpu.memory_space<vmem>>, vector<128x128xbf16>
    %cst_85 = arith.constant dense<0.000000e+00> : vector<256x128xf32>
    %109 = tpu.matmul %107, %108, %cst_85 {dimension_numbers = #tpu.dot_dimension_numbers<[1], [0], [0], [1], [0, 0, 1, 1], [], []>} : vector<256x128xbf16>, vector<128x128xbf16>, vector<256x128xf32> -> vector<256x128xf32>
    %c0_86 = arith.constant 0 : index
    %110 = arith.index_cast %27 : i32 to index
    %c0_87 = arith.constant 0 : index
    %c0_88 = arith.constant 0 : index
    %111 = vector.load %arg2[%c0_86, %110, %c0_87, %c0_88] : memref<1x16x16x128xbf16, #tpu.memory_space<vmem>>, vector<1x16x16x128xbf16>
    %112 = vector.shape_cast %111 : vector<1x16x16x128xbf16> to vector<16x16x128xbf16>
    %113 = vector.shape_cast %112 : vector<16x16x128xbf16> to vector<256x128xbf16>
    %114 = arith.extf %113 : vector<256x128xbf16> to vector<256x128xf32>
    %c0_89 = arith.constant 0 : index
    %c0_90 = arith.constant 0 : index
    %115 = vector.load %arg10[%c0_89, %c0_90] : memref<1x128xf32, #tpu.memory_space<vmem>>, vector<1x128xf32>
    %116 = vector.broadcast %115 : vector<1x128xf32> to vector<256x128xf32>
    %117 = arith.mulf %109, %116 : vector<256x128xf32>
    %c0_91 = arith.constant 0 : index
    %c0_92 = arith.constant 0 : index
    %118 = vector.load %arg11[%c0_91, %c0_92] : memref<1x128xf32, #tpu.memory_space<vmem>>, vector<1x128xf32>
    %119 = vector.broadcast %118 : vector<1x128xf32> to vector<256x128xf32>
    %120 = arith.addf %117, %119 : vector<256x128xf32>
    %121 = arith.addf %120, %114 : vector<256x128xf32>
    %cst_93 = arith.constant 0.000000e+00 : f32
    %122 = vector.broadcast %cst_93 : f32 to vector<256x128xf32>
    %123 = arith.maximumf %121, %122 : vector<256x128xf32>
    %124 = vector.shape_cast %123 : vector<256x128xf32> to vector<16x16x128xf32>
    %125 = arith.truncf %124 : vector<16x16x128xf32> to vector<16x16x128xbf16>
    %c0_94 = arith.constant 0 : index
    %c0_95 = arith.constant 0 : index
    %c0_96 = arith.constant 0 : index
    %c0_97 = arith.constant 0 : index
    %126 = vector.load %arg12[%c0_94, %c0_95, %c0_96, %c0_97] : memref<1x16x16x128xbf16, #tpu.memory_space<vmem>>, vector<1x16x16x128xbf16>
    %127 = vector.shape_cast %126 : vector<1x16x16x128xbf16> to vector<16x16x128xbf16>
    %128 = vector.shape_cast %125 : vector<16x16x128xbf16> to vector<1x16x16x128xbf16>
    tpu.vector_store %arg12[%c0_94, %c0_95, %c0_96, %c0_97], %128 {strides = array<i32>} : memref<1x16x16x128xbf16, #tpu.memory_space<vmem>>, vector<1x16x16x128xbf16>,
    return
  }
  func.func @transform_0(%arg0: i32, %arg1: i32) -> (i32, i32, i32, i32) {
    %c0_i32 = arith.constant 0 : i32
    %c0_i32_0 = arith.constant 0 : i32
    %c0_i32_1 = arith.constant 0 : i32
    %c0_i32_2 = arith.constant 0 : i32
    return %arg0, %c0_i32, %c0_i32_0, %c0_i32_1 : i32, i32, i32, i32
  }
  func.func @transform_1(%arg0: i32, %arg1: i32) -> (i32, i32) {
    %c0_i32 = arith.constant 0 : i32
    %c0_i32_0 = arith.constant 0 : i32
    %c0_i32_1 = arith.constant 0 : i32
    return %c0_i32, %c0_i32_0 : i32, i32
  }
  func.func @transform_2(%arg0: i32, %arg1: i32) -> (i32, i32) {
    %c0_i32 = arith.constant 0 : i32
    %c0_i32_0 = arith.constant 0 : i32
    %c0_i32_1 = arith.constant 0 : i32
    return %c0_i32, %c0_i32_0 : i32, i32
  }
  func.func @transform_3(%arg0: i32, %arg1: i32) -> (i32, i32) {
    %c0_i32 = arith.constant 0 : i32
    %c0_i32_0 = arith.constant 0 : i32
    %c0_i32_1 = arith.constant 0 : i32
    return %c0_i32, %c0_i32_0 : i32, i32
  }
  func.func @transform_4(%arg0: i32, %arg1: i32) -> (i32, i32, i32) {
    %c0_i32 = arith.constant 0 : i32
    %c0_i32_0 = arith.constant 0 : i32
    %c0_i32_1 = arith.constant 0 : i32
    %c0_i32_2 = arith.constant 0 : i32
    return %c0_i32, %c0_i32_0, %c0_i32_1 : i32, i32, i32
  }
  func.func @transform_5(%arg0: i32, %arg1: i32) -> (i32, i32) {
    %c0_i32 = arith.constant 0 : i32
    %c0_i32_0 = arith.constant 0 : i32
    %c0_i32_1 = arith.constant 0 : i32
    return %c0_i32, %c0_i32_0 : i32, i32
  }
  func.func @transform_6(%arg0: i32, %arg1: i32) -> (i32, i32) {
    %c0_i32 = arith.constant 0 : i32
    %c0_i32_0 = arith.constant 0 : i32
    %c0_i32_1 = arith.constant 0 : i32
    return %c0_i32, %c0_i32_0 : i32, i32
  }
  func.func @transform_7(%arg0: i32, %arg1: i32) -> (i32, i32) {
    %c0_i32 = arith.constant 0 : i32
    %c0_i32_0 = arith.constant 0 : i32
    %c0_i32_1 = arith.constant 0 : i32
    return %c0_i32, %c0_i32_0 : i32, i32
  }
  func.func @transform_8(%arg0: i32, %arg1: i32) -> (i32, i32) {
    %c0_i32 = arith.constant 0 : i32
    %c0_i32_0 = arith.constant 0 : i32
    %c0_i32_1 = arith.constant 0 : i32
    return %c0_i32, %c0_i32_0 : i32, i32
  }
  func.func @transform_9(%arg0: i32, %arg1: i32) -> (i32, i32) {
    %c0_i32 = arith.constant 0 : i32
    %c0_i32_0 = arith.constant 0 : i32
    %c0_i32_1 = arith.constant 0 : i32
    return %c0_i32, %c0_i32_0 : i32, i32
  }
  func.func @transform_10(%arg0: i32, %arg1: i32) -> (i32, i32, i32, i32) {
    %c0_i32 = arith.constant 0 : i32
    %c0_i32_0 = arith.constant 0 : i32
    %c0_i32_1 = arith.constant 0 : i32
    return %arg0, %arg1, %c0_i32, %c0_i32_0 : i32, i32, i32, i32
  }
}

</mosaic_0001>

<llo_original>
// kernel: bottleneck_forward.1
$region0: #{bottleneck_forward.1}
  #allocation0 [shape = 'u32[]', space=smem, size = 0x4, offset = 0x4, fixed_abs, tag = 'smem constant byte address 0x4 - core index']
  #allocation1 [shape = 'u32[72,128]{1,0:T(1,128)}', space=vmem, size = 0x9000, scoped, tag = 'internal scratch']
  #allocation2 [shape = 'bf16[18,18,128]{2,1,0:T(8,128)(2,1)}', space=vmem, size = 0x1b000, scoped, tag = 'scratch operand']
  %s0 = inlined_call_operand.vmem [shape: bf16[2,16,16,128], index: 0, kind: input, shape index: {}]
  %s1 = inlined_call_operand.vmem [shape: bf16[128,128], index: 1, kind: input, shape index: {}]
  %s2 = inlined_call_operand.vmem [shape: f32[1,128], index: 2, kind: input, shape index: {}]
  %s3 = inlined_call_operand.vmem [shape: f32[1,128], index: 3, kind: input, shape index: {}]
  %s4 = inlined_call_operand.vmem [shape: bf16[9,128,128], index: 4, kind: input, shape index: {}]
  %s5 = inlined_call_operand.vmem [shape: f32[1,128], index: 5, kind: input, shape index: {}]
  %s6 = inlined_call_operand.vmem [shape: f32[1,128], index: 6, kind: input, shape index: {}]
  %s7 = inlined_call_operand.vmem [shape: bf16[128,128], index: 7, kind: input, shape index: {}]
  %s8 = inlined_call_operand.vmem [shape: f32[1,128], index: 8, kind: input, shape index: {}]
  %s9 = inlined_call_operand.vmem [shape: f32[1,128], index: 9, kind: input, shape index: {}]
  %s10 = inlined_call_operand.vmem [shape: bf16[2,16,16,128], index: 10, kind: output, shape index: {}]
  %s11 = sld [smem:[#allocation0]]
  $region73: #{bottleneck_forward.1} parent=0
    _
  %s13 = ssub.s32 1, %s11
  %s14 = scalar_select 0, %s13, %s11
  loop: start=0, step=1, limit=4
  $region2: #{bottleneck_forward.1} parent=0 // loop_pre_header
    _
  $region3: #{bottleneck_forward.1} parent=0 // loop_header
    %s16 = sphi 0, %s20
    %p17 = scmp.ge.s32.totalorder %s16, 4
    %s23 = sphi 0, %s35
    %s24 = sphi 0, %s31
    %s25 = sphi 0, %s23
    %s26 = sphi 0, %s24
    %s27 = sphi 0, %s25
    %s28 = sphi 0, %s26
    %s38 = sphi 0, %s40
    %s41 = sphi 0, %s38
    %s42 = sphi 0, %s41
    %s58 = sphi 0, %s42
    %s62 = sphi 0, %s62
    %s64 = sphi 0, %s62
    %s65 = sphi 0, %s64
    %s79 = sphi 0, %s65
    %s83 = sphi 0, %s83
    %s85 = sphi 0, %s83
    %s86 = sphi 0, %s85
    %s100 = sphi 0, %s86
    %s104 = sphi 0, %s104
    %s106 = sphi 0, %s104
    %s107 = sphi 0, %s106
    %s121 = sphi 0, %s107
    %s125 = sphi 0, %s125
    %s127 = sphi 0, %s125
    %s128 = sphi 0, %s127
    %s142 = sphi 0, %s128
    %s146 = sphi 0, %s146
    %s148 = sphi 0, %s146
    %s149 = sphi 0, %s148
    %s163 = sphi 0, %s149
    %s167 = sphi 0, %s167
    %s169 = sphi 0, %s167
    %s170 = sphi 0, %s169
    %s184 = sphi 0, %s170
    %s188 = sphi 0, %s188
    %s190 = sphi 0, %s188
    %s191 = sphi 0, %s190
    %s205 = sphi 0, %s191
    %s209 = sphi 0, %s209
    %s211 = sphi 0, %s209
    %s212 = sphi 0, %s211
    %s226 = sphi 0, %s212
    %s230 = sphi 0, %s230
    %s232 = sphi 0, %s230
    %s233 = sphi 0, %s232
    %s247 = sphi 0, %s233
    %s255 = sphi 0, %s257
    %s258 = sphi 0, %s255
    %s259 = sphi 0, %s258
    %s275 = sphi 0, %s259
  $region4: #{bottleneck_forward.1} parent=0 // loop_header_branch
    %19 = sbr.rel (%p17) target = $region8
  $region5: #{bottleneck_forward.1} parent=0 // loop_body
    %s21 = ssub.s32 %s16, 1
    %s22 = ssub.s32 %s16, 2
    %s29 = sadd.s32 1, %s24
    %p30 = scmp.ge.s32.totalorder %s29, 1
    %s31 = scalar_select %p30, 0, %s29
    %s32 = sadd.s32 1, %s23
    %s33 = scalar_select %p30, %s32, %s23
    %p34 = scmp.ge.s32.totalorder %s33, 2
    %s35 = scalar_select %p34, 0, %s33
    %s36 = ssub.s32 %s23, %s35
    %p37 = scmp.eq.s32.totalorder %s36, 0
    %s39 = sadd.s32 %s38, 1
    %s40 = scalar_select %p37, %s38, %s39
    %p43 = pneg %p37
    %p44 = scmp.eq.s32.totalorder %s16, 1
    %p45 = por %p43, %p44
    %p46 = scmp.ne.s32.totalorder %s38, %s41
    %p47 = scmp.eq.s32.totalorder %s16, 0
    %p48 = por %p46, %p47
    %p49 = scmp.ne.s32.totalorder %s38, %s41
    %p50 = scmp.eq.s32.totalorder %s21, 1
    %p51 = por %p49, %p50
    %p52 = scmp.ne.s32.totalorder %s41, %s42
    %p53 = scmp.eq.s32.totalorder %s21, 0
    %p54 = por %p52, %p53
    %p55 = scmp.ne.s32.totalorder %s41, %s42
    %p56 = scmp.eq.s32.totalorder %s22, 1
    %p57 = por %p55, %p56
    %p59 = scmp.ne.s32.totalorder %s42, %s58
    %p60 = scmp.eq.s32.totalorder %s22, 0
    %p61 = por %p59, %p60
    %s63 = sadd.s32 %s62, 1
    %p66 = scmp.eq.s32.totalorder %s16, 1
    %p67 = scmp.ne.s32.totalorder %s62, %s64
    %p68 = scmp.eq.s32.totalorder %s16, 0
    %p69 = por %p67, %p68
    %p70 = scmp.ne.s32.totalorder %s62, %s64
    %p71 = scmp.eq.s32.totalorder %s21, 1
    %p72 = por %p70, %p71
    %p73 = scmp.ne.s32.totalorder %s64, %s65
    %p74 = scmp.eq.s32.totalorder %s21, 0
    %p75 = por %p73, %p74
    %p76 = scmp.ne.s32.totalorder %s64, %s65
    %p77 = scmp.eq.s32.totalorder %s22, 1
    %p78 = por %p76, %p77
    %p80 = scmp.ne.s32.totalorder %s65, %s79
    %p81 = scmp.eq.s32.totalorder %s22, 0
    %p82 = por %p80, %p81
    %s84 = sadd.s32 %s83, 1
    %p87 = scmp.eq.s32.totalorder %s16, 1
    %p88 = scmp.ne.s32.totalorder %s83, %s85
    %p89 = scmp.eq.s32.totalorder %s16, 0
    %p90 = por %p88, %p89
    %p91 = scmp.ne.s32.totalorder %s83, %s85
    %p92 = scmp.eq.s32.totalorder %s21, 1
    %p93 = por %p91, %p92
    %p94 = scmp.ne.s32.totalorder %s85, %s86
    %p95 = scmp.eq.s32.totalorder %s21, 0
    %p96 = por %p94, %p95
    %p97 = scmp.ne.s32.totalorder %s85, %s86
    %p98 = scmp.eq.s32.totalorder %s22, 1
    %p99 = por %p97, %p98
    %p101 = scmp.ne.s32.totalorder %s86, %s100
    %p102 = scmp.eq.s32.totalorder %s22, 0
    %p103 = por %p101, %p102
    %s105 = sadd.s32 %s104, 1
    %p108 = scmp.eq.s32.totalorder %s16, 1
    %p109 = scmp.ne.s32.totalorder %s104, %s106
    %p110 = scmp.eq.s32.totalorder %s16, 0
    %p111 = por %p109, %p110
    %p112 = scmp.ne.s32.totalorder %s104, %s106
    %p113 = scmp.eq.s32.totalorder %s21, 1
    %p114 = por %p112, %p113
    %p115 = scmp.ne.s32.totalorder %s106, %s107
    %p116 = scmp.eq.s32.totalorder %s21, 0
    %p117 = por %p115, %p116
    %p118 = scmp.ne.s32.totalorder %s106, %s107
    %p119 = scmp.eq.s32.totalorder %s22, 1
    %p120 = por %p118, %p119
    %p122 = scmp.ne.s32.totalorder %s107, %s121
    %p123 = scmp.eq.s32.totalorder %s22, 0
    %p124 = por %p122, %p123
    %s126 = sadd.s32 %s125, 1
    %p129 = scmp.eq.s32.totalorder %s16, 1
    %p130 = scmp.ne.s32.totalorder %s125, %s127
    %p131 = scmp.eq.s32.totalorder %s16, 0
    %p132 = por %p130, %p131
    %p133 = scmp.ne.s32.totalorder %s125, %s127
    %p134 = scmp.eq.s32.totalorder %s21, 1
    %p135 = por %p133, %p134
    %p136 = scmp.ne.s32.totalorder %s127, %s128
    %p137 = scmp.eq.s32.totalorder %s21, 0
    %p138 = por %p136, %p137
    %p139 = scmp.ne.s32.totalorder %s127, %s128
    %p140 = scmp.eq.s32.totalorder %s22, 1
    %p141 = por %p139, %p140
    %p143 = scmp.ne.s32.totalorder %s128, %s142
    %p144 = scmp.eq.s32.totalorder %s22, 0
    %p145 = por %p143, %p144
    %s147 = sadd.s32 %s146, 1
    %p150 = scmp.eq.s32.totalorder %s16, 1
    %p151 = scmp.ne.s32.totalorder %s146, %s148
    %p152 = scmp.eq.s32.totalorder %s16, 0
    %p153 = por %p151, %p152
    %p154 = scmp.ne.s32.totalorder %s146, %s148
    %p155 = scmp.eq.s32.totalorder %s21, 1
    %p156 = por %p154, %p155
    %p157 = scmp.ne.s32.totalorder %s148, %s149
    %p158 = scmp.eq.s32.totalorder %s21, 0
    %p159 = por %p157, %p158
    %p160 = scmp.ne.s32.totalorder %s148, %s149
    %p161 = scmp.eq.s32.totalorder %s22, 1
    %p162 = por %p160, %p161
    %p164 = scmp.ne.s32.totalorder %s149, %s163
    %p165 = scmp.eq.s32.totalorder %s22, 0
    %p166 = por %p164, %p165
    %s168 = sadd.s32 %s167, 1
    %p171 = scmp.eq.s32.totalorder %s16, 1
    %p172 = scmp.ne.s32.totalorder %s167, %s169
    %p173 = scmp.eq.s32.totalorder %s16, 0
    %p174 = por %p172, %p173
    %p175 = scmp.ne.s32.totalorder %s167, %s169
    %p176 = scmp.eq.s32.totalorder %s21, 1
    %p177 = por %p175, %p176
    %p178 = scmp.ne.s32.totalorder %s169, %s170
    %p179 = scmp.eq.s32.totalorder %s21, 0
    %p180 = por %p178, %p179
    %p181 = scmp.ne.s32.totalorder %s169, %s170
    %p182 = scmp.eq.s32.totalorder %s22, 1
    %p183 = por %p181, %p182
    %p185 = scmp.ne.s32.totalorder %s170, %s184
    %p186 = scmp.eq.s32.totalorder %s22, 0
    %p187 = por %p185, %p186
    %s189 = sadd.s32 %s188, 1
    %p192 = scmp.eq.s32.totalorder %s16, 1
    %p193 = scmp.ne.s32.totalorder %s188, %s190
    %p194 = scmp.eq.s32.totalorder %s16, 0
    %p195 = por %p193, %p194
    %p196 = scmp.ne.s32.totalorder %s188, %s190
    %p197 = scmp.eq.s32.totalorder %s21, 1
    %p198 = por %p196, %p197
    %p199 = scmp.ne.s32.totalorder %s190, %s191
    %p200 = scmp.eq.s32.totalorder %s21, 0
    %p201 = por %p199, %p200
    %p202 = scmp.ne.s32.totalorder %s190, %s191
    %p203 = scmp.eq.s32.totalorder %s22, 1
    %p204 = por %p202, %p203
    %p206 = scmp.ne.s32.totalorder %s191, %s205
    %p207 = scmp.eq.s32.totalorder %s22, 0
    %p208 = por %p206, %p207
    %s210 = sadd.s32 %s209, 1
    %p213 = scmp.eq.s32.totalorder %s16, 1
    %p214 = scmp.ne.s32.totalorder %s209, %s211
    %p215 = scmp.eq.s32.totalorder %s16, 0
    %p216 = por %p214, %p215
    %p217 = scmp.ne.s32.totalorder %s209, %s211
    %p218 = scmp.eq.s32.totalorder %s21, 1
    %p219 = por %p217, %p218
    %p220 = scmp.ne.s32.totalorder %s211, %s212
    %p221 = scmp.eq.s32.totalorder %s21, 0
    %p222 = por %p220, %p221
    %p223 = scmp.ne.s32.totalorder %s211, %s212
    %p224 = scmp.eq.s32.totalorder %s22, 1
    %p225 = por %p223, %p224
    %p227 = scmp.ne.s32.totalorder %s212, %s226
    %p228 = scmp.eq.s32.totalorder %s22, 0
    %p229 = por %p227, %p228
    %s231 = sadd.s32 %s230, 1
    %p234 = scmp.eq.s32.totalorder %s16, 1
    %p235 = scmp.ne.s32.totalorder %s230, %s232
    %p236 = scmp.eq.s32.totalorder %s16, 0
    %p237 = por %p235, %p236
    %p238 = scmp.ne.s32.totalorder %s230, %s232
    %p239 = scmp.eq.s32.totalorder %s21, 1
    %p240 = por %p238, %p239
    %p241 = scmp.ne.s32.totalorder %s232, %s233
    %p242 = scmp.eq.s32.totalorder %s21, 0
    %p243 = por %p241, %p242
    %p244 = scmp.ne.s32.totalorder %s232, %s233
    %p245 = scmp.eq.s32.totalorder %s22, 1
    %p246 = por %p244, %p245
    %p248 = scmp.ne.s32.totalorder %s233, %s247
    %p249 = scmp.eq.s32.totalorder %s22, 0
    %p250 = por %p248, %p249
    %s251 = ssub.s32 %s23, %s35
    %s252 = ssub.s32 %s24, %s31
    %s253 = sor.u32 %s251, %s252
    %p254 = scmp.eq.s32.totalorder %s253, 0
    %s256 = sadd.s32 %s255, 1
    %s257 = scalar_select %p254, %s255, %s256
    %p260 = pneg %p254
    %p261 = scmp.eq.s32.totalorder %s16, 1
    %p262 = por %p260, %p261
    %p263 = scmp.ne.s32.totalorder %s255, %s258
    %p264 = scmp.eq.s32.totalorder %s16, 0
    %p265 = por %p263, %p264
    %p266 = scmp.ne.s32.totalorder %s255, %s258
    %p267 = scmp.eq.s32.totalorder %s21, 1
    %p268 = por %p266, %p267
    %p269 = scmp.ne.s32.totalorder %s258, %s259
    %p270 = scmp.eq.s32.totalorder %s21, 0
    %p271 = por %p269, %p270
    %p272 = scmp.ne.s32.totalorder %s258, %s259
    %p273 = scmp.eq.s32.totalorder %s22, 1
    %p274 = por %p272, %p273
    %p276 = scmp.ne.s32.totalorder %s259, %s275
    %p277 = scmp.eq.s32.totalorder %s22, 0
    %p278 = por %p276, %p277
    %p279 = scmp.le.s32.totalorder 1, %s16
    %p280 = scmp.lt.s32.totalorder %s16, 3
    %p281 = pnand %p279, %p280
    %p282 = pneg %p281
    // Predicated region
    $region9: #{bottleneck_forward.1} parent=5 // pred_check
      _
    $region10: #{bottleneck_forward.1} parent=5 // pred_check_branch
      %284 = sbr.rel (%p281) target = $region12
    $region11: #{bottleneck_forward.1} parent=5 // pred_region
      %s285 = ssub.s32 %s16, 1
      // Predicated region
      $region13: #{bottleneck_forward.1} parent=11 // pred_check
        %p286 = pneg %p75
      $region14: #{bottleneck_forward.1} parent=11 // pred_check_branch
        %288 = sbr.rel (%p286) target = $region16
      $region15: #{bottleneck_forward.1} parent=11 // pred_region
        _
      $region16: #{bottleneck_forward.1} parent=11 // pred_fallthru
        _
      // Predicated region
      $region17: #{bottleneck_forward.1} parent=11 // pred_check
        %p289 = pneg %p96
      $region18: #{bottleneck_forward.1} parent=11 // pred_check_branch
        %291 = sbr.rel (%p289) target = $region20
      $region19: #{bottleneck_forward.1} parent=11 // pred_region
        _
      $region20: #{bottleneck_forward.1} parent=11 // pred_fallthru
        _
      // Predicated region
      $region21: #{bottleneck_forward.1} parent=11 // pred_check
        %p292 = pneg %p117
      $region22: #{bottleneck_forward.1} parent=11 // pred_check_branch
        %294 = sbr.rel (%p292) target = $region24
      $region23: #{bottleneck_forward.1} parent=11 // pred_region
        _
      $region24: #{bottleneck_forward.1} parent=11 // pred_fallthru
        _
      // Predicated region
      $region25: #{bottleneck_forward.1} parent=11 // pred_check
        %p295 = pneg %p138
      $region26: #{bottleneck_forward.1} parent=11 // pred_check_branch
        %297 = sbr.rel (%p295) target = $region28
      $region27: #{bottleneck_forward.1} parent=11 // pred_region
        _
      $region28: #{bottleneck_forward.1} parent=11 // pred_fallthru
        _
      // Predicated region
      $region29: #{bottleneck_forward.1} parent=11 // pred_check
        %p298 = pneg %p159
      $region30: #{bottleneck_forward.1} parent=11 // pred_check_branch
        %300 = sbr.rel (%p298) target = $region32
      $region31: #{bottleneck_forward.1} parent=11 // pred_region
        _
      $region32: #{bottleneck_forward.1} parent=11 // pred_fallthru
        _
      // Predicated region
      $region33: #{bottleneck_forward.1} parent=11 // pred_check
        %p301 = pneg %p180
      $region34: #{bottleneck_forward.1} parent=11 // pred_check_branch
        %303 = sbr.rel (%p301) target = $region36
      $region35: #{bottleneck_forward.1} parent=11 // pred_region
        _
      $region36: #{bottleneck_forward.1} parent=11 // pred_fallthru
        _
      // Predicated region
      $region37: #{bottleneck_forward.1} parent=11 // pred_check
        %p304 = pneg %p201
      $region38: #{bottleneck_forward.1} parent=11 // pred_check_branch
        %306 = sbr.rel (%p304) target = $region40
      $region39: #{bottleneck_forward.1} parent=11 // pred_region
        _
      $region40: #{bottleneck_forward.1} parent=11 // pred_fallthru
        _
      // Predicated region
      $region41: #{bottleneck_forward.1} parent=11 // pred_check
        %p307 = pneg %p222
      $region42: #{bottleneck_forward.1} parent=11 // pred_check_branch
        %309 = sbr.rel (%p307) target = $region44
      $region43: #{bottleneck_forward.1} parent=11 // pred_region
        _
      $region44: #{bottleneck_forward.1} parent=11 // pred_fallthru
        _
      // Predicated region
      $region45: #{bottleneck_forward.1} parent=11 // pred_check
        %p310 = pneg %p243
      $region46: #{bottleneck_forward.1} parent=11 // pred_check_branch
        %312 = sbr.rel (%p310) target = $region48
      $region47: #{bottleneck_forward.1} parent=11 // pred_region
        _
      $region48: #{bottleneck_forward.1} parent=11 // pred_fallthru
        _
    $region12: #{bottleneck_forward.1} parent=5 // pred_fallthru
      _
    %p313 = scmp.lt.s32.totalorder %s16, 2
    // Predicated region
    $region49: #{bottleneck_forward.1} parent=5 // pred_check
      %p314 = pneg %p313
    $region50: #{bottleneck_forward.1} parent=5 // pred_check_branch
      %316 = sbr.rel (%p314) target = $region52
    $region51: #{bottleneck_forward.1} parent=5 // pred_region
      // Predicated region
      $region53: #{bottleneck_forward.1} parent=51 // pred_check
        %p317 = pneg %p48
      $region54: #{bottleneck_forward.1} parent=51 // pred_check_branch
        %319 = sbr.rel (%p317) target = $region56
      $region55: #{bottleneck_forward.1} parent=51 // pred_region
        %p320 = scmp.lt.s32.totalorder %s23, 1
        %s321 = scalar_select %p320, %s23, 1
        %s322 = smul.addr %s321, 32
        %s323 = smul.addr %s322, 4
        %s324 = scalar_lea.vmem %s0, %s323
      $region56: #{bottleneck_forward.1} parent=51 // pred_fallthru
        _
    $region52: #{bottleneck_forward.1} parent=5 // pred_fallthru
      _
    %p325 = scmp.le.s32.totalorder 1, %s16
    %p326 = scmp.lt.s32.totalorder %s16, 3
    %p327 = pnand %p325, %p326
    %p328 = pneg %p327
    // Predicated region
    $region57: #{bottleneck_forward.1} parent=5 // pred_check
      _
    $region58: #{bottleneck_forward.1} parent=5 // pred_check_branch
      %330 = sbr.rel (%p327) target = $region60
    $region59: #{bottleneck_forward.1} parent=5 // pred_region
      %s331 = ssub.s32 %s16, 1
      %p332 = scmp.lt.s32.totalorder %s25, 1
      %s333 = scalar_select %p332, %s25, 1
      %s334 = smul.addr %s333, 32
      %s335 = smul.addr %s334, 4
      %s336 = scalar_lea.vmem %s0, %s335
      %p337 = pneg %p54
      %p338 = pneg %p51
      %p339 = pneg %p75
      %p340 = pneg %p72
      %p341 = pneg %p96
      %p342 = pneg %p93
      %p343 = pneg %p117
      %p344 = pneg %p114
      %p345 = pneg %p138
      %p346 = pneg %p135
      %p347 = pneg %p159
      %p348 = pneg %p156
      %p349 = pneg %p180
      %p350 = pneg %p177
      %p351 = pneg %p201
      %p352 = pneg %p198
      %p353 = pneg %p222
      %p354 = pneg %p219
      %p355 = pneg %p243
      %p356 = pneg %p240
      %p357 = pneg %p271
      %p358 = pneg %p268
      %s359 = smul.u32 16, %s26
      %p360 = scmp.lt.s32.totalorder %s25, 1
      %s361 = scalar_select %p360, %s25, 1
      %p362 = scmp.lt.s32.totalorder %s359, 15
      %s363 = scalar_select %p362, %s359, 15
      %s364 = smul.addr %s363, 2
      %s365 = smul.addr %s361, 32
      %s366 = sadd.s32 %s364, %s365
      %s367 = smul.addr %s366, 4
      %s368 = scalar_lea.vmem %s10, %s367
      %p369 = scmp.lt.s32.totalorder %s25, 1
      %s370 = scalar_select %p369, %s25, 1
      %s371 = smul.addr %s370, 32
      %s372 = smul.addr %s371, 4
      %s373 = scalar_lea.vmem %s0, %s372
      %s374 = smul.u32 16, %s26
      %p375 = scmp.lt.s32.totalorder %s25, 1
      %s376 = scalar_select %p375, %s25, 1
      %p377 = scmp.lt.s32.totalorder %s374, 15
      %s378 = scalar_select %p377, %s374, 15
      %s379 = smul.addr %s378, 2
      %s380 = smul.addr %s376, 32
      %s381 = sadd.s32 %s379, %s380
      %s382 = smul.addr %s381, 4
      %s383 = scalar_lea.vmem %s10, %s382
      %s384 = smul.u32 16, %s26
      %v386 = vld [vmem:[%s373] sm:$0xf]
      %v387 = vld [vmem:[%s373 + $0x4] sm:$0xf]
      %v388 = vld [vmem:[%s373 + $0x8] sm:$0xf]
      %v389 = vld [vmem:[%s373 + $0xc] sm:$0xf]
      %v390 = vld [vmem:[%s373 + $0x10] sm:$0xf]
      %v391 = vld [vmem:[%s373 + $0x14] sm:$0xf]
      %v392 = vld [vmem:[%s373 + $0x18] sm:$0xf]
      %v393 = vld [vmem:[%s373 + $0x1c] sm:$0xf]
      %v394 = vld [vmem:[%s373 + $0x20] sm:$0xf]
      %v395 = vld [vmem:[%s373 + $0x24] sm:$0xf]
      %v396 = vld [vmem:[%s373 + $0x28] sm:$0xf]
      %v397 = vld [vmem:[%s373 + $0x2c] sm:$0xf]
      %v398 = vld [vmem:[%s373 + $0x30] sm:$0xf]
      %v399 = vld [vmem:[%s373 + $0x34] sm:$0xf]
      %v400 = vld [vmem:[%s373 + $0x38] sm:$0xf]
      %v401 = vld [vmem:[%s373 + $0x3c] sm:$0xf]
      %v402 = vld [vmem:[%s373 + $0x40] sm:$0xf]
      %v403 = vld [vmem:[%s373 + $0x44] sm:$0xf]
      %v404 = vld [vmem:[%s373 + $0x48] sm:$0xf]
      %v405 = vld [vmem:[%s373 + $0x4c] sm:$0xf]
      %v406 = vld [vmem:[%s373 + $0x50] sm:$0xf]
      %v407 = vld [vmem:[%s373 + $0x54] sm:$0xf]
      %v408 = vld [vmem:[%s373 + $0x58] sm:$0xf]
      %v409 = vld [vmem:[%s373 + $0x5c] sm:$0xf]
      %v410 = vld [vmem:[%s373 + $0x60] sm:$0xf]
      %v411 = vld [vmem:[%s373 + $0x64] sm:$0xf]
      %v412 = vld [vmem:[%s373 + $0x68] sm:$0xf]
      %v413 = vld [vmem:[%s373 + $0x6c] sm:$0xf]
      %v414 = vld [vmem:[%s373 + $0x70] sm:$0xf]
      %v415 = vld [vmem:[%s373 + $0x74] sm:$0xf]
      %v416 = vld [vmem:[%s373 + $0x78] sm:$0xf]
      %v417 = vld [vmem:[%s373 + $0x7c] sm:$0xf]
      %v418 = vld [vmem:[%s1] sm:$0xf]
      %v419 = vld [vmem:[%s1 + $0x4] sm:$0xf]
      %v420 = vld [vmem:[%s1 + $0x8] sm:$0xf]
      %v421 = vld [vmem:[%s1 + $0xc] sm:$0xf]
      %v422 = vld [vmem:[%s1 + $0x10] sm:$0xf]
      %v423 = vld [vmem:[%s1 + $0x14] sm:$0xf]
      %v424 = vld [vmem:[%s1 + $0x18] sm:$0xf]
      %v425 = vld [vmem:[%s1 + $0x1c] sm:$0xf]
      %v426 = vld [vmem:[%s1 + $0x20] sm:$0xf]
      %v427 = vld [vmem:[%s1 + $0x24] sm:$0xf]
      %v428 = vld [vmem:[%s1 + $0x28] sm:$0xf]
      %v429 = vld [vmem:[%s1 + $0x2c] sm:$0xf]
      %v430 = vld [vmem:[%s1 + $0x30] sm:$0xf]
      %v431 = vld [vmem:[%s1 + $0x34] sm:$0xf]
      %v432 = vld [vmem:[%s1 + $0x38] sm:$0xf]
      %v433 = vld [vmem:[%s1 + $0x3c] sm:$0xf]
      %v466 = vunpack.c.l.b16 %v386
      %v467 = vunpack.c.l.b16 %v387
      %v468 = vunpack.c.l.b16 %v388
      %v469 = vunpack.c.l.b16 %v389
      %v470 = vunpack.c.l.b16 %v390
      %v471 = vunpack.c.l.b16 %v391
      %v472 = vunpack.c.l.b16 %v392
      %v473 = vunpack.c.l.b16 %v393
      %v474 = vunpack.c.l.b16 %v394
      %v475 = vunpack.c.l.b16 %v395
      %v476 = vunpack.c.l.b16 %v396
      %v477 = vunpack.c.l.b16 %v397
      %v478 = vunpack.c.l.b16 %v398
      %v479 = vunpack.c.l.b16 %v399
      %v480 = vunpack.c.l.b16 %v400
      %v481 = vunpack.c.l.b16 %v401
      %v482 = vunpack.c.l.b16 %v402
      %v483 = vunpack.c.l.b16 %v403
      %v484 = vunpack.c.l.b16 %v404
      %v485 = vunpack.c.l.b16 %v405
      %v486 = vunpack.c.l.b16 %v406
      %v487 = vunpack.c.l.b16 %v407
      %v488 = vunpack.c.l.b16 %v408
      %v489 = vunpack.c.l.b16 %v409
      %v490 = vunpack.c.l.b16 %v410
      %v491 = vunpack.c.l.b16 %v411
      %v492 = vunpack.c.l.b16 %v412
      %v493 = vunpack.c.l.b16 %v413
      %v494 = vunpack.c.l.b16 %v414
      %v495 = vunpack.c.l.b16 %v415
      %v496 = vunpack.c.l.b16 %v416
      %v497 = vunpack.c.l.b16 %v417
      %v498 = vpack.c.b16 %v467, %v466
      %v499 = vpack.c.b16 %v469, %v468
      %v500 = vpack.c.b16 %v471, %v470
      %v501 = vpack.c.b16 %v473, %v472
      %v502 = vpack.c.b16 %v475, %v474
      %v503 = vpack.c.b16 %v477, %v476
      %v504 = vpack.c.b16 %v479, %v478
      %v505 = vpack.c.b16 %v481, %v480
      %v506 = vpack.c.b16 %v483, %v482
      %v507 = vpack.c.b16 %v485, %v484
      %v508 = vpack.c.b16 %v487, %v486
      %v509 = vpack.c.b16 %v489, %v488
      %v510 = vpack.c.b16 %v491, %v490
      %v511 = vpack.c.b16 %v493, %v492
      %v512 = vpack.c.b16 %v495, %v494
      %v513 = vpack.c.b16 %v497, %v496
      %v546 = vunpack.c.l.b16 %v418
      %v547 = vunpack.c.l.b16 %v419
      %v548 = vunpack.c.l.b16 %v420
      %v549 = vunpack.c.l.b16 %v421
      %v550 = vunpack.c.l.b16 %v422
      %v551 = vunpack.c.l.b16 %v423
      %v552 = vunpack.c.l.b16 %v424
      %v553 = vunpack.c.l.b16 %v425
      %v554 = vunpack.c.l.b16 %v426
      %v555 = vunpack.c.l.b16 %v427
      %v556 = vunpack.c.l.b16 %v428
      %v557 = vunpack.c.l.b16 %v429
      %v558 = vunpack.c.l.b16 %v430
      %v559 = vunpack.c.l.b16 %v431
      %v560 = vunpack.c.l.b16 %v432
      %v561 = vunpack.c.l.b16 %v433
      %v562 = vpack.c.b16 %v547, %v546
      %v563 = vpack.c.b16 %v549, %v548
      %v564 = vpack.c.b16 %v551, %v550
      %v565 = vpack.c.b16 %v553, %v552
      %v566 = vpack.c.b16 %v555, %v554
      %v567 = vpack.c.b16 %v557, %v556
      %v568 = vpack.c.b16 %v559, %v558
      %v569 = vpack.c.b16 %v561, %v560
      %578 = vmatpush.bf16.msra.mxu0 %v569
      %579 = vmatpush.bf16.msra.mxu0 %v568
      %580 = vmatpush.bf16.msra.mxu0 %v567
      %581 = vmatpush.bf16.msra.mxu0 %v566
      %582 = vmatpush.bf16.msra.mxu0 %v565
      %583 = vmatpush.bf16.msra.mxu0 %v564
      %584 = vmatpush.bf16.msra.mxu0 %v563
      %585 = vmatpush.bf16.msra.mxu0 %v562
      %586 = vmatmul.bf16.gmra.mxu0 %v498
      %v587 = vpop.f32.mrf.mxu0
      %v588 = vadd.f32 0.0, %v587
      %v589 = vpop.f32.mrf.mxu0
      %v590 = vadd.f32 0.0, %v589
      %591 = vmatmul.bf16.gmra.mxu0 %v499
      %v592 = vpop.f32.mrf.mxu0
      %v593 = vadd.f32 0.0, %v592
      %v594 = vpop.f32.mrf.mxu0
      %v595 = vadd.f32 0.0, %v594
      %596 = vmatmul.bf16.gmra.mxu0 %v500
      %v597 = vpop.f32.mrf.mxu0
      %v598 = vadd.f32 0.0, %v597
      %v599 = vpop.f32.mrf.mxu0
      %v600 = vadd.f32 0.0, %v599
      %601 = vmatmul.bf16.gmra.mxu0 %v501
      %v602 = vpop.f32.mrf.mxu0
      %v603 = vadd.f32 0.0, %v602
      %v604 = vpop.f32.mrf.mxu0
      %v605 = vadd.f32 0.0, %v604
      %606 = vmatmul.bf16.gmra.mxu0 %v502
      %v607 = vpop.f32.mrf.mxu0
      %v608 = vadd.f32 0.0, %v607
      %v609 = vpop.f32.mrf.mxu0
      %v610 = vadd.f32 0.0, %v609
      %611 = vmatmul.bf16.gmra.mxu0 %v503
      %v612 = vpop.f32.mrf.mxu0
      %v613 = vadd.f32 0.0, %v612
      %v614 = vpop.f32.mrf.mxu0
      %v615 = vadd.f32 0.0, %v614
      %616 = vmatmul.bf16.gmra.mxu0 %v504
      %v617 = vpop.f32.mrf.mxu0
      %v618 = vadd.f32 0.0, %v617
      %v619 = vpop.f32.mrf.mxu0
      %v620 = vadd.f32 0.0, %v619
      %621 = vmatmul.bf16.gmra.mxu0 %v505
      %v622 = vpop.f32.mrf.mxu0
      %v623 = vadd.f32 0.0, %v622
      %v624 = vpop.f32.mrf.mxu0
      %v625 = vadd.f32 0.0, %v624
      %626 = vmatmul.bf16.gmra.mxu0 %v506
      %v627 = vpop.f32.mrf.mxu0
      %v628 = vadd.f32 0.0, %v627
      %v629 = vpop.f32.mrf.mxu0
      %v630 = vadd.f32 0.0, %v629
      %631 = vmatmul.bf16.gmra.mxu0 %v507
      %v632 = vpop.f32.mrf.mxu0
      %v633 = vadd.f32 0.0, %v632
      %v634 = vpop.f32.mrf.mxu0
      %v635 = vadd.f32 0.0, %v634
      %636 = vmatmul.bf16.gmra.mxu0 %v508
      %v637 = vpop.f32.mrf.mxu0
      %v638 = vadd.f32 0.0, %v637
      %v639 = vpop.f32.mrf.mxu0
      %v640 = vadd.f32 0.0, %v639
      %641 = vmatmul.bf16.gmra.mxu0 %v509
      %v642 = vpop.f32.mrf.mxu0
      %v643 = vadd.f32 0.0, %v642
      %v644 = vpop.f32.mrf.mxu0
      %v645 = vadd.f32 0.0, %v644
      %646 = vmatmul.bf16.gmra.mxu0 %v510
      %v647 = vpop.f32.mrf.mxu0
      %v648 = vadd.f32 0.0, %v647
      %v649 = vpop.f32.mrf.mxu0
      %v650 = vadd.f32 0.0, %v649
      %651 = vmatmul.bf16.gmra.mxu0 %v511
      %v652 = vpop.f32.mrf.mxu0
      %v653 = vadd.f32 0.0, %v652
      %v654 = vpop.f32.mrf.mxu0
      %v655 = vadd.f32 0.0, %v654
      %656 = vmatmul.bf16.gmra.mxu0 %v512
      %v657 = vpop.f32.mrf.mxu0
      %v658 = vadd.f32 0.0, %v657
      %v659 = vpop.f32.mrf.mxu0
      %v660 = vadd.f32 0.0, %v659
      %661 = vmatmul.bf16.gmra.mxu0 %v513
      %v662 = vpop.f32.mrf.mxu0
      %v663 = vadd.f32 0.0, %v662
      %v664 = vpop.f32.mrf.mxu0
      %v665 = vadd.f32 0.0, %v664
      %666 = vdwg.mxu0
      %v667 = vld [vmem:[%s2] sm:$0x1]
      %v669 = vperm.slane %v667, 0
      %v671 = vmul.f32 %v588, %v669
      %v672 = vmul.f32 %v590, %v669
      %v673 = vmul.f32 %v593, %v669
      %v674 = vmul.f32 %v595, %v669
      %v675 = vmul.f32 %v598, %v669
      %v676 = vmul.f32 %v600, %v669
      %v677 = vmul.f32 %v603, %v669
      %v678 = vmul.f32 %v605, %v669
      %v679 = vmul.f32 %v608, %v669
      %v680 = vmul.f32 %v610, %v669
      %v681 = vmul.f32 %v613, %v669
      %v682 = vmul.f32 %v615, %v669
      %v683 = vmul.f32 %v618, %v669
      %v684 = vmul.f32 %v620, %v669
      %v685 = vmul.f32 %v623, %v669
      %v686 = vmul.f32 %v625, %v669
      %v687 = vmul.f32 %v628, %v669
      %v688 = vmul.f32 %v630, %v669
      %v689 = vmul.f32 %v633, %v669
      %v690 = vmul.f32 %v635, %v669
      %v691 = vmul.f32 %v638, %v669
      %v692 = vmul.f32 %v640, %v669
      %v693 = vmul.f32 %v643, %v669
      %v694 = vmul.f32 %v645, %v669
      %v695 = vmul.f32 %v648, %v669
      %v696 = vmul.f32 %v650, %v669
      %v697 = vmul.f32 %v653, %v669
      %v698 = vmul.f32 %v655, %v669
      %v699 = vmul.f32 %v658, %v669
      %v700 = vmul.f32 %v660, %v669
      %v701 = vmul.f32 %v663, %v669
      %v702 = vmul.f32 %v665, %v669
      %v703 = vld [vmem:[%s3] sm:$0x1]
      %v705 = vperm.slane %v703, 0
      %v707 = vadd.f32 %v671, %v705
      %v708 = vadd.f32 %v672, %v705
      %v709 = vadd.f32 %v673, %v705
      %v710 = vadd.f32 %v674, %v705
      %v711 = vadd.f32 %v675, %v705
      %v712 = vadd.f32 %v676, %v705
      %v713 = vadd.f32 %v677, %v705
      %v714 = vadd.f32 %v678, %v705
      %v715 = vadd.f32 %v679, %v705
      %v716 = vadd.f32 %v680, %v705
      %v717 = vadd.f32 %v681, %v705
      %v718 = vadd.f32 %v682, %v705
      %v719 = vadd.f32 %v683, %v705
      %v720 = vadd.f32 %v684, %v705
      %v721 = vadd.f32 %v685, %v705
      %v722 = vadd.f32 %v686, %v705
      %v723 = vadd.f32 %v687, %v705
      %v724 = vadd.f32 %v688, %v705
      %v725 = vadd.f32 %v689, %v705
      %v726 = vadd.f32 %v690, %v705
      %v727 = vadd.f32 %v691, %v705
      %v728 = vadd.f32 %v692, %v705
      %v729 = vadd.f32 %v693, %v705
      %v730 = vadd.f32 %v694, %v705
      %v731 = vadd.f32 %v695, %v705
      %v732 = vadd.f32 %v696, %v705
      %v733 = vadd.f32 %v697, %v705
      %v734 = vadd.f32 %v698, %v705
      %v735 = vadd.f32 %v699, %v705
      %v736 = vadd.f32 %v700, %v705
      %v737 = vadd.f32 %v701, %v705
      %v738 = vadd.f32 %v702, %v705
      %v739 = vmax.f32 %v707, 0.0
      %v740 = vmax.f32 %v708, 0.0
      %v741 = vmax.f32 %v709, 0.0
      %v742 = vmax.f32 %v710, 0.0
      %v743 = vmax.f32 %v711, 0.0
      %v744 = vmax.f32 %v712, 0.0
      %v745 = vmax.f32 %v713, 0.0
      %v746 = vmax.f32 %v714, 0.0
      %v747 = vmax.f32 %v715, 0.0
      %v748 = vmax.f32 %v716, 0.0
      %v749 = vmax.f32 %v717, 0.0
      %v750 = vmax.f32 %v718, 0.0
      %v751 = vmax.f32 %v719, 0.0
      %v752 = vmax.f32 %v720, 0.0
      %v753 = vmax.f32 %v721, 0.0
      %v754 = vmax.f32 %v722, 0.0
      %v755 = vmax.f32 %v723, 0.0
      %v756 = vmax.f32 %v724, 0.0
      %v757 = vmax.f32 %v725, 0.0
      %v758 = vmax.f32 %v726, 0.0
      %v759 = vmax.f32 %v727, 0.0
      %v760 = vmax.f32 %v728, 0.0
      %v761 = vmax.f32 %v729, 0.0
      %v762 = vmax.f32 %v730, 0.0
      %v763 = vmax.f32 %v731, 0.0
      %v764 = vmax.f32 %v732, 0.0
      %v765 = vmax.f32 %v733, 0.0
      %v766 = vmax.f32 %v734, 0.0
      %v767 = vmax.f32 %v735, 0.0
      %v768 = vmax.f32 %v736, 0.0
      %v769 = vmax.f32 %v737, 0.0
      %v770 = vmax.f32 %v738, 0.0
      %v771 = vpack.c.bf16 %v739, %v739
      %v772 = vpack.c.bf16 %v740, %v740
      %v773 = vpack.c.bf16 %v741, %v741
      %v774 = vpack.c.bf16 %v742, %v742
      %v775 = vpack.c.bf16 %v743, %v743
      %v776 = vpack.c.bf16 %v744, %v744
      %v777 = vpack.c.bf16 %v745, %v745
      %v778 = vpack.c.bf16 %v746, %v746
      %v779 = vpack.c.bf16 %v747, %v747
      %v780 = vpack.c.bf16 %v748, %v748
      %v781 = vpack.c.bf16 %v749, %v749
      %v782 = vpack.c.bf16 %v750, %v750
      %v783 = vpack.c.bf16 %v751, %v751
      %v784 = vpack.c.bf16 %v752, %v752
      %v785 = vpack.c.bf16 %v753, %v753
      %v786 = vpack.c.bf16 %v754, %v754
      %v787 = vpack.c.bf16 %v755, %v755
      %v788 = vpack.c.bf16 %v756, %v756
      %v789 = vpack.c.bf16 %v757, %v757
      %v790 = vpack.c.bf16 %v758, %v758
      %v791 = vpack.c.bf16 %v759, %v759
      %v792 = vpack.c.bf16 %v760, %v760
      %v793 = vpack.c.bf16 %v761, %v761
      %v794 = vpack.c.bf16 %v762, %v762
      %v795 = vpack.c.bf16 %v763, %v763
      %v796 = vpack.c.bf16 %v764, %v764
      %v797 = vpack.c.bf16 %v765, %v765
      %v798 = vpack.c.bf16 %v766, %v766
      %v799 = vpack.c.bf16 %v767, %v767
      %v800 = vpack.c.bf16 %v768, %v768
      %v801 = vpack.c.bf16 %v769, %v769
      %v802 = vpack.c.bf16 %v770, %v770
      %vm803 = vsmask.f32 256
      %vm804 = vsmask.f32 4368
      %vm805 = vmor %vm803, %vm804
      %v807 = vshrl.u32 %v771, 16
      %v809 = vrot.slane %v807, 7
      %v810 = vshll.u32 %v771, 16
      %v812 = vor.u32 %v809, %v810
      %v813 = vrot.slane %v809, 4
      %v815 = vshrl.u32 %v772, 16
      %v817 = vrot.slane %v815, 7
      %v818 = vshll.u32 %v772, 16
      %v820 = vor.u32 %v817, %v818
      %v821 = vsel %vm805, %v813, %v820
      %v822 = vrot.slane %v817, 4
      %v824 = vshrl.u32 %v773, 16
      %v826 = vrot.slane %v824, 7
      %v827 = vshll.u32 %v773, 16
      %v829 = vor.u32 %v826, %v827
      %v830 = vrot.slane %v826, 4
      %v832 = vshrl.u32 %v774, 16
      %v834 = vrot.slane %v832, 7
      %v835 = vshll.u32 %v774, 16
      %v837 = vor.u32 %v834, %v835
      %v838 = vsel %vm805, %v830, %v837
      %v839 = vrot.slane %v834, 4
      %v841 = vshrl.u32 %v775, 16
      %v843 = vrot.slane %v841, 7
      %v844 = vshll.u32 %v775, 16
      %v846 = vor.u32 %v843, %v844
      %v847 = vrot.slane %v843, 4
      %v849 = vshrl.u32 %v776, 16
      %v851 = vrot.slane %v849, 7
      %v852 = vshll.u32 %v776, 16
      %v854 = vor.u32 %v851, %v852
      %v855 = vsel %vm805, %v847, %v854
      %v856 = vrot.slane %v851, 4
      %v858 = vshrl.u32 %v777, 16
      %v860 = vrot.slane %v858, 7
      %v861 = vshll.u32 %v777, 16
      %v863 = vor.u32 %v860, %v861
      %v864 = vrot.slane %v860, 4
      %v866 = vshrl.u32 %v778, 16
      %v868 = vrot.slane %v866, 7
      %v869 = vshll.u32 %v778, 16
      %v871 = vor.u32 %v868, %v869
      %v872 = vsel %vm805, %v864, %v871
      %v873 = vrot.slane %v868, 4
      %v875 = vshrl.u32 %v779, 16
      %v877 = vrot.slane %v875, 7
      %v878 = vshll.u32 %v779, 16
      %v880 = vor.u32 %v877, %v878
      %v881 = vrot.slane %v877, 4
      %v883 = vshrl.u32 %v780, 16
      %v885 = vrot.slane %v883, 7
      %v886 = vshll.u32 %v780, 16
      %v888 = vor.u32 %v885, %v886
      %v889 = vsel %vm805, %v881, %v888
      %v890 = vrot.slane %v885, 4
      %v892 = vshrl.u32 %v781, 16
      %v894 = vrot.slane %v892, 7
      %v895 = vshll.u32 %v781, 16
      %v897 = vor.u32 %v894, %v895
      %v898 = vrot.slane %v894, 4
      %v900 = vshrl.u32 %v782, 16
      %v902 = vrot.slane %v900, 7
      %v903 = vshll.u32 %v782, 16
      %v905 = vor.u32 %v902, %v903
      %v906 = vsel %vm805, %v898, %v905
      %v907 = vrot.slane %v902, 4
      %v909 = vshrl.u32 %v783, 16
      %v911 = vrot.slane %v909, 7
      %v912 = vshll.u32 %v783, 16
      %v914 = vor.u32 %v911, %v912
      %v915 = vrot.slane %v911, 4
      %v917 = vshrl.u32 %v784, 16
      %v919 = vrot.slane %v917, 7
      %v920 = vshll.u32 %v784, 16
      %v922 = vor.u32 %v919, %v920
      %v923 = vsel %vm805, %v915, %v922
      %v924 = vrot.slane %v919, 4
      %v926 = vshrl.u32 %v785, 16
      %v928 = vrot.slane %v926, 7
      %v929 = vshll.u32 %v785, 16
      %v931 = vor.u32 %v928, %v929
      %v932 = vrot.slane %v928, 4
      %v934 = vshrl.u32 %v786, 16
      %v936 = vrot.slane %v934, 7
      %v937 = vshll.u32 %v786, 16
      %v939 = vor.u32 %v936, %v937
      %v940 = vsel %vm805, %v932, %v939
      %v941 = vrot.slane %v936, 4
      %v943 = vshrl.u32 %v787, 16
      %v945 = vrot.slane %v943, 7
      %v946 = vshll.u32 %v787, 16
      %v948 = vor.u32 %v945, %v946
      %v949 = vrot.slane %v945, 4
      %v951 = vshrl.u32 %v788, 16
      %v953 = vrot.slane %v951, 7
      %v954 = vshll.u32 %v788, 16
      %v956 = vor.u32 %v953, %v954
      %v957 = vsel %vm805, %v949, %v956
      %v958 = vrot.slane %v953, 4
      %v960 = vshrl.u32 %v789, 16
      %v962 = vrot.slane %v960, 7
      %v963 = vshll.u32 %v789, 16
      %v965 = vor.u32 %v962, %v963
      %v966 = vrot.slane %v962, 4
      %v968 = vshrl.u32 %v790, 16
      %v970 = vrot.slane %v968, 7
      %v971 = vshll.u32 %v790, 16
      %v973 = vor.u32 %v970, %v971
      %v974 = vsel %vm805, %v966, %v973
      %v975 = vrot.slane %v970, 4
      %v977 = vshrl.u32 %v791, 16
      %v979 = vrot.slane %v977, 7
      %v980 = vshll.u32 %v791, 16
      %v982 = vor.u32 %v979, %v980
      %v983 = vrot.slane %v979, 4
      %v985 = vshrl.u32 %v792, 16
      %v987 = vrot.slane %v985, 7
      %v988 = vshll.u32 %v792, 16
      %v990 = vor.u32 %v987, %v988
      %v991 = vsel %vm805, %v983, %v990
      %v992 = vrot.slane %v987, 4
      %v994 = vshrl.u32 %v793, 16
      %v996 = vrot.slane %v994, 7
      %v997 = vshll.u32 %v793, 16
      %v999 = vor.u32 %v996, %v997
      %v1000 = vrot.slane %v996, 4
      %v1002 = vshrl.u32 %v794, 16
      %v1004 = vrot.slane %v1002, 7
      %v1005 = vshll.u32 %v794, 16
      %v1007 = vor.u32 %v1004, %v1005
      %v1008 = vsel %vm805, %v1000, %v1007
      %v1009 = vrot.slane %v1004, 4
      %v1011 = vshrl.u32 %v795, 16
      %v1013 = vrot.slane %v1011, 7
      %v1014 = vshll.u32 %v795, 16
      %v1016 = vor.u32 %v1013, %v1014
      %v1017 = vrot.slane %v1013, 4
      %v1019 = vshrl.u32 %v796, 16
      %v1021 = vrot.slane %v1019, 7
      %v1022 = vshll.u32 %v796, 16
      %v1024 = vor.u32 %v1021, %v1022
      %v1025 = vsel %vm805, %v1017, %v1024
      %v1026 = vrot.slane %v1021, 4
      %v1028 = vshrl.u32 %v797, 16
      %v1030 = vrot.slane %v1028, 7
      %v1031 = vshll.u32 %v797, 16
      %v1033 = vor.u32 %v1030, %v1031
      %v1034 = vrot.slane %v1030, 4
      %v1036 = vshrl.u32 %v798, 16
      %v1038 = vrot.slane %v1036, 7
      %v1039 = vshll.u32 %v798, 16
      %v1041 = vor.u32 %v1038, %v1039
      %v1042 = vsel %vm805, %v1034, %v1041
      %v1043 = vrot.slane %v1038, 4
      %v1045 = vshrl.u32 %v799, 16
      %v1047 = vrot.slane %v1045, 7
      %v1048 = vshll.u32 %v799, 16
      %v1050 = vor.u32 %v1047, %v1048
      %v1051 = vrot.slane %v1047, 4
      %v1053 = vshrl.u32 %v800, 16
      %v1055 = vrot.slane %v1053, 7
      %v1056 = vshll.u32 %v800, 16
      %v1058 = vor.u32 %v1055, %v1056
      %v1059 = vsel %vm805, %v1051, %v1058
      %v1060 = vrot.slane %v1055, 4
      %v1062 = vshrl.u32 %v801, 16
      %v1064 = vrot.slane %v1062, 7
      %v1065 = vshll.u32 %v801, 16
      %v1067 = vor.u32 %v1064, %v1065
      %v1068 = vrot.slane %v1064, 4
      %v1070 = vshrl.u32 %v802, 16
      %v1072 = vrot.slane %v1070, 7
      %v1073 = vshll.u32 %v802, 16
      %v1075 = vor.u32 %v1072, %v1073
      %v1076 = vsel %vm805, %v1068, %v1075
      %v1077 = vrot.slane %v1072, 4
      %s1126 = scalar_lea.vmem [#allocation2], 12
      %vm1127 = vcmask 1043456
      %vm1128 = vsmask.f32 7938
      %vm1129 = vmand %vm1127, %vm1128
      %v1130 = vld [vmem:[%s1126] sm:$0xf]
      %v1131 = vsel %vm1129, %v812, %v1130
      %1132 = vst [vmem:[%s1126] sm:$0xf] %v1131
      %1133 = vst [vmem:[%s1126 + $0x4] sm:$0xf] %v821
      %vm1134 = vcmask 1040384
      %vm1135 = vmand %vm1134, %vm803
      %v1136 = vld [vmem:[%s1126 + $0x8] sm:$0x1]
      %v1137 = vsel %vm1135, %v822, %v1136
      %1138 = vst [vmem:[%s1126 + $0x8] sm:$0x1] %v1137
      %v1139 = vld [vmem:[%s1126 + $0xc] sm:$0xf]
      %v1140 = vsel %vm1129, %v829, %v1139
      %1141 = vst [vmem:[%s1126 + $0xc] sm:$0xf] %v1140
      %1142 = vst [vmem:[%s1126 + $0x10] sm:$0xf] %v838
      %v1143 = vld [vmem:[%s1126 + $0x14] sm:$0x1]
      %v1144 = vsel %vm1135, %v839, %v1143
      %1145 = vst [vmem:[%s1126 + $0x14] sm:$0x1] %v1144
      %v1146 = vld [vmem:[%s1126 + $0x18] sm:$0xf]
      %v1147 = vsel %vm1129, %v846, %v1146
      %1148 = vst [vmem:[%s1126 + $0x18] sm:$0xf] %v1147
      %1149 = vst [vmem:[%s1126 + $0x1c] sm:$0xf] %v855
      %v1150 = vld [vmem:[%s1126 + $0x20] sm:$0x1]
      %v1151 = vsel %vm1135, %v856, %v1150
      %1152 = vst [vmem:[%s1126 + $0x20] sm:$0x1] %v1151
      %v1153 = vld [vmem:[%s1126 + $0x24] sm:$0xf]
      %v1154 = vsel %vm1129, %v863, %v1153
      %1155 = vst [vmem:[%s1126 + $0x24] sm:$0xf] %v1154
      %1156 = vst [vmem:[%s1126 + $0x28] sm:$0xf] %v872
      %v1157 = vld [vmem:[%s1126 + $0x2c] sm:$0x1]
      %v1158 = vsel %vm1135, %v873, %v1157
      %1159 = vst [vmem:[%s1126 + $0x2c] sm:$0x1] %v1158
      %v1160 = vld [vmem:[%s1126 + $0x30] sm:$0xf]
      %v1161 = vsel %vm1129, %v880, %v1160
      %1162 = vst [vmem:[%s1126 + $0x30] sm:$0xf] %v1161
      %1163 = vst [vmem:[%s1126 + $0x34] sm:$0xf] %v889
      %v1164 = vld [vmem:[%s1126 + $0x38] sm:$0x1]
      %v1165 = vsel %vm1135, %v890, %v1164
      %1166 = vst [vmem:[%s1126 + $0x38] sm:$0x1] %v1165
      %v1167 = vld [vmem:[%s1126 + $0x3c] sm:$0xf]
      %v1168 = vsel %vm1129, %v897, %v1167
      %1169 = vst [vmem:[%s1126 + $0x3c] sm:$0xf] %v1168
      %1170 = vst [vmem:[%s1126 + $0x40] sm:$0xf] %v906
      %v1171 = vld [vmem:[%s1126 + $0x44] sm:$0x1]
      %v1172 = vsel %vm1135, %v907, %v1171
      %1173 = vst [vmem:[%s1126 + $0x44] sm:$0x1] %v1172
      %v1174 = vld [vmem:[%s1126 + $0x48] sm:$0xf]
      %v1175 = vsel %vm1129, %v914, %v1174
      %1176 = vst [vmem:[%s1126 + $0x48] sm:$0xf] %v1175
      %1177 = vst [vmem:[%s1126 + $0x4c] sm:$0xf] %v923
      %v1178 = vld [vmem:[%s1126 + $0x50] sm:$0x1]
      %v1179 = vsel %vm1135, %v924, %v1178
      %1180 = vst [vmem:[%s1126 + $0x50] sm:$0x1] %v1179
      %v1181 = vld [vmem:[%s1126 + $0x54] sm:$0xf]
      %v1182 = vsel %vm1129, %v931, %v1181
      %1183 = vst [vmem:[%s1126 + $0x54] sm:$0xf] %v1182
      %1184 = vst [vmem:[%s1126 + $0x58] sm:$0xf] %v940
      %v1185 = vld [vmem:[%s1126 + $0x5c] sm:$0x1]
      %v1186 = vsel %vm1135, %v941, %v1185
      %1187 = vst [vmem:[%s1126 + $0x5c] sm:$0x1] %v1186
      %v1188 = vld [vmem:[%s1126 + $0x60] sm:$0xf]
      %v1189 = vsel %vm1129, %v948, %v1188
      %1190 = vst [vmem:[%s1126 + $0x60] sm:$0xf] %v1189
      %1191 = vst [vmem:[%s1126 + $0x64] sm:$0xf] %v957
      %v1192 = vld [vmem:[%s1126 + $0x68] sm:$0x1]
      %v1193 = vsel %vm1135, %v958, %v1192
      %1194 = vst [vmem:[%s1126 + $0x68] sm:$0x1] %v1193
      %v1195 = vld [vmem:[%s1126 + $0x6c] sm:$0xf]
      %v1196 = vsel %vm1129, %v965, %v1195
      %1197 = vst [vmem:[%s1126 + $0x6c] sm:$0xf] %v1196
      %1198 = vst [vmem:[%s1126 + $0x70] sm:$0xf] %v974
      %v1199 = vld [vmem:[%s1126 + $0x74] sm:$0x1]
      %v1200 = vsel %vm1135, %v975, %v1199
      %1201 = vst [vmem:[%s1126 + $0x74] sm:$0x1] %v1200
      %v1202 = vld [vmem:[%s1126 + $0x78] sm:$0xf]
      %v1203 = vsel %vm1129, %v982, %v1202
      %1204 = vst [vmem:[%s1126 + $0x78] sm:$0xf] %v1203
      %1205 = vst [vmem:[%s1126 + $0x7c] sm:$0xf] %v991
      %v1206 = vld [vmem:[%s1126 + $0x80] sm:$0x1]
      %v1207 = vsel %vm1135, %v992, %v1206
      %1208 = vst [vmem:[%s1126 + $0x80] sm:$0x1] %v1207
      %v1209 = vld [vmem:[%s1126 + $0x84] sm:$0xf]
      %v1210 = vsel %vm1129, %v999, %v1209
      %1211 = vst [vmem:[%s1126 + $0x84] sm:$0xf] %v1210
      %1212 = vst [vmem:[%s1126 + $0x88] sm:$0xf] %v1008
      %v1213 = vld [vmem:[%s1126 + $0x8c] sm:$0x1]
      %v1214 = vsel %vm1135, %v1009, %v1213
      %1215 = vst [vmem:[%s1126 + $0x8c] sm:$0x1] %v1214
      %v1216 = vld [vmem:[%s1126 + $0x90] sm:$0xf]
      %v1217 = vsel %vm1129, %v1016, %v1216
      %1218 = vst [vmem:[%s1126 + $0x90] sm:$0xf] %v1217
      %1219 = vst [vmem:[%s1126 + $0x94] sm:$0xf] %v1025
      %v1220 = vld [vmem:[%s1126 + $0x98] sm:$0x1]
      %v1221 = vsel %vm1135, %v1026, %v1220
      %1222 = vst [vmem:[%s1126 + $0x98] sm:$0x1] %v1221
      %v1223 = vld [vmem:[%s1126 + $0x9c] sm:$0xf]
      %v1224 = vsel %vm1129, %v1033, %v1223
      %1225 = vst [vmem:[%s1126 + $0x9c] sm:$0xf] %v1224
      %1226 = vst [vmem:[%s1126 + $0xa0] sm:$0xf] %v1042
      %v1227 = vld [vmem:[%s1126 + $0xa4] sm:$0x1]
      %v1228 = vsel %vm1135, %v1043, %v1227
      %1229 = vst [vmem:[%s1126 + $0xa4] sm:$0x1] %v1228
      %v1230 = vld [vmem:[%s1126 + $0xa8] sm:$0xf]
      %v1231 = vsel %vm1129, %v1050, %v1230
      %1232 = vst [vmem:[%s1126 + $0xa8] sm:$0xf] %v1231
      %1233 = vst [vmem:[%s1126 + $0xac] sm:$0xf] %v1059
      %v1234 = vld [vmem:[%s1126 + $0xb0] sm:$0x1]
      %v1235 = vsel %vm1135, %v1060, %v1234
      %1236 = vst [vmem:[%s1126 + $0xb0] sm:$0x1] %v1235
      %v1237 = vld [vmem:[%s1126 + $0xb4] sm:$0xf]
      %v1238 = vsel %vm1129, %v1067, %v1237
      %1239 = vst [vmem:[%s1126 + $0xb4] sm:$0xf] %v1238
      %1240 = vst [vmem:[%s1126 + $0xb8] sm:$0xf] %v1076
      %v1241 = vld [vmem:[%s1126 + $0xbc] sm:$0x1]
      %v1242 = vsel %vm1135, %v1077, %v1241
      %1243 = vst [vmem:[%s1126 + $0xbc] sm:$0x1] %v1242
      %1244 = vst [vmem:[#allocation2] sm:$0xf] 0
      %1245 = vst [vmem:[#allocation2 + $0x4] sm:$0xf] 0
      %1246 = vst [vmem:[#allocation2 + $0x8] sm:$0x1] 0
      %s1247 = scalar_lea.vmem [#allocation2], 204
      %1248 = vst [vmem:[%s1247] sm:$0xf] 0
      %1249 = vst [vmem:[%s1247 + $0x4] sm:$0xf] 0
      %1250 = vst [vmem:[%s1247 + $0x8] sm:$0x1] 0
      %v1251 = vld [vmem:[#allocation2] sm:$0x1]
      %v1252 = vsel %vm1135, 0, %v1251
      %1253 = vst [vmem:[#allocation2] sm:$0x1] %v1252
      %v1254 = vld [vmem:[#allocation2 + $0xc] sm:$0x1]
      %v1255 = vsel %vm1135, 0, %v1254
      %1256 = vst [vmem:[#allocation2 + $0xc] sm:$0x1] %v1255
      %v1257 = vld [vmem:[#allocation2 + $0x18] sm:$0x1]
      %v1258 = vsel %vm1135, 0, %v1257
      %1259 = vst [vmem:[#allocation2 + $0x18] sm:$0x1] %v1258
      %v1260 = vld [vmem:[#allocation2 + $0x24] sm:$0x1]
      %v1261 = vsel %vm1135, 0, %v1260
      %1262 = vst [vmem:[#allocation2 + $0x24] sm:$0x1] %v1261
      %v1263 = vld [vmem:[#allocation2 + $0x30] sm:$0x1]
      %v1264 = vsel %vm1135, 0, %v1263
      %1265 = vst [vmem:[#allocation2 + $0x30] sm:$0x1] %v1264
      %v1266 = vld [vmem:[#allocation2 + $0x3c] sm:$0x1]
      %v1267 = vsel %vm1135, 0, %v1266
      %1268 = vst [vmem:[#allocation2 + $0x3c] sm:$0x1] %v1267
      %v1269 = vld [vmem:[#allocation2 + $0x48] sm:$0x1]
      %v1270 = vsel %vm1135, 0, %v1269
      %1271 = vst [vmem:[#allocation2 + $0x48] sm:$0x1] %v1270
      %v1272 = vld [vmem:[#allocation2 + $0x54] sm:$0x1]
      %v1273 = vsel %vm1135, 0, %v1272
      %1274 = vst [vmem:[#allocation2 + $0x54] sm:$0x1] %v1273
      %v1275 = vld [vmem:[#allocation2 + $0x60] sm:$0x1]
      %v1276 = vsel %vm1135, 0, %v1275
      %1277 = vst [vmem:[#allocation2 + $0x60] sm:$0x1] %v1276
      %v1278 = vld [vmem:[#allocation2 + $0x6c] sm:$0x1]
      %v1279 = vsel %vm1135, 0, %v1278
      %1280 = vst [vmem:[#allocation2 + $0x6c] sm:$0x1] %v1279
      %v1281 = vld [vmem:[#allocation2 + $0x78] sm:$0x1]
      %v1282 = vsel %vm1135, 0, %v1281
      %1283 = vst [vmem:[#allocation2 + $0x78] sm:$0x1] %v1282
      %v1284 = vld [vmem:[#allocation2 + $0x84] sm:$0x1]
      %v1285 = vsel %vm1135, 0, %v1284
      %1286 = vst [vmem:[#allocation2 + $0x84] sm:$0x1] %v1285
      %v1287 = vld [vmem:[#allocation2 + $0x90] sm:$0x1]
      %v1288 = vsel %vm1135, 0, %v1287
      %1289 = vst [vmem:[#allocation2 + $0x90] sm:$0x1] %v1288
      %v1290 = vld [vmem:[#allocation2 + $0x9c] sm:$0x1]
      %v1291 = vsel %vm1135, 0, %v1290
      %1292 = vst [vmem:[#allocation2 + $0x9c] sm:$0x1] %v1291
      %v1293 = vld [vmem:[#allocation2 + $0xa8] sm:$0x1]
      %v1294 = vsel %vm1135, 0, %v1293
      %1295 = vst [vmem:[#allocation2 + $0xa8] sm:$0x1] %v1294
      %v1296 = vld [vmem:[#allocation2 + $0xb4] sm:$0x1]
      %v1297 = vsel %vm1135, 0, %v1296
      %1298 = vst [vmem:[#allocation2 + $0xb4] sm:$0x1] %v1297
      %v1299 = vld [vmem:[#allocation2 + $0xc0] sm:$0x1]
      %v1300 = vsel %vm1135, 0, %v1299
      %1301 = vst [vmem:[#allocation2 + $0xc0] sm:$0x1] %v1300
      %v1302 = vld [vmem:[#allocation2 + $0xcc] sm:$0x1]
      %v1303 = vsel %vm1135, 0, %v1302
      %1304 = vst [vmem:[#allocation2 + $0xcc] sm:$0x1] %v1303
      %vm1305 = vmand %vm1134, %vm1128
      %v1306 = vld [vmem:[#allocation2 + $0x8] sm:$0x1]
      %v1307 = vsel %vm1305, 0, %v1306
      %1308 = vst [vmem:[#allocation2 + $0x8] sm:$0x1] %v1307
      %v1309 = vld [vmem:[#allocation2 + $0x14] sm:$0x1]
      %v1310 = vsel %vm1305, 0, %v1309
      %1311 = vst [vmem:[#allocation2 + $0x14] sm:$0x1] %v1310
      %v1312 = vld [vmem:[#allocation2 + $0x20] sm:$0x1]
      %v1313 = vsel %vm1305, 0, %v1312
      %1314 = vst [vmem:[#allocation2 + $0x20] sm:$0x1] %v1313
      %v1315 = vld [vmem:[#allocation2 + $0x2c] sm:$0x1]
      %v1316 = vsel %vm1305, 0, %v1315
      %1317 = vst [vmem:[#allocation2 + $0x2c] sm:$0x1] %v1316
      %v1318 = vld [vmem:[#allocation2 + $0x38] sm:$0x1]
      %v1319 = vsel %vm1305, 0, %v1318
      %1320 = vst [vmem:[#allocation2 + $0x38] sm:$0x1] %v1319
      %v1321 = vld [vmem:[#allocation2 + $0x44] sm:$0x1]
      %v1322 = vsel %vm1305, 0, %v1321
      %1323 = vst [vmem:[#allocation2 + $0x44] sm:$0x1] %v1322
      %v1324 = vld [vmem:[#allocation2 + $0x50] sm:$0x1]
      %v1325 = vsel %vm1305, 0, %v1324
      %1326 = vst [vmem:[#allocation2 + $0x50] sm:$0x1] %v1325
      %v1327 = vld [vmem:[#allocation2 + $0x5c] sm:$0x1]
      %v1328 = vsel %vm1305, 0, %v1327
      %1329 = vst [vmem:[#allocation2 + $0x5c] sm:$0x1] %v1328
      %v1330 = vld [vmem:[#allocation2 + $0x68] sm:$0x1]
      %v1331 = vsel %vm1305, 0, %v1330
      %1332 = vst [vmem:[#allocation2 + $0x68] sm:$0x1] %v1331
      %v1333 = vld [vmem:[#allocation2 + $0x74] sm:$0x1]
      %v1334 = vsel %vm1305, 0, %v1333
      %1335 = vst [vmem:[#allocation2 + $0x74] sm:$0x1] %v1334
      %v1336 = vld [vmem:[#allocation2 + $0x80] sm:$0x1]
      %v1337 = vsel %vm1305, 0, %v1336
      %1338 = vst [vmem:[#allocation2 + $0x80] sm:$0x1] %v1337
      %v1339 = vld [vmem:[#allocation2 + $0x8c] sm:$0x1]
      %v1340 = vsel %vm1305, 0, %v1339
      %1341 = vst [vmem:[#allocation2 + $0x8c] sm:$0x1] %v1340
      %v1342 = vld [vmem:[#allocation2 + $0x98] sm:$0x1]
      %v1343 = vsel %vm1305, 0, %v1342
      %1344 = vst [vmem:[#allocation2 + $0x98] sm:$0x1] %v1343
      %v1345 = vld [vmem:[#allocation2 + $0xa4] sm:$0x1]
      %v1346 = vsel %vm1305, 0, %v1345
      %1347 = vst [vmem:[#allocation2 + $0xa4] sm:$0x1] %v1346
      %v1348 = vld [vmem:[#allocation2 + $0xb0] sm:$0x1]
      %v1349 = vsel %vm1305, 0, %v1348
      %1350 = vst [vmem:[#allocation2 + $0xb0] sm:$0x1] %v1349
      %v1351 = vld [vmem:[#allocation2 + $0xbc] sm:$0x1]
      %v1352 = vsel %vm1305, 0, %v1351
      %1353 = vst [vmem:[#allocation2 + $0xbc] sm:$0x1] %v1352
      %v1354 = vld [vmem:[#allocation2 + $0xc8] sm:$0x1]
      %v1355 = vsel %vm1305, 0, %v1354
      %1356 = vst [vmem:[#allocation2 + $0xc8] sm:$0x1] %v1355
      %v1357 = vld [vmem:[#allocation2 + $0xd4] sm:$0x1]
      %v1358 = vsel %vm1305, 0, %v1357
      %1359 = vst [vmem:[#allocation2 + $0xd4] sm:$0x1] %v1358
      %s1360 = smul.u32 %s26, 16
      %s1361 = smul.u32 %s1360, 3
      %s1362 = smul.addr %s1361, 4
      %s1363 = scalar_lea.vmem [#allocation2], %s1362
      %v1364 = vld [vmem:[%s1363] sm:$0xf]
      %v1365 = vld [vmem:[%s1363 + $0x4] sm:$0xf]
      %v1366 = vld [vmem:[%s1363 + $0xc] sm:$0xf]
      %v1367 = vld [vmem:[%s1363 + $0x10] sm:$0xf]
      %v1368 = vld [vmem:[%s1363 + $0x18] sm:$0xf]
      %v1369 = vld [vmem:[%s1363 + $0x1c] sm:$0xf]
      %v1370 = vld [vmem:[%s1363 + $0x24] sm:$0xf]
      %v1371 = vld [vmem:[%s1363 + $0x28] sm:$0xf]
      %v1372 = vld [vmem:[%s1363 + $0x30] sm:$0xf]
      %v1373 = vld [vmem:[%s1363 + $0x34] sm:$0xf]
      %v1374 = vld [vmem:[%s1363 + $0x3c] sm:$0xf]
      %v1375 = vld [vmem:[%s1363 + $0x40] sm:$0xf]
      %v1376 = vld [vmem:[%s1363 + $0x48] sm:$0xf]
      %v1377 = vld [vmem:[%s1363 + $0x4c] sm:$0xf]
      %v1378 = vld [vmem:[%s1363 + $0x54] sm:$0xf]
      %v1379 = vld [vmem:[%s1363 + $0x58] sm:$0xf]
      %v1380 = vld [vmem:[%s1363 + $0x60] sm:$0xf]
      %v1381 = vld [vmem:[%s1363 + $0x64] sm:$0xf]
      %v1382 = vld [vmem:[%s1363 + $0x6c] sm:$0xf]
      %v1383 = vld [vmem:[%s1363 + $0x70] sm:$0xf]
      %v1384 = vld [vmem:[%s1363 + $0x78] sm:$0xf]
      %v1385 = vld [vmem:[%s1363 + $0x7c] sm:$0xf]
      %v1386 = vld [vmem:[%s1363 + $0x84] sm:$0xf]
      %v1387 = vld [vmem:[%s1363 + $0x88] sm:$0xf]
      %v1388 = vld [vmem:[%s1363 + $0x90] sm:$0xf]
      %v1389 = vld [vmem:[%s1363 + $0x94] sm:$0xf]
      %v1390 = vld [vmem:[%s1363 + $0x9c] sm:$0xf]
      %v1391 = vld [vmem:[%s1363 + $0xa0] sm:$0xf]
      %v1392 = vld [vmem:[%s1363 + $0xa8] sm:$0xf]
      %v1393 = vld [vmem:[%s1363 + $0xac] sm:$0xf]
      %v1394 = vld [vmem:[%s1363 + $0xb4] sm:$0xf]
      %v1395 = vld [vmem:[%s1363 + $0xb8] sm:$0xf]
      %v1396 = vld [vmem:[%s4] sm:$0xf]
      %v1397 = vld [vmem:[%s4 + $0x4] sm:$0xf]
      %v1398 = vld [vmem:[%s4 + $0x8] sm:$0xf]
      %v1399 = vld [vmem:[%s4 + $0xc] sm:$0xf]
      %v1400 = vld [vmem:[%s4 + $0x10] sm:$0xf]
      %v1401 = vld [vmem:[%s4 + $0x14] sm:$0xf]
      %v1402 = vld [vmem:[%s4 + $0x18] sm:$0xf]
      %v1403 = vld [vmem:[%s4 + $0x1c] sm:$0xf]
      %v1404 = vld [vmem:[%s4 + $0x20] sm:$0xf]
      %v1405 = vld [vmem:[%s4 + $0x24] sm:$0xf]
      %v1406 = vld [vmem:[%s4 + $0x28] sm:$0xf]
      %v1407 = vld [vmem:[%s4 + $0x2c] sm:$0xf]
      %v1408 = vld [vmem:[%s4 + $0x30] sm:$0xf]
      %v1409 = vld [vmem:[%s4 + $0x34] sm:$0xf]
      %v1410 = vld [vmem:[%s4 + $0x38] sm:$0xf]
      %v1411 = vld [vmem:[%s4 + $0x3c] sm:$0xf]
      %v1412 = vld [vmem:[%s1363 + $0x8] sm:$0x1]
      %v1413 = vld [vmem:[%s1363 + $0x14] sm:$0x1]
      %v1414 = vld [vmem:[%s1363 + $0x20] sm:$0x1]
      %v1415 = vld [vmem:[%s1363 + $0x2c] sm:$0x1]
      %v1416 = vld [vmem:[%s1363 + $0x38] sm:$0x1]
      %v1417 = vld [vmem:[%s1363 + $0x44] sm:$0x1]
      %v1418 = vld [vmem:[%s1363 + $0x50] sm:$0x1]
      %v1419 = vld [vmem:[%s1363 + $0x5c] sm:$0x1]
      %v1420 = vld [vmem:[%s1363 + $0x68] sm:$0x1]
      %v1421 = vld [vmem:[%s1363 + $0x74] sm:$0x1]
      %v1422 = vld [vmem:[%s1363 + $0x80] sm:$0x1]
      %v1423 = vld [vmem:[%s1363 + $0x8c] sm:$0x1]
      %v1424 = vld [vmem:[%s1363 + $0x98] sm:$0x1]
      %v1425 = vld [vmem:[%s1363 + $0xa4] sm:$0x1]
      %v1426 = vld [vmem:[%s1363 + $0xb0] sm:$0x1]
      %v1427 = vld [vmem:[%s1363 + $0xbc] sm:$0x1]
      %vm1428 = vsmask.f32 3328
      %vm1429 = vsmask.f32 7440
      %vm1430 = vmor %vm1428, %vm1429
      %v1432 = vshrl.u32 %v1364, 16
      %v1434 = vrot.slane %v1432, 4
      %v1435 = vshll.u32 %v1364, 16
      %v1437 = vrot.slane %v1435, 5
      %v1438 = vor.u32 %v1434, %v1437
      %v1439 = vrot.slane %v1438, 4
      %v1441 = vshll.u32 %v1365, 16
      %v1443 = vrot.slane %v1441, 5
      %v1444 = vsel %vm1430, %v1439, %v1443
      %v1445 = vshrl.u32 %v1365, 16
      %v1447 = vrot.slane %v1445, 4
      %v1448 = vor.u32 %v1447, %v1443
      %v1449 = vrot.slane %v1448, 4
      %v1451 = vshll.u32 %v1412, 16
      %v1453 = vrot.slane %v1451, 5
      %v1454 = vsel %vm1430, %v1449, %v1453
      %v1456 = vshrl.u32 %v1366, 16
      %v1458 = vrot.slane %v1456, 4
      %v1459 = vshll.u32 %v1366, 16
      %v1461 = vrot.slane %v1459, 5
      %v1462 = vor.u32 %v1458, %v1461
      %v1463 = vrot.slane %v1462, 4
      %v1465 = vshll.u32 %v1367, 16
      %v1467 = vrot.slane %v1465, 5
      %v1468 = vsel %vm1430, %v1463, %v1467
      %v1469 = vshrl.u32 %v1367, 16
      %v1471 = vrot.slane %v1469, 4
      %v1472 = vor.u32 %v1471, %v1467
      %v1473 = vrot.slane %v1472, 4
      %v1475 = vshll.u32 %v1413, 16
      %v1477 = vrot.slane %v1475, 5
      %v1478 = vsel %vm1430, %v1473, %v1477
      %v1480 = vshrl.u32 %v1368, 16
      %v1482 = vrot.slane %v1480, 4
      %v1483 = vshll.u32 %v1368, 16
      %v1485 = vrot.slane %v1483, 5
      %v1486 = vor.u32 %v1482, %v1485
      %v1487 = vrot.slane %v1486, 4
      %v1489 = vshll.u32 %v1369, 16
      %v1491 = vrot.slane %v1489, 5
      %v1492 = vsel %vm1430, %v1487, %v1491
      %v1493 = vshrl.u32 %v1369, 16
      %v1495 = vrot.slane %v1493, 4
      %v1496 = vor.u32 %v1495, %v1491
      %v1497 = vrot.slane %v1496, 4
      %v1499 = vshll.u32 %v1414, 16
      %v1501 = vrot.slane %v1499, 5
      %v1502 = vsel %vm1430, %v1497, %v1501
      %v1504 = vshrl.u32 %v1370, 16
      %v1506 = vrot.slane %v1504, 4
      %v1507 = vshll.u32 %v1370, 16
      %v1509 = vrot.slane %v1507, 5
      %v1510 = vor.u32 %v1506, %v1509
      %v1511 = vrot.slane %v1510, 4
      %v1513 = vshll.u32 %v1371, 16
      %v1515 = vrot.slane %v1513, 5
      %v1516 = vsel %vm1430, %v1511, %v1515
      %v1517 = vshrl.u32 %v1371, 16
      %v1519 = vrot.slane %v1517, 4
      %v1520 = vor.u32 %v1519, %v1515
      %v1521 = vrot.slane %v1520, 4
      %v1523 = vshll.u32 %v1415, 16
      %v1525 = vrot.slane %v1523, 5
      %v1526 = vsel %vm1430, %v1521, %v1525
      %v1528 = vshrl.u32 %v1372, 16
      %v1530 = vrot.slane %v1528, 4
      %v1531 = vshll.u32 %v1372, 16
      %v1533 = vrot.slane %v1531, 5
      %v1534 = vor.u32 %v1530, %v1533
      %v1535 = vrot.slane %v1534, 4
      %v1537 = vshll.u32 %v1373, 16
      %v1539 = vrot.slane %v1537, 5
      %v1540 = vsel %vm1430, %v1535, %v1539
      %v1541 = vshrl.u32 %v1373, 16
      %v1543 = vrot.slane %v1541, 4
      %v1544 = vor.u32 %v1543, %v1539
      %v1545 = vrot.slane %v1544, 4
      %v1547 = vshll.u32 %v1416, 16
      %v1549 = vrot.slane %v1547, 5
      %v1550 = vsel %vm1430, %v1545, %v1549
      %v1552 = vshrl.u32 %v1374, 16
      %v1554 = vrot.slane %v1552, 4
      %v1555 = vshll.u32 %v1374, 16
      %v1557 = vrot.slane %v1555, 5
      %v1558 = vor.u32 %v1554, %v1557
      %v1559 = vrot.slane %v1558, 4
      %v1561 = vshll.u32 %v1375, 16
      %v1563 = vrot.slane %v1561, 5
      %v1564 = vsel %vm1430, %v1559, %v1563
      %v1565 = vshrl.u32 %v1375, 16
      %v1567 = vrot.slane %v1565, 4
      %v1568 = vor.u32 %v1567, %v1563
      %v1569 = vrot.slane %v1568, 4
      %v1571 = vshll.u32 %v1417, 16
      %v1573 = vrot.slane %v1571, 5
      %v1574 = vsel %vm1430, %v1569, %v1573
      %v1576 = vshrl.u32 %v1376, 16
      %v1578 = vrot.slane %v1576, 4
      %v1579 = vshll.u32 %v1376, 16
      %v1581 = vrot.slane %v1579, 5
      %v1582 = vor.u32 %v1578, %v1581
      %v1583 = vrot.slane %v1582, 4
      %v1585 = vshll.u32 %v1377, 16
      %v1587 = vrot.slane %v1585, 5
      %v1588 = vsel %vm1430, %v1583, %v1587
      %v1589 = vshrl.u32 %v1377, 16
      %v1591 = vrot.slane %v1589, 4
      %v1592 = vor.u32 %v1591, %v1587
      %v1593 = vrot.slane %v1592, 4
      %v1595 = vshll.u32 %v1418, 16
      %v1597 = vrot.slane %v1595, 5
      %v1598 = vsel %vm1430, %v1593, %v1597
      %v1600 = vshrl.u32 %v1378, 16
      %v1602 = vrot.slane %v1600, 4
      %v1603 = vshll.u32 %v1378, 16
      %v1605 = vrot.slane %v1603, 5
      %v1606 = vor.u32 %v1602, %v1605
      %v1607 = vrot.slane %v1606, 4
      %v1609 = vshll.u32 %v1379, 16
      %v1611 = vrot.slane %v1609, 5
      %v1612 = vsel %vm1430, %v1607, %v1611
      %v1613 = vshrl.u32 %v1379, 16
      %v1615 = vrot.slane %v1613, 4
      %v1616 = vor.u32 %v1615, %v1611
      %v1617 = vrot.slane %v1616, 4
      %v1619 = vshll.u32 %v1419, 16
      %v1621 = vrot.slane %v1619, 5
      %v1622 = vsel %vm1430, %v1617, %v1621
      %v1624 = vshrl.u32 %v1380, 16
      %v1626 = vrot.slane %v1624, 4
      %v1627 = vshll.u32 %v1380, 16
      %v1629 = vrot.slane %v1627, 5
      %v1630 = vor.u32 %v1626, %v1629
      %v1631 = vrot.slane %v1630, 4
      %v1633 = vshll.u32 %v1381, 16
      %v1635 = vrot.slane %v1633, 5
      %v1636 = vsel %vm1430, %v1631, %v1635
      %v1637 = vshrl.u32 %v1381, 16
      %v1639 = vrot.slane %v1637, 4
      %v1640 = vor.u32 %v1639, %v1635
      %v1641 = vrot.slane %v1640, 4
      %v1643 = vshll.u32 %v1420, 16
      %v1645 = vrot.slane %v1643, 5
      %v1646 = vsel %vm1430, %v1641, %v1645
      %v1648 = vshrl.u32 %v1382, 16
      %v1650 = vrot.slane %v1648, 4
      %v1651 = vshll.u32 %v1382, 16
      %v1653 = vrot.slane %v1651, 5
      %v1654 = vor.u32 %v1650, %v1653
      %v1655 = vrot.slane %v1654, 4
      %v1657 = vshll.u32 %v1383, 16
      %v1659 = vrot.slane %v1657, 5
      %v1660 = vsel %vm1430, %v1655, %v1659
      %v1661 = vshrl.u32 %v1383, 16
      %v1663 = vrot.slane %v1661, 4
      %v1664 = vor.u32 %v1663, %v1659
      %v1665 = vrot.slane %v1664, 4
      %v1667 = vshll.u32 %v1421, 16
      %v1669 = vrot.slane %v1667, 5
      %v1670 = vsel %vm1430, %v1665, %v1669
      %v1672 = vshrl.u32 %v1384, 16
      %v1674 = vrot.slane %v1672, 4
      %v1675 = vshll.u32 %v1384, 16
      %v1677 = vrot.slane %v1675, 5
      %v1678 = vor.u32 %v1674, %v1677
      %v1679 = vrot.slane %v1678, 4
      %v1681 = vshll.u32 %v1385, 16
      %v1683 = vrot.slane %v1681, 5
      %v1684 = vsel %vm1430, %v1679, %v1683
      %v1685 = vshrl.u32 %v1385, 16
      %v1687 = vrot.slane %v1685, 4
      %v1688 = vor.u32 %v1687, %v1683
      %v1689 = vrot.slane %v1688, 4
      %v1691 = vshll.u32 %v1422, 16
      %v1693 = vrot.slane %v1691, 5
      %v1694 = vsel %vm1430, %v1689, %v1693
      %v1696 = vshrl.u32 %v1386, 16
      %v1698 = vrot.slane %v1696, 4
      %v1699 = vshll.u32 %v1386, 16
      %v1701 = vrot.slane %v1699, 5
      %v1702 = vor.u32 %v1698, %v1701
      %v1703 = vrot.slane %v1702, 4
      %v1705 = vshll.u32 %v1387, 16
      %v1707 = vrot.slane %v1705, 5
      %v1708 = vsel %vm1430, %v1703, %v1707
      %v1709 = vshrl.u32 %v1387, 16
      %v1711 = vrot.slane %v1709, 4
      %v1712 = vor.u32 %v1711, %v1707
      %v1713 = vrot.slane %v1712, 4
      %v1715 = vshll.u32 %v1423, 16
      %v1717 = vrot.slane %v1715, 5
      %v1718 = vsel %vm1430, %v1713, %v1717
      %v1720 = vshrl.u32 %v1388, 16
      %v1722 = vrot.slane %v1720, 4
      %v1723 = vshll.u32 %v1388, 16
      %v1725 = vrot.slane %v1723, 5
      %v1726 = vor.u32 %v1722, %v1725
      %v1727 = vrot.slane %v1726, 4
      %v1729 = vshll.u32 %v1389, 16
      %v1731 = vrot.slane %v1729, 5
      %v1732 = vsel %vm1430, %v1727, %v1731
      %v1733 = vshrl.u32 %v1389, 16
      %v1735 = vrot.slane %v1733, 4
      %v1736 = vor.u32 %v1735, %v1731
      %v1737 = vrot.slane %v1736, 4
      %v1739 = vshll.u32 %v1424, 16
      %v1741 = vrot.slane %v1739, 5
      %v1742 = vsel %vm1430, %v1737, %v1741
      %v1744 = vshrl.u32 %v1390, 16
      %v1746 = vrot.slane %v1744, 4
      %v1747 = vshll.u32 %v1390, 16
      %v1749 = vrot.slane %v1747, 5
      %v1750 = vor.u32 %v1746, %v1749
      %v1751 = vrot.slane %v1750, 4
      %v1753 = vshll.u32 %v1391, 16
      %v1755 = vrot.slane %v1753, 5
      %v1756 = vsel %vm1430, %v1751, %v1755
      %v1757 = vshrl.u32 %v1391, 16
      %v1759 = vrot.slane %v1757, 4
      %v1760 = vor.u32 %v1759, %v1755
      %v1761 = vrot.slane %v1760, 4
      %v1763 = vshll.u32 %v1425, 16
      %v1765 = vrot.slane %v1763, 5
      %v1766 = vsel %vm1430, %v1761, %v1765
      %v1768 = vshrl.u32 %v1392, 16
      %v1770 = vrot.slane %v1768, 4
      %v1771 = vshll.u32 %v1392, 16
      %v1773 = vrot.slane %v1771, 5
      %v1774 = vor.u32 %v1770, %v1773
      %v1775 = vrot.slane %v1774, 4
      %v1777 = vshll.u32 %v1393, 16
      %v1779 = vrot.slane %v1777, 5
      %v1780 = vsel %vm1430, %v1775, %v1779
      %v1781 = vshrl.u32 %v1393, 16
      %v1783 = vrot.slane %v1781, 4
      %v1784 = vor.u32 %v1783, %v1779
      %v1785 = vrot.slane %v1784, 4
      %v1787 = vshll.u32 %v1426, 16
      %v1789 = vrot.slane %v1787, 5
      %v1790 = vsel %vm1430, %v1785, %v1789
      %v1792 = vshrl.u32 %v1394, 16
      %v1794 = vrot.slane %v1792, 4
      %v1795 = vshll.u32 %v1394, 16
      %v1797 = vrot.slane %v1795, 5
      %v1798 = vor.u32 %v1794, %v1797
      %v1799 = vrot.slane %v1798, 4
      %v1801 = vshll.u32 %v1395, 16
      %v1803 = vrot.slane %v1801, 5
      %v1804 = vsel %vm1430, %v1799, %v1803
      %v1805 = vshrl.u32 %v1395, 16
      %v1807 = vrot.slane %v1805, 4
      %v1808 = vor.u32 %v1807, %v1803
      %v1809 = vrot.slane %v1808, 4
      %v1811 = vshll.u32 %v1427, 16
      %v1813 = vrot.slane %v1811, 5
      %v1814 = vsel %vm1430, %v1809, %v1813
      %s1815 = scalar_lea.vmem %s4, 64
      %v1816 = vld [vmem:[%s1815] sm:$0xf]
      %v1817 = vld [vmem:[%s1815 + $0x4] sm:$0xf]
      %v1818 = vld [vmem:[%s1815 + $0x8] sm:$0xf]
      %v1819 = vld [vmem:[%s1815 + $0xc] sm:$0xf]
      %v1820 = vld [vmem:[%s1815 + $0x10] sm:$0xf]
      %v1821 = vld [vmem:[%s1815 + $0x14] sm:$0xf]
      %v1822 = vld [vmem:[%s1815 + $0x18] sm:$0xf]
      %v1823 = vld [vmem:[%s1815 + $0x1c] sm:$0xf]
      %v1824 = vld [vmem:[%s1815 + $0x20] sm:$0xf]
      %v1825 = vld [vmem:[%s1815 + $0x24] sm:$0xf]
      %v1826 = vld [vmem:[%s1815 + $0x28] sm:$0xf]
      %v1827 = vld [vmem:[%s1815 + $0x2c] sm:$0xf]
      %v1828 = vld [vmem:[%s1815 + $0x30] sm:$0xf]
      %v1829 = vld [vmem:[%s1815 + $0x34] sm:$0xf]
      %v1830 = vld [vmem:[%s1815 + $0x38] sm:$0xf]
      %v1831 = vld [vmem:[%s1815 + $0x3c] sm:$0xf]
      %v1832 = vunpack.c.l.b16 %v1444
      %v1833 = vunpack.c.l.b16 %v1454
      %v1834 = vunpack.c.l.b16 %v1468
      %v1835 = vunpack.c.l.b16 %v1478
      %v1836 = vunpack.c.l.b16 %v1492
      %v1837 = vunpack.c.l.b16 %v1502
      %v1838 = vunpack.c.l.b16 %v1516
      %v1839 = vunpack.c.l.b16 %v1526
      %v1840 = vunpack.c.l.b16 %v1540
      %v1841 = vunpack.c.l.b16 %v1550
      %v1842 = vunpack.c.l.b16 %v1564
      %v1843 = vunpack.c.l.b16 %v1574
      %v1844 = vunpack.c.l.b16 %v1588
      %v1845 = vunpack.c.l.b16 %v1598
      %v1846 = vunpack.c.l.b16 %v1612
      %v1847 = vunpack.c.l.b16 %v1622
      %v1848 = vunpack.c.l.b16 %v1636
      %v1849 = vunpack.c.l.b16 %v1646
      %v1850 = vunpack.c.l.b16 %v1660
      %v1851 = vunpack.c.l.b16 %v1670
      %v1852 = vunpack.c.l.b16 %v1684
      %v1853 = vunpack.c.l.b16 %v1694
      %v1854 = vunpack.c.l.b16 %v1708
      %v1855 = vunpack.c.l.b16 %v1718
      %v1856 = vunpack.c.l.b16 %v1732
      %v1857 = vunpack.c.l.b16 %v1742
      %v1858 = vunpack.c.l.b16 %v1756
      %v1859 = vunpack.c.l.b16 %v1766
      %v1860 = vunpack.c.l.b16 %v1780
      %v1861 = vunpack.c.l.b16 %v1790
      %v1862 = vunpack.c.l.b16 %v1804
      %v1863 = vunpack.c.l.b16 %v1814
      %v1864 = vpack.c.b16 %v1833, %v1832
      %v1865 = vpack.c.b16 %v1835, %v1834
      %v1866 = vpack.c.b16 %v1837, %v1836
      %v1867 = vpack.c.b16 %v1839, %v1838
      %v1868 = vpack.c.b16 %v1841, %v1840
      %v1869 = vpack.c.b16 %v1843, %v1842
      %v1870 = vpack.c.b16 %v1845, %v1844
      %v1871 = vpack.c.b16 %v1847, %v1846
      %v1872 = vpack.c.b16 %v1849, %v1848
      %v1873 = vpack.c.b16 %v1851, %v1850
      %v1874 = vpack.c.b16 %v1853, %v1852
      %v1875 = vpack.c.b16 %v1855, %v1854
      %v1876 = vpack.c.b16 %v1857, %v1856
      %v1877 = vpack.c.b16 %v1859, %v1858
      %v1878 = vpack.c.b16 %v1861, %v1860
      %v1879 = vpack.c.b16 %v1863, %v1862
      %v1912 = vunpack.c.l.b16 %v1816
      %v1913 = vunpack.c.l.b16 %v1817
      %v1914 = vunpack.c.l.b16 %v1818
      %v1915 = vunpack.c.l.b16 %v1819
      %v1916 = vunpack.c.l.b16 %v1820
      %v1917 = vunpack.c.l.b16 %v1821
      %v1918 = vunpack.c.l.b16 %v1822
      %v1919 = vunpack.c.l.b16 %v1823
      %v1920 = vunpack.c.l.b16 %v1824
      %v1921 = vunpack.c.l.b16 %v1825
      %v1922 = vunpack.c.l.b16 %v1826
      %v1923 = vunpack.c.l.b16 %v1827
      %v1924 = vunpack.c.l.b16 %v1828
      %v1925 = vunpack.c.l.b16 %v1829
      %v1926 = vunpack.c.l.b16 %v1830
      %v1927 = vunpack.c.l.b16 %v1831
      %v1928 = vpack.c.b16 %v1913, %v1912
      %v1929 = vpack.c.b16 %v1915, %v1914
      %v1930 = vpack.c.b16 %v1917, %v1916
      %v1931 = vpack.c.b16 %v1919, %v1918
      %v1932 = vpack.c.b16 %v1921, %v1920
      %v1933 = vpack.c.b16 %v1923, %v1922
      %v1934 = vpack.c.b16 %v1925, %v1924
      %v1935 = vpack.c.b16 %v1927, %v1926
      %1944 = vmatpush.bf16.msra.mxu0 %v1935
      %1945 = vmatpush.bf16.msra.mxu0 %v1934
      %1946 = vmatpush.bf16.msra.mxu0 %v1933
      %1947 = vmatpush.bf16.msra.mxu0 %v1932
      %1948 = vmatpush.bf16.msra.mxu0 %v1931
      %1949 = vmatpush.bf16.msra.mxu0 %v1930
      %1950 = vmatpush.bf16.msra.mxu0 %v1929
      %1951 = vmatpush.bf16.msra.mxu0 %v1928
      %1952 = vmatmul.bf16.gmra.mxu0 %v1864
      %v1953 = vpop.f32.mrf.mxu0
      %v1954 = vadd.f32 0.0, %v1953
      %v1955 = vpop.f32.mrf.mxu0
      %v1956 = vadd.f32 0.0, %v1955
      %1957 = vmatmul.bf16.gmra.mxu0 %v1865
      %v1958 = vpop.f32.mrf.mxu0
      %v1959 = vadd.f32 0.0, %v1958
      %v1960 = vpop.f32.mrf.mxu0
      %v1961 = vadd.f32 0.0, %v1960
      %1962 = vmatmul.bf16.gmra.mxu0 %v1866
      %v1963 = vpop.f32.mrf.mxu0
      %v1964 = vadd.f32 0.0, %v1963
      %v1965 = vpop.f32.mrf.mxu0
      %v1966 = vadd.f32 0.0, %v1965
      %1967 = vmatmul.bf16.gmra.mxu0 %v1867
      %v1968 = vpop.f32.mrf.mxu0
      %v1969 = vadd.f32 0.0, %v1968
      %v1970 = vpop.f32.mrf.mxu0
      %v1971 = vadd.f32 0.0, %v1970
      %1972 = vmatmul.bf16.gmra.mxu0 %v1868
      %v1973 = vpop.f32.mrf.mxu0
      %v1974 = vadd.f32 0.0, %v1973
      %v1975 = vpop.f32.mrf.mxu0
      %v1976 = vadd.f32 0.0, %v1975
      %1977 = vmatmul.bf16.gmra.mxu0 %v1869
      %v1978 = vpop.f32.mrf.mxu0
      %v1979 = vadd.f32 0.0, %v1978
      %v1980 = vpop.f32.mrf.mxu0
      %v1981 = vadd.f32 0.0, %v1980
      %1982 = vmatmul.bf16.gmra.mxu0 %v1870
      %v1983 = vpop.f32.mrf.mxu0
      %v1984 = vadd.f32 0.0, %v1983
      %v1985 = vpop.f32.mrf.mxu0
      %v1986 = vadd.f32 0.0, %v1985
      %1987 = vmatmul.bf16.gmra.mxu0 %v1871
      %v1988 = vpop.f32.mrf.mxu0
      %v1989 = vadd.f32 0.0, %v1988
      %v1990 = vpop.f32.mrf.mxu0
      %v1991 = vadd.f32 0.0, %v1990
      %1992 = vmatmul.bf16.gmra.mxu0 %v1872
      %v1993 = vpop.f32.mrf.mxu0
      %v1994 = vadd.f32 0.0, %v1993
      %v1995 = vpop.f32.mrf.mxu0
      %v1996 = vadd.f32 0.0, %v1995
      %1997 = vmatmul.bf16.gmra.mxu0 %v1873
      %v1998 = vpop.f32.mrf.mxu0
      %v1999 = vadd.f32 0.0, %v1998
      %v2000 = vpop.f32.mrf.mxu0
      %v2001 = vadd.f32 0.0, %v2000
      %2002 = vmatmul.bf16.gmra.mxu0 %v1874
      %v2003 = vpop.f32.mrf.mxu0
      %v2004 = vadd.f32 0.0, %v2003
      %v2005 = vpop.f32.mrf.mxu0
      %v2006 = vadd.f32 0.0, %v2005
      %2007 = vmatmul.bf16.gmra.mxu0 %v1875
      %v2008 = vpop.f32.mrf.mxu0
      %v2009 = vadd.f32 0.0, %v2008
      %v2010 = vpop.f32.mrf.mxu0
      %v2011 = vadd.f32 0.0, %v2010
      %2012 = vmatmul.bf16.gmra.mxu0 %v1876
      %v2013 = vpop.f32.mrf.mxu0
      %v2014 = vadd.f32 0.0, %v2013
      %v2015 = vpop.f32.mrf.mxu0
      %v2016 = vadd.f32 0.0, %v2015
      %2017 = vmatmul.bf16.gmra.mxu0 %v1877
      %v2018 = vpop.f32.mrf.mxu0
      %v2019 = vadd.f32 0.0, %v2018
      %v2020 = vpop.f32.mrf.mxu0
      %v2021 = vadd.f32 0.0, %v2020
      %2022 = vmatmul.bf16.gmra.mxu0 %v1878
      %v2023 = vpop.f32.mrf.mxu0
      %v2024 = vadd.f32 0.0, %v2023
      %v2025 = vpop.f32.mrf.mxu0
      %v2026 = vadd.f32 0.0, %v2025
      %2027 = vmatmul.bf16.gmra.mxu0 %v1879
      %v2028 = vpop.f32.mrf.mxu0
      %v2029 = vadd.f32 0.0, %v2028
      %v2030 = vpop.f32.mrf.mxu0
      %v2031 = vadd.f32 0.0, %v2030
      %2032 = vdwg.mxu0
      %v2065 = vunpack.c.l.b16 %v1364
      %v2066 = vunpack.c.l.b16 %v1365
      %v2067 = vunpack.c.l.b16 %v1366
      %v2068 = vunpack.c.l.b16 %v1367
      %v2069 = vunpack.c.l.b16 %v1368
      %v2070 = vunpack.c.l.b16 %v1369
      %v2071 = vunpack.c.l.b16 %v1370
      %v2072 = vunpack.c.l.b16 %v1371
      %v2073 = vunpack.c.l.b16 %v1372
      %v2074 = vunpack.c.l.b16 %v1373
      %v2075 = vunpack.c.l.b16 %v1374
      %v2076 = vunpack.c.l.b16 %v1375
      %v2077 = vunpack.c.l.b16 %v1376
      %v2078 = vunpack.c.l.b16 %v1377
      %v2079 = vunpack.c.l.b16 %v1378
      %v2080 = vunpack.c.l.b16 %v1379
      %v2081 = vunpack.c.l.b16 %v1380
      %v2082 = vunpack.c.l.b16 %v1381
      %v2083 = vunpack.c.l.b16 %v1382
      %v2084 = vunpack.c.l.b16 %v1383
      %v2085 = vunpack.c.l.b16 %v1384
      %v2086 = vunpack.c.l.b16 %v1385
      %v2087 = vunpack.c.l.b16 %v1386
      %v2088 = vunpack.c.l.b16 %v1387
      %v2089 = vunpack.c.l.b16 %v1388
      %v2090 = vunpack.c.l.b16 %v1389
      %v2091 = vunpack.c.l.b16 %v1390
      %v2092 = vunpack.c.l.b16 %v1391
      %v2093 = vunpack.c.l.b16 %v1392
      %v2094 = vunpack.c.l.b16 %v1393
      %v2095 = vunpack.c.l.b16 %v1394
      %v2096 = vunpack.c.l.b16 %v1395
      %v2097 = vpack.c.b16 %v2066, %v2065
      %v2098 = vpack.c.b16 %v2068, %v2067
      %v2099 = vpack.c.b16 %v2070, %v2069
      %v2100 = vpack.c.b16 %v2072, %v2071
      %v2101 = vpack.c.b16 %v2074, %v2073
      %v2102 = vpack.c.b16 %v2076, %v2075
      %v2103 = vpack.c.b16 %v2078, %v2077
      %v2104 = vpack.c.b16 %v2080, %v2079
      %v2105 = vpack.c.b16 %v2082, %v2081
      %v2106 = vpack.c.b16 %v2084, %v2083
      %v2107 = vpack.c.b16 %v2086, %v2085
      %v2108 = vpack.c.b16 %v2088, %v2087
      %v2109 = vpack.c.b16 %v2090, %v2089
      %v2110 = vpack.c.b16 %v2092, %v2091
      %v2111 = vpack.c.b16 %v2094, %v2093
      %v2112 = vpack.c.b16 %v2096, %v2095
      %v2145 = vunpack.c.l.b16 %v1396
      %v2146 = vunpack.c.l.b16 %v1397
      %v2147 = vunpack.c.l.b16 %v1398
      %v2148 = vunpack.c.l.b16 %v1399
      %v2149 = vunpack.c.l.b16 %v1400
      %v2150 = vunpack.c.l.b16 %v1401
      %v2151 = vunpack.c.l.b16 %v1402
      %v2152 = vunpack.c.l.b16 %v1403
      %v2153 = vunpack.c.l.b16 %v1404
      %v2154 = vunpack.c.l.b16 %v1405
      %v2155 = vunpack.c.l.b16 %v1406
      %v2156 = vunpack.c.l.b16 %v1407
      %v2157 = vunpack.c.l.b16 %v1408
      %v2158 = vunpack.c.l.b16 %v1409
      %v2159 = vunpack.c.l.b16 %v1410
      %v2160 = vunpack.c.l.b16 %v1411
      %v2161 = vpack.c.b16 %v2146, %v2145
      %v2162 = vpack.c.b16 %v2148, %v2147
      %v2163 = vpack.c.b16 %v2150, %v2149
      %v2164 = vpack.c.b16 %v2152, %v2151
      %v2165 = vpack.c.b16 %v2154, %v2153
      %v2166 = vpack.c.b16 %v2156, %v2155
      %v2167 = vpack.c.b16 %v2158, %v2157
      %v2168 = vpack.c.b16 %v2160, %v2159
      %2177 = vmatpush.bf16.msra.mxu0 %v2168
      %2178 = vmatpush.bf16.msra.mxu0 %v2167
      %2179 = vmatpush.bf16.msra.mxu0 %v2166
      %2180 = vmatpush.bf16.msra.mxu0 %v2165
      %2181 = vmatpush.bf16.msra.mxu0 %v2164
      %2182 = vmatpush.bf16.msra.mxu0 %v2163
      %2183 = vmatpush.bf16.msra.mxu0 %v2162
      %2184 = vmatpush.bf16.msra.mxu0 %v2161
      %2185 = vmatmul.bf16.gmra.mxu0 %v2097
      %v2186 = vpop.f32.mrf.mxu0
      %v2187 = vadd.f32 %v1954, %v2186
      %v2188 = vpop.f32.mrf.mxu0
      %v2189 = vadd.f32 %v1956, %v2188
      %2190 = vmatmul.bf16.gmra.mxu0 %v2098
      %v2191 = vpop.f32.mrf.mxu0
      %v2192 = vadd.f32 %v1959, %v2191
      %v2193 = vpop.f32.mrf.mxu0
      %v2194 = vadd.f32 %v1961, %v2193
      %2195 = vmatmul.bf16.gmra.mxu0 %v2099
      %v2196 = vpop.f32.mrf.mxu0
      %v2197 = vadd.f32 %v1964, %v2196
      %v2198 = vpop.f32.mrf.mxu0
      %v2199 = vadd.f32 %v1966, %v2198
      %2200 = vmatmul.bf16.gmra.mxu0 %v2100
      %v2201 = vpop.f32.mrf.mxu0
      %v2202 = vadd.f32 %v1969, %v2201
      %v2203 = vpop.f32.mrf.mxu0
      %v2204 = vadd.f32 %v1971, %v2203
      %2205 = vmatmul.bf16.gmra.mxu0 %v2101
      %v2206 = vpop.f32.mrf.mxu0
      %v2207 = vadd.f32 %v1974, %v2206
      %v2208 = vpop.f32.mrf.mxu0
      %v2209 = vadd.f32 %v1976, %v2208
      %2210 = vmatmul.bf16.gmra.mxu0 %v2102
      %v2211 = vpop.f32.mrf.mxu0
      %v2212 = vadd.f32 %v1979, %v2211
      %v2213 = vpop.f32.mrf.mxu0
      %v2214 = vadd.f32 %v1981, %v2213
      %2215 = vmatmul.bf16.gmra.mxu0 %v2103
      %v2216 = vpop.f32.mrf.mxu0
      %v2217 = vadd.f32 %v1984, %v2216
      %v2218 = vpop.f32.mrf.mxu0
      %v2219 = vadd.f32 %v1986, %v2218
      %2220 = vmatmul.bf16.gmra.mxu0 %v2104
      %v2221 = vpop.f32.mrf.mxu0
      %v2222 = vadd.f32 %v1989, %v2221
      %v2223 = vpop.f32.mrf.mxu0
      %v2224 = vadd.f32 %v1991, %v2223
      %2225 = vmatmul.bf16.gmra.mxu0 %v2105
      %v2226 = vpop.f32.mrf.mxu0
      %v2227 = vadd.f32 %v1994, %v2226
      %v2228 = vpop.f32.mrf.mxu0
      %v2229 = vadd.f32 %v1996, %v2228
      %2230 = vmatmul.bf16.gmra.mxu0 %v2106
      %v2231 = vpop.f32.mrf.mxu0
      %v2232 = vadd.f32 %v1999, %v2231
      %v2233 = vpop.f32.mrf.mxu0
      %v2234 = vadd.f32 %v2001, %v2233
      %2235 = vmatmul.bf16.gmra.mxu0 %v2107
      %v2236 = vpop.f32.mrf.mxu0
      %v2237 = vadd.f32 %v2004, %v2236
      %v2238 = vpop.f32.mrf.mxu0
      %v2239 = vadd.f32 %v2006, %v2238
      %2240 = vmatmul.bf16.gmra.mxu0 %v2108
      %v2241 = vpop.f32.mrf.mxu0
      %v2242 = vadd.f32 %v2009, %v2241
      %v2243 = vpop.f32.mrf.mxu0
      %v2244 = vadd.f32 %v2011, %v2243
      %2245 = vmatmul.bf16.gmra.mxu0 %v2109
      %v2246 = vpop.f32.mrf.mxu0
      %v2247 = vadd.f32 %v2014, %v2246
      %v2248 = vpop.f32.mrf.mxu0
      %v2249 = vadd.f32 %v2016, %v2248
      %2250 = vmatmul.bf16.gmra.mxu0 %v2110
      %v2251 = vpop.f32.mrf.mxu0
      %v2252 = vadd.f32 %v2019, %v2251
      %v2253 = vpop.f32.mrf.mxu0
      %v2254 = vadd.f32 %v2021, %v2253
      %2255 = vmatmul.bf16.gmra.mxu0 %v2111
      %v2256 = vpop.f32.mrf.mxu0
      %v2257 = vadd.f32 %v2024, %v2256
      %v2258 = vpop.f32.mrf.mxu0
      %v2259 = vadd.f32 %v2026, %v2258
      %2260 = vmatmul.bf16.gmra.mxu0 %v2112
      %v2261 = vpop.f32.mrf.mxu0
      %v2262 = vadd.f32 %v2029, %v2261
      %v2263 = vpop.f32.mrf.mxu0
      %v2264 = vadd.f32 %v2031, %v2263
      %2265 = vdwg.mxu0
      %v2266 = vld [vmem:[%s1363] sm:$0xe]
      %v2267 = vld [vmem:[%s1363 + $0xc] sm:$0xe]
      %v2268 = vld [vmem:[%s1363 + $0x18] sm:$0xe]
      %v2269 = vld [vmem:[%s1363 + $0x24] sm:$0xe]
      %v2270 = vld [vmem:[%s1363 + $0x30] sm:$0xe]
      %v2271 = vld [vmem:[%s1363 + $0x3c] sm:$0xe]
      %v2272 = vld [vmem:[%s1363 + $0x48] sm:$0xe]
      %v2273 = vld [vmem:[%s1363 + $0x54] sm:$0xe]
      %v2274 = vld [vmem:[%s1363 + $0x60] sm:$0xe]
      %v2275 = vld [vmem:[%s1363 + $0x6c] sm:$0xe]
      %v2276 = vld [vmem:[%s1363 + $0x78] sm:$0xe]
      %v2277 = vld [vmem:[%s1363 + $0x84] sm:$0xe]
      %v2278 = vld [vmem:[%s1363 + $0x90] sm:$0xe]
      %v2279 = vld [vmem:[%s1363 + $0x9c] sm:$0xe]
      %v2280 = vld [vmem:[%s1363 + $0xa8] sm:$0xe]
      %v2281 = vld [vmem:[%s1363 + $0xb4] sm:$0xe]
      %vm2314 = vcmask 1042432
      %vm2315 = vcmask 1046532
      %vm2316 = vmor %vm2314, %vm2315
      %v2317 = vrot.slane %v2266, 5
      %v2318 = vrot.slane %v2317, 4
      %v2319 = vrot.slane %v1365, 5
      %v2320 = vsel %vm2316, %v2318, %v2319
      %v2321 = vrot.slane %v2319, 4
      %v2322 = vrot.slane %v1412, 5
      %v2323 = vsel %vm2316, %v2321, %v2322
      %v2324 = vrot.slane %v2267, 5
      %v2325 = vrot.slane %v2324, 4
      %v2326 = vrot.slane %v1367, 5
      %v2327 = vsel %vm2316, %v2325, %v2326
      %v2328 = vrot.slane %v2326, 4
      %v2329 = vrot.slane %v1413, 5
      %v2330 = vsel %vm2316, %v2328, %v2329
      %v2331 = vrot.slane %v2268, 5
      %v2332 = vrot.slane %v2331, 4
      %v2333 = vrot.slane %v1369, 5
      %v2334 = vsel %vm2316, %v2332, %v2333
      %v2335 = vrot.slane %v2333, 4
      %v2336 = vrot.slane %v1414, 5
      %v2337 = vsel %vm2316, %v2335, %v2336
      %v2338 = vrot.slane %v2269, 5
      %v2339 = vrot.slane %v2338, 4
      %v2340 = vrot.slane %v1371, 5
      %v2341 = vsel %vm2316, %v2339, %v2340
      %v2342 = vrot.slane %v2340, 4
      %v2343 = vrot.slane %v1415, 5
      %v2344 = vsel %vm2316, %v2342, %v2343
      %v2345 = vrot.slane %v2270, 5
      %v2346 = vrot.slane %v2345, 4
      %v2347 = vrot.slane %v1373, 5
      %v2348 = vsel %vm2316, %v2346, %v2347
      %v2349 = vrot.slane %v2347, 4
      %v2350 = vrot.slane %v1416, 5
      %v2351 = vsel %vm2316, %v2349, %v2350
      %v2352 = vrot.slane %v2271, 5
      %v2353 = vrot.slane %v2352, 4
      %v2354 = vrot.slane %v1375, 5
      %v2355 = vsel %vm2316, %v2353, %v2354
      %v2356 = vrot.slane %v2354, 4
      %v2357 = vrot.slane %v1417, 5
      %v2358 = vsel %vm2316, %v2356, %v2357
      %v2359 = vrot.slane %v2272, 5
      %v2360 = vrot.slane %v2359, 4
      %v2361 = vrot.slane %v1377, 5
      %v2362 = vsel %vm2316, %v2360, %v2361
      %v2363 = vrot.slane %v2361, 4
      %v2364 = vrot.slane %v1418, 5
      %v2365 = vsel %vm2316, %v2363, %v2364
      %v2366 = vrot.slane %v2273, 5
      %v2367 = vrot.slane %v2366, 4
      %v2368 = vrot.slane %v1379, 5
      %v2369 = vsel %vm2316, %v2367, %v2368
      %v2370 = vrot.slane %v2368, 4
      %v2371 = vrot.slane %v1419, 5
      %v2372 = vsel %vm2316, %v2370, %v2371
      %v2373 = vrot.slane %v2274, 5
      %v2374 = vrot.slane %v2373, 4
      %v2375 = vrot.slane %v1381, 5
      %v2376 = vsel %vm2316, %v2374, %v2375
      %v2377 = vrot.slane %v2375, 4
      %v2378 = vrot.slane %v1420, 5
      %v2379 = vsel %vm2316, %v2377, %v2378
      %v2380 = vrot.slane %v2275, 5
      %v2381 = vrot.slane %v2380, 4
      %v2382 = vrot.slane %v1383, 5
      %v2383 = vsel %vm2316, %v2381, %v2382
      %v2384 = vrot.slane %v2382, 4
      %v2385 = vrot.slane %v1421, 5
      %v2386 = vsel %vm2316, %v2384, %v2385
      %v2387 = vrot.slane %v2276, 5
      %v2388 = vrot.slane %v2387, 4
      %v2389 = vrot.slane %v1385, 5
      %v2390 = vsel %vm2316, %v2388, %v2389
      %v2391 = vrot.slane %v2389, 4
      %v2392 = vrot.slane %v1422, 5
      %v2393 = vsel %vm2316, %v2391, %v2392
      %v2394 = vrot.slane %v2277, 5
      %v2395 = vrot.slane %v2394, 4
      %v2396 = vrot.slane %v1387, 5
      %v2397 = vsel %vm2316, %v2395, %v2396
      %v2398 = vrot.slane %v2396, 4
      %v2399 = vrot.slane %v1423, 5
      %v2400 = vsel %vm2316, %v2398, %v2399
      %v2401 = vrot.slane %v2278, 5
      %v2402 = vrot.slane %v2401, 4
      %v2403 = vrot.slane %v1389, 5
      %v2404 = vsel %vm2316, %v2402, %v2403
      %v2405 = vrot.slane %v2403, 4
      %v2406 = vrot.slane %v1424, 5
      %v2407 = vsel %vm2316, %v2405, %v2406
      %v2408 = vrot.slane %v2279, 5
      %v2409 = vrot.slane %v2408, 4
      %v2410 = vrot.slane %v1391, 5
      %v2411 = vsel %vm2316, %v2409, %v2410
      %v2412 = vrot.slane %v2410, 4
      %v2413 = vrot.slane %v1425, 5
      %v2414 = vsel %vm2316, %v2412, %v2413
      %v2415 = vrot.slane %v2280, 5
      %v2416 = vrot.slane %v2415, 4
      %v2417 = vrot.slane %v1393, 5
      %v2418 = vsel %vm2316, %v2416, %v2417
      %v2419 = vrot.slane %v2417, 4
      %v2420 = vrot.slane %v1426, 5
      %v2421 = vsel %vm2316, %v2419, %v2420
      %v2422 = vrot.slane %v2281, 5
      %v2423 = vrot.slane %v2422, 4
      %v2424 = vrot.slane %v1395, 5
      %v2425 = vsel %vm2316, %v2423, %v2424
      %v2426 = vrot.slane %v2424, 4
      %v2427 = vrot.slane %v1427, 5
      %v2428 = vsel %vm2316, %v2426, %v2427
      %s2429 = scalar_lea.vmem %s4, 128
      %v2430 = vld [vmem:[%s2429] sm:$0xf]
      %v2431 = vld [vmem:[%s2429 + $0x4] sm:$0xf]
      %v2432 = vld [vmem:[%s2429 + $0x8] sm:$0xf]
      %v2433 = vld [vmem:[%s2429 + $0xc] sm:$0xf]
      %v2434 = vld [vmem:[%s2429 + $0x10] sm:$0xf]
      %v2435 = vld [vmem:[%s2429 + $0x14] sm:$0xf]
      %v2436 = vld [vmem:[%s2429 + $0x18] sm:$0xf]
      %v2437 = vld [vmem:[%s2429 + $0x1c] sm:$0xf]
      %v2438 = vld [vmem:[%s2429 + $0x20] sm:$0xf]
      %v2439 = vld [vmem:[%s2429 + $0x24] sm:$0xf]
      %v2440 = vld [vmem:[%s2429 + $0x28] sm:$0xf]
      %v2441 = vld [vmem:[%s2429 + $0x2c] sm:$0xf]
      %v2442 = vld [vmem:[%s2429 + $0x30] sm:$0xf]
      %v2443 = vld [vmem:[%s2429 + $0x34] sm:$0xf]
      %v2444 = vld [vmem:[%s2429 + $0x38] sm:$0xf]
      %v2445 = vld [vmem:[%s2429 + $0x3c] sm:$0xf]
      %v2446 = vunpack.c.l.b16 %v2320
      %v2447 = vunpack.c.l.b16 %v2323
      %v2448 = vunpack.c.l.b16 %v2327
      %v2449 = vunpack.c.l.b16 %v2330
      %v2450 = vunpack.c.l.b16 %v2334
      %v2451 = vunpack.c.l.b16 %v2337
      %v2452 = vunpack.c.l.b16 %v2341
      %v2453 = vunpack.c.l.b16 %v2344
      %v2454 = vunpack.c.l.b16 %v2348
      %v2455 = vunpack.c.l.b16 %v2351
      %v2456 = vunpack.c.l.b16 %v2355
      %v2457 = vunpack.c.l.b16 %v2358
      %v2458 = vunpack.c.l.b16 %v2362
      %v2459 = vunpack.c.l.b16 %v2365
      %v2460 = vunpack.c.l.b16 %v2369
      %v2461 = vunpack.c.l.b16 %v2372
      %v2462 = vunpack.c.l.b16 %v2376
      %v2463 = vunpack.c.l.b16 %v2379
      %v2464 = vunpack.c.l.b16 %v2383
      %v2465 = vunpack.c.l.b16 %v2386
      %v2466 = vunpack.c.l.b16 %v2390
      %v2467 = vunpack.c.l.b16 %v2393
      %v2468 = vunpack.c.l.b16 %v2397
      %v2469 = vunpack.c.l.b16 %v2400
      %v2470 = vunpack.c.l.b16 %v2404
      %v2471 = vunpack.c.l.b16 %v2407
      %v2472 = vunpack.c.l.b16 %v2411
      %v2473 = vunpack.c.l.b16 %v2414
      %v2474 = vunpack.c.l.b16 %v2418
      %v2475 = vunpack.c.l.b16 %v2421
      %v2476 = vunpack.c.l.b16 %v2425
      %v2477 = vunpack.c.l.b16 %v2428
      %v2478 = vpack.c.b16 %v2447, %v2446
      %v2479 = vpack.c.b16 %v2449, %v2448
      %v2480 = vpack.c.b16 %v2451, %v2450
      %v2481 = vpack.c.b16 %v2453, %v2452
      %v2482 = vpack.c.b16 %v2455, %v2454
      %v2483 = vpack.c.b16 %v2457, %v2456
      %v2484 = vpack.c.b16 %v2459, %v2458
      %v2485 = vpack.c.b16 %v2461, %v2460
      %v2486 = vpack.c.b16 %v2463, %v2462
      %v2487 = vpack.c.b16 %v2465, %v2464
      %v2488 = vpack.c.b16 %v2467, %v2466
      %v2489 = vpack.c.b16 %v2469, %v2468
      %v2490 = vpack.c.b16 %v2471, %v2470
      %v2491 = vpack.c.b16 %v2473, %v2472
      %v2492 = vpack.c.b16 %v2475, %v2474
      %v2493 = vpack.c.b16 %v2477, %v2476
      %v2526 = vunpack.c.l.b16 %v2430
      %v2527 = vunpack.c.l.b16 %v2431
      %v2528 = vunpack.c.l.b16 %v2432
      %v2529 = vunpack.c.l.b16 %v2433
      %v2530 = vunpack.c.l.b16 %v2434
      %v2531 = vunpack.c.l.b16 %v2435
      %v2532 = vunpack.c.l.b16 %v2436
      %v2533 = vunpack.c.l.b16 %v2437
      %v2534 = vunpack.c.l.b16 %v2438
      %v2535 = vunpack.c.l.b16 %v2439
      %v2536 = vunpack.c.l.b16 %v2440
      %v2537 = vunpack.c.l.b16 %v2441
      %v2538 = vunpack.c.l.b16 %v2442
      %v2539 = vunpack.c.l.b16 %v2443
      %v2540 = vunpack.c.l.b16 %v2444
      %v2541 = vunpack.c.l.b16 %v2445
      %v2542 = vpack.c.b16 %v2527, %v2526
      %v2543 = vpack.c.b16 %v2529, %v2528
      %v2544 = vpack.c.b16 %v2531, %v2530
      %v2545 = vpack.c.b16 %v2533, %v2532
      %v2546 = vpack.c.b16 %v2535, %v2534
      %v2547 = vpack.c.b16 %v2537, %v2536
      %v2548 = vpack.c.b16 %v2539, %v2538
      %v2549 = vpack.c.b16 %v2541, %v2540
      %2558 = vmatpush.bf16.msra.mxu0 %v2549
      %2559 = vmatpush.bf16.msra.mxu0 %v2548
      %2560 = vmatpush.bf16.msra.mxu0 %v2547
      %2561 = vmatpush.bf16.msra.mxu0 %v2546
      %2562 = vmatpush.bf16.msra.mxu0 %v2545
      %2563 = vmatpush.bf16.msra.mxu0 %v2544
      %2564 = vmatpush.bf16.msra.mxu0 %v2543
      %2565 = vmatpush.bf16.msra.mxu0 %v2542
      %2566 = vmatmul.bf16.gmra.mxu0 %v2478
      %v2567 = vpop.f32.mrf.mxu0
      %v2568 = vadd.f32 0.0, %v2567
      %v2569 = vpop.f32.mrf.mxu0
      %v2570 = vadd.f32 0.0, %v2569
      %2571 = vmatmul.bf16.gmra.mxu0 %v2479
      %v2572 = vpop.f32.mrf.mxu0
      %v2573 = vadd.f32 0.0, %v2572
      %v2574 = vpop.f32.mrf.mxu0
      %v2575 = vadd.f32 0.0, %v2574
      %2576 = vmatmul.bf16.gmra.mxu0 %v2480
      %v2577 = vpop.f32.mrf.mxu0
      %v2578 = vadd.f32 0.0, %v2577
      %v2579 = vpop.f32.mrf.mxu0
      %v2580 = vadd.f32 0.0, %v2579
      %2581 = vmatmul.bf16.gmra.mxu0 %v2481
      %v2582 = vpop.f32.mrf.mxu0
      %v2583 = vadd.f32 0.0, %v2582
      %v2584 = vpop.f32.mrf.mxu0
      %v2585 = vadd.f32 0.0, %v2584
      %2586 = vmatmul.bf16.gmra.mxu0 %v2482
      %v2587 = vpop.f32.mrf.mxu0
      %v2588 = vadd.f32 0.0, %v2587
      %v2589 = vpop.f32.mrf.mxu0
      %v2590 = vadd.f32 0.0, %v2589
      %2591 = vmatmul.bf16.gmra.mxu0 %v2483
      %v2592 = vpop.f32.mrf.mxu0
      %v2593 = vadd.f32 0.0, %v2592
      %v2594 = vpop.f32.mrf.mxu0
      %v2595 = vadd.f32 0.0, %v2594
      %2596 = vmatmul.bf16.gmra.mxu0 %v2484
      %v2597 = vpop.f32.mrf.mxu0
      %v2598 = vadd.f32 0.0, %v2597
      %v2599 = vpop.f32.mrf.mxu0
      %v2600 = vadd.f32 0.0, %v2599
      %2601 = vmatmul.bf16.gmra.mxu0 %v2485
      %v2602 = vpop.f32.mrf.mxu0
      %v2603 = vadd.f32 0.0, %v2602
      %v2604 = vpop.f32.mrf.mxu0
      %v2605 = vadd.f32 0.0, %v2604
      %2606 = vmatmul.bf16.gmra.mxu0 %v2486
      %v2607 = vpop.f32.mrf.mxu0
      %v2608 = vadd.f32 0.0, %v2607
      %v2609 = vpop.f32.mrf.mxu0
      %v2610 = vadd.f32 0.0, %v2609
      %2611 = vmatmul.bf16.gmra.mxu0 %v2487
      %v2612 = vpop.f32.mrf.mxu0
      %v2613 = vadd.f32 0.0, %v2612
      %v2614 = vpop.f32.mrf.mxu0
      %v2615 = vadd.f32 0.0, %v2614
      %2616 = vmatmul.bf16.gmra.mxu0 %v2488
      %v2617 = vpop.f32.mrf.mxu0
      %v2618 = vadd.f32 0.0, %v2617
      %v2619 = vpop.f32.mrf.mxu0
      %v2620 = vadd.f32 0.0, %v2619
      %2621 = vmatmul.bf16.gmra.mxu0 %v2489
      %v2622 = vpop.f32.mrf.mxu0
      %v2623 = vadd.f32 0.0, %v2622
      %v2624 = vpop.f32.mrf.mxu0
      %v2625 = vadd.f32 0.0, %v2624
      %2626 = vmatmul.bf16.gmra.mxu0 %v2490
      %v2627 = vpop.f32.mrf.mxu0
      %v2628 = vadd.f32 0.0, %v2627
      %v2629 = vpop.f32.mrf.mxu0
      %v2630 = vadd.f32 0.0, %v2629
      %2631 = vmatmul.bf16.gmra.mxu0 %v2491
      %v2632 = vpop.f32.mrf.mxu0
      %v2633 = vadd.f32 0.0, %v2632
      %v2634 = vpop.f32.mrf.mxu0
      %v2635 = vadd.f32 0.0, %v2634
      %2636 = vmatmul.bf16.gmra.mxu0 %v2492
      %v2637 = vpop.f32.mrf.mxu0
      %v2638 = vadd.f32 0.0, %v2637
      %v2639 = vpop.f32.mrf.mxu0
      %v2640 = vadd.f32 0.0, %v2639
      %2641 = vmatmul.bf16.gmra.mxu0 %v2493
      %v2642 = vpop.f32.mrf.mxu0
      %v2643 = vadd.f32 0.0, %v2642
      %v2644 = vpop.f32.mrf.mxu0
      %v2645 = vadd.f32 0.0, %v2644
      %2646 = vdwg.mxu0
      %v2647 = vadd.f32 %v2187, %v2568
      %v2648 = vadd.f32 %v2189, %v2570
      %v2649 = vadd.f32 %v2192, %v2573
      %v2650 = vadd.f32 %v2194, %v2575
      %v2651 = vadd.f32 %v2197, %v2578
      %v2652 = vadd.f32 %v2199, %v2580
      %v2653 = vadd.f32 %v2202, %v2583
      %v2654 = vadd.f32 %v2204, %v2585
      %v2655 = vadd.f32 %v2207, %v2588
      %v2656 = vadd.f32 %v2209, %v2590
      %v2657 = vadd.f32 %v2212, %v2593
      %v2658 = vadd.f32 %v2214, %v2595
      %v2659 = vadd.f32 %v2217, %v2598
      %v2660 = vadd.f32 %v2219, %v2600
      %v2661 = vadd.f32 %v2222, %v2603
      %v2662 = vadd.f32 %v2224, %v2605
      %v2663 = vadd.f32 %v2227, %v2608
      %v2664 = vadd.f32 %v2229, %v2610
      %v2665 = vadd.f32 %v2232, %v2613
      %v2666 = vadd.f32 %v2234, %v2615
      %v2667 = vadd.f32 %v2237, %v2618
      %v2668 = vadd.f32 %v2239, %v2620
      %v2669 = vadd.f32 %v2242, %v2623
      %v2670 = vadd.f32 %v2244, %v2625
      %v2671 = vadd.f32 %v2247, %v2628
      %v2672 = vadd.f32 %v2249, %v2630
      %v2673 = vadd.f32 %v2252, %v2633
      %v2674 = vadd.f32 %v2254, %v2635
      %v2675 = vadd.f32 %v2257, %v2638
      %v2676 = vadd.f32 %v2259, %v2640
      %v2677 = vadd.f32 %v2262, %v2643
      %v2678 = vadd.f32 %v2264, %v2645
      %s2679 = sadd.s32 %s1360, 1
      %s2680 = smul.u32 %s2679, 3
      %s2681 = smul.addr %s2680, 4
      %s2682 = scalar_lea.vmem [#allocation2], %s2681
      %v2683 = vld [vmem:[%s2682] sm:$0xf]
      %v2684 = vld [vmem:[%s2682 + $0x4] sm:$0xf]
      %v2685 = vld [vmem:[%s2682 + $0xc] sm:$0xf]
      %v2686 = vld [vmem:[%s2682 + $0x10] sm:$0xf]
      %v2687 = vld [vmem:[%s2682 + $0x18] sm:$0xf]
      %v2688 = vld [vmem:[%s2682 + $0x1c] sm:$0xf]
      %v2689 = vld [vmem:[%s2682 + $0x24] sm:$0xf]
      %v2690 = vld [vmem:[%s2682 + $0x28] sm:$0xf]
      %v2691 = vld [vmem:[%s2682 + $0x30] sm:$0xf]
      %v2692 = vld [vmem:[%s2682 + $0x34] sm:$0xf]
      %v2693 = vld [vmem:[%s2682 + $0x3c] sm:$0xf]
      %v2694 = vld [vmem:[%s2682 + $0x40] sm:$0xf]
      %v2695 = vld [vmem:[%s2682 + $0x48] sm:$0xf]
      %v2696 = vld [vmem:[%s2682 + $0x4c] sm:$0xf]
      %v2697 = vld [vmem:[%s2682 + $0x54] sm:$0xf]
      %v2698 = vld [vmem:[%s2682 + $0x58] sm:$0xf]
      %v2699 = vld [vmem:[%s2682 + $0x60] sm:$0xf]
      %v2700 = vld [vmem:[%s2682 + $0x64] sm:$0xf]
      %v2701 = vld [vmem:[%s2682 + $0x6c] sm:$0xf]
      %v2702 = vld [vmem:[%s2682 + $0x70] sm:$0xf]
      %v2703 = vld [vmem:[%s2682 + $0x78] sm:$0xf]
      %v2704 = vld [vmem:[%s2682 + $0x7c] sm:$0xf]
      %v2705 = vld [vmem:[%s2682 + $0x84] sm:$0xf]
      %v2706 = vld [vmem:[%s2682 + $0x88] sm:$0xf]
      %v2707 = vld [vmem:[%s2682 + $0x90] sm:$0xf]
      %v2708 = vld [vmem:[%s2682 + $0x94] sm:$0xf]
      %v2709 = vld [vmem:[%s2682 + $0x9c] sm:$0xf]
      %v2710 = vld [vmem:[%s2682 + $0xa0] sm:$0xf]
      %v2711 = vld [vmem:[%s2682 + $0xa8] sm:$0xf]
      %v2712 = vld [vmem:[%s2682 + $0xac] sm:$0xf]
      %v2713 = vld [vmem:[%s2682 + $0xb4] sm:$0xf]
      %v2714 = vld [vmem:[%s2682 + $0xb8] sm:$0xf]
      %s2715 = scalar_lea.vmem %s4, 192
      %v2716 = vld [vmem:[%s2715] sm:$0xf]
      %v2717 = vld [vmem:[%s2715 + $0x4] sm:$0xf]
      %v2718 = vld [vmem:[%s2715 + $0x8] sm:$0xf]
      %v2719 = vld [vmem:[%s2715 + $0xc] sm:$0xf]
      %v2720 = vld [vmem:[%s2715 + $0x10] sm:$0xf]
      %v2721 = vld [vmem:[%s2715 + $0x14] sm:$0xf]
      %v2722 = vld [vmem:[%s2715 + $0x18] sm:$0xf]
      %v2723 = vld [vmem:[%s2715 + $0x1c] sm:$0xf]
      %v2724 = vld [vmem:[%s2715 + $0x20] sm:$0xf]
      %v2725 = vld [vmem:[%s2715 + $0x24] sm:$0xf]
      %v2726 = vld [vmem:[%s2715 + $0x28] sm:$0xf]
      %v2727 = vld [vmem:[%s2715 + $0x2c] sm:$0xf]
      %v2728 = vld [vmem:[%s2715 + $0x30] sm:$0xf]
      %v2729 = vld [vmem:[%s2715 + $0x34] sm:$0xf]
      %v2730 = vld [vmem:[%s2715 + $0x38] sm:$0xf]
      %v2731 = vld [vmem:[%s2715 + $0x3c] sm:$0xf]
      %v2764 = vunpack.c.l.b16 %v2683
      %v2765 = vunpack.c.l.b16 %v2684
      %v2766 = vunpack.c.l.b16 %v2685
      %v2767 = vunpack.c.l.b16 %v2686
      %v2768 = vunpack.c.l.b16 %v2687
      %v2769 = vunpack.c.l.b16 %v2688
      %v2770 = vunpack.c.l.b16 %v2689
      %v2771 = vunpack.c.l.b16 %v2690
      %v2772 = vunpack.c.l.b16 %v2691
      %v2773 = vunpack.c.l.b16 %v2692
      %v2774 = vunpack.c.l.b16 %v2693
      %v2775 = vunpack.c.l.b16 %v2694
      %v2776 = vunpack.c.l.b16 %v2695
      %v2777 = vunpack.c.l.b16 %v2696
      %v2778 = vunpack.c.l.b16 %v2697
      %v2779 = vunpack.c.l.b16 %v2698
      %v2780 = vunpack.c.l.b16 %v2699
      %v2781 = vunpack.c.l.b16 %v2700
      %v2782 = vunpack.c.l.b16 %v2701
      %v2783 = vunpack.c.l.b16 %v2702
      %v2784 = vunpack.c.l.b16 %v2703
      %v2785 = vunpack.c.l.b16 %v2704
      %v2786 = vunpack.c.l.b16 %v2705
      %v2787 = vunpack.c.l.b16 %v2706
      %v2788 = vunpack.c.l.b16 %v2707
      %v2789 = vunpack.c.l.b16 %v2708
      %v2790 = vunpack.c.l.b16 %v2709
      %v2791 = vunpack.c.l.b16 %v2710
      %v2792 = vunpack.c.l.b16 %v2711
      %v2793 = vunpack.c.l.b16 %v2712
      %v2794 = vunpack.c.l.b16 %v2713
      %v2795 = vunpack.c.l.b16 %v2714
      %v2796 = vpack.c.b16 %v2765, %v2764
      %v2797 = vpack.c.b16 %v2767, %v2766
      %v2798 = vpack.c.b16 %v2769, %v2768
      %v2799 = vpack.c.b16 %v2771, %v2770
      %v2800 = vpack.c.b16 %v2773, %v2772
      %v2801 = vpack.c.b16 %v2775, %v2774
      %v2802 = vpack.c.b16 %v2777, %v2776
      %v2803 = vpack.c.b16 %v2779, %v2778
      %v2804 = vpack.c.b16 %v2781, %v2780
      %v2805 = vpack.c.b16 %v2783, %v2782
      %v2806 = vpack.c.b16 %v2785, %v2784
      %v2807 = vpack.c.b16 %v2787, %v2786
      %v2808 = vpack.c.b16 %v2789, %v2788
      %v2809 = vpack.c.b16 %v2791, %v2790
      %v2810 = vpack.c.b16 %v2793, %v2792
      %v2811 = vpack.c.b16 %v2795, %v2794
      %v2844 = vunpack.c.l.b16 %v2716
      %v2845 = vunpack.c.l.b16 %v2717
      %v2846 = vunpack.c.l.b16 %v2718
      %v2847 = vunpack.c.l.b16 %v2719
      %v2848 = vunpack.c.l.b16 %v2720
      %v2849 = vunpack.c.l.b16 %v2721
      %v2850 = vunpack.c.l.b16 %v2722
      %v2851 = vunpack.c.l.b16 %v2723
      %v2852 = vunpack.c.l.b16 %v2724
      %v2853 = vunpack.c.l.b16 %v2725
      %v2854 = vunpack.c.l.b16 %v2726
      %v2855 = vunpack.c.l.b16 %v2727
      %v2856 = vunpack.c.l.b16 %v2728
      %v2857 = vunpack.c.l.b16 %v2729
      %v2858 = vunpack.c.l.b16 %v2730
      %v2859 = vunpack.c.l.b16 %v2731
      %v2860 = vpack.c.b16 %v2845, %v2844
      %v2861 = vpack.c.b16 %v2847, %v2846
      %v2862 = vpack.c.b16 %v2849, %v2848
      %v2863 = vpack.c.b16 %v2851, %v2850
      %v2864 = vpack.c.b16 %v2853, %v2852
      %v2865 = vpack.c.b16 %v2855, %v2854
      %v2866 = vpack.c.b16 %v2857, %v2856
      %v2867 = vpack.c.b16 %v2859, %v2858
      %2876 = vmatpush.bf16.msra.mxu0 %v2867
      %2877 = vmatpush.bf16.msra.mxu0 %v2866
      %2878 = vmatpush.bf16.msra.mxu0 %v2865
      %2879 = vmatpush.bf16.msra.mxu0 %v2864
      %2880 = vmatpush.bf16.msra.mxu0 %v2863
      %2881 = vmatpush.bf16.msra.mxu0 %v2862
      %2882 = vmatpush.bf16.msra.mxu0 %v2861
      %2883 = vmatpush.bf16.msra.mxu0 %v2860
      %2884 = vmatmul.bf16.gmra.mxu0 %v2796
      %v2885 = vpop.f32.mrf.mxu0
      %v2886 = vadd.f32 0.0, %v2885
      %v2887 = vpop.f32.mrf.mxu0
      %v2888 = vadd.f32 0.0, %v2887
      %2889 = vmatmul.bf16.gmra.mxu0 %v2797
      %v2890 = vpop.f32.mrf.mxu0
      %v2891 = vadd.f32 0.0, %v2890
      %v2892 = vpop.f32.mrf.mxu0
      %v2893 = vadd.f32 0.0, %v2892
      %2894 = vmatmul.bf16.gmra.mxu0 %v2798
      %v2895 = vpop.f32.mrf.mxu0
      %v2896 = vadd.f32 0.0, %v2895
      %v2897 = vpop.f32.mrf.mxu0
      %v2898 = vadd.f32 0.0, %v2897
      %2899 = vmatmul.bf16.gmra.mxu0 %v2799
      %v2900 = vpop.f32.mrf.mxu0
      %v2901 = vadd.f32 0.0, %v2900
      %v2902 = vpop.f32.mrf.mxu0
      %v2903 = vadd.f32 0.0, %v2902
      %2904 = vmatmul.bf16.gmra.mxu0 %v2800
      %v2905 = vpop.f32.mrf.mxu0
      %v2906 = vadd.f32 0.0, %v2905
      %v2907 = vpop.f32.mrf.mxu0
      %v2908 = vadd.f32 0.0, %v2907
      %2909 = vmatmul.bf16.gmra.mxu0 %v2801
      %v2910 = vpop.f32.mrf.mxu0
      %v2911 = vadd.f32 0.0, %v2910
      %v2912 = vpop.f32.mrf.mxu0
      %v2913 = vadd.f32 0.0, %v2912
      %2914 = vmatmul.bf16.gmra.mxu0 %v2802
      %v2915 = vpop.f32.mrf.mxu0
      %v2916 = vadd.f32 0.0, %v2915
      %v2917 = vpop.f32.mrf.mxu0
      %v2918 = vadd.f32 0.0, %v2917
      %2919 = vmatmul.bf16.gmra.mxu0 %v2803
      %v2920 = vpop.f32.mrf.mxu0
      %v2921 = vadd.f32 0.0, %v2920
      %v2922 = vpop.f32.mrf.mxu0
      %v2923 = vadd.f32 0.0, %v2922
      %2924 = vmatmul.bf16.gmra.mxu0 %v2804
      %v2925 = vpop.f32.mrf.mxu0
      %v2926 = vadd.f32 0.0, %v2925
      %v2927 = vpop.f32.mrf.mxu0
      %v2928 = vadd.f32 0.0, %v2927
      %2929 = vmatmul.bf16.gmra.mxu0 %v2805
      %v2930 = vpop.f32.mrf.mxu0
      %v2931 = vadd.f32 0.0, %v2930
      %v2932 = vpop.f32.mrf.mxu0
      %v2933 = vadd.f32 0.0, %v2932
      %2934 = vmatmul.bf16.gmra.mxu0 %v2806
      %v2935 = vpop.f32.mrf.mxu0
      %v2936 = vadd.f32 0.0, %v2935
      %v2937 = vpop.f32.mrf.mxu0
      %v2938 = vadd.f32 0.0, %v2937
      %2939 = vmatmul.bf16.gmra.mxu0 %v2807
      %v2940 = vpop.f32.mrf.mxu0
      %v2941 = vadd.f32 0.0, %v2940
      %v2942 = vpop.f32.mrf.mxu0
      %v2943 = vadd.f32 0.0, %v2942
      %2944 = vmatmul.bf16.gmra.mxu0 %v2808
      %v2945 = vpop.f32.mrf.mxu0
      %v2946 = vadd.f32 0.0, %v2945
      %v2947 = vpop.f32.mrf.mxu0
      %v2948 = vadd.f32 0.0, %v2947
      %2949 = vmatmul.bf16.gmra.mxu0 %v2809
      %v2950 = vpop.f32.mrf.mxu0
      %v2951 = vadd.f32 0.0, %v2950
      %v2952 = vpop.f32.mrf.mxu0
      %v2953 = vadd.f32 0.0, %v2952
      %2954 = vmatmul.bf16.gmra.mxu0 %v2810
      %v2955 = vpop.f32.mrf.mxu0
      %v2956 = vadd.f32 0.0, %v2955
      %v2957 = vpop.f32.mrf.mxu0
      %v2958 = vadd.f32 0.0, %v2957
      %2959 = vmatmul.bf16.gmra.mxu0 %v2811
      %v2960 = vpop.f32.mrf.mxu0
      %v2961 = vadd.f32 0.0, %v2960
      %v2962 = vpop.f32.mrf.mxu0
      %v2963 = vadd.f32 0.0, %v2962
      %2964 = vdwg.mxu0
      %v2965 = vadd.f32 %v2647, %v2886
      %v2966 = vadd.f32 %v2648, %v2888
      %v2967 = vadd.f32 %v2649, %v2891
      %v2968 = vadd.f32 %v2650, %v2893
      %v2969 = vadd.f32 %v2651, %v2896
      %v2970 = vadd.f32 %v2652, %v2898
      %v2971 = vadd.f32 %v2653, %v2901
      %v2972 = vadd.f32 %v2654, %v2903
      %v2973 = vadd.f32 %v2655, %v2906
      %v2974 = vadd.f32 %v2656, %v2908
      %v2975 = vadd.f32 %v2657, %v2911
      %v2976 = vadd.f32 %v2658, %v2913
      %v2977 = vadd.f32 %v2659, %v2916
      %v2978 = vadd.f32 %v2660, %v2918
      %v2979 = vadd.f32 %v2661, %v2921
      %v2980 = vadd.f32 %v2662, %v2923
      %v2981 = vadd.f32 %v2663, %v2926
      %v2982 = vadd.f32 %v2664, %v2928
      %v2983 = vadd.f32 %v2665, %v2931
      %v2984 = vadd.f32 %v2666, %v2933
      %v2985 = vadd.f32 %v2667, %v2936
      %v2986 = vadd.f32 %v2668, %v2938
      %v2987 = vadd.f32 %v2669, %v2941
      %v2988 = vadd.f32 %v2670, %v2943
      %v2989 = vadd.f32 %v2671, %v2946
      %v2990 = vadd.f32 %v2672, %v2948
      %v2991 = vadd.f32 %v2673, %v2951
      %v2992 = vadd.f32 %v2674, %v2953
      %v2993 = vadd.f32 %v2675, %v2956
      %v2994 = vadd.f32 %v2676, %v2958
      %v2995 = vadd.f32 %v2677, %v2961
      %v2996 = vadd.f32 %v2678, %v2963
      %v2997 = vld [vmem:[%s2682] sm:$0xf]
      %v2998 = vld [vmem:[%s2682 + $0x4] sm:$0xf]
      %v2999 = vld [vmem:[%s2682 + $0x8] sm:$0x1]
      %v3000 = vld [vmem:[%s2682 + $0xc] sm:$0xf]
      %v3001 = vld [vmem:[%s2682 + $0x10] sm:$0xf]
      %v3002 = vld [vmem:[%s2682 + $0x14] sm:$0x1]
      %v3003 = vld [vmem:[%s2682 + $0x18] sm:$0xf]
      %v3004 = vld [vmem:[%s2682 + $0x1c] sm:$0xf]
      %v3005 = vld [vmem:[%s2682 + $0x20] sm:$0x1]
      %v3006 = vld [vmem:[%s2682 + $0x24] sm:$0xf]
      %v3007 = vld [vmem:[%s2682 + $0x28] sm:$0xf]
      %v3008 = vld [vmem:[%s2682 + $0x2c] sm:$0x1]
      %v3009 = vld [vmem:[%s2682 + $0x30] sm:$0xf]
      %v3010 = vld [vmem:[%s2682 + $0x34] sm:$0xf]
      %v3011 = vld [vmem:[%s2682 + $0x38] sm:$0x1]
      %v3012 = vld [vmem:[%s2682 + $0x3c] sm:$0xf]
      %v3013 = vld [vmem:[%s2682 + $0x40] sm:$0xf]
      %v3014 = vld [vmem:[%s2682 + $0x44] sm:$0x1]
      %v3015 = vld [vmem:[%s2682 + $0x48] sm:$0xf]
      %v3016 = vld [vmem:[%s2682 + $0x4c] sm:$0xf]
      %v3017 = vld [vmem:[%s2682 + $0x50] sm:$0x1]
      %v3018 = vld [vmem:[%s2682 + $0x54] sm:$0xf]
      %v3019 = vld [vmem:[%s2682 + $0x58] sm:$0xf]
      %v3020 = vld [vmem:[%s2682 + $0x5c] sm:$0x1]
      %v3021 = vld [vmem:[%s2682 + $0x60] sm:$0xf]
      %v3022 = vld [vmem:[%s2682 + $0x64] sm:$0xf]
      %v3023 = vld [vmem:[%s2682 + $0x68] sm:$0x1]
      %v3024 = vld [vmem:[%s2682 + $0x6c] sm:$0xf]
      %v3025 = vld [vmem:[%s2682 + $0x70] sm:$0xf]
      %v3026 = vld [vmem:[%s2682 + $0x74] sm:$0x1]
      %v3027 = vld [vmem:[%s2682 + $0x78] sm:$0xf]
      %v3028 = vld [vmem:[%s2682 + $0x7c] sm:$0xf]
      %v3029 = vld [vmem:[%s2682 + $0x80] sm:$0x1]
      %v3030 = vld [vmem:[%s2682 + $0x84] sm:$0xf]
      %v3031 = vld [vmem:[%s2682 + $0x88] sm:$0xf]
      %v3032 = vld [vmem:[%s2682 + $0x8c] sm:$0x1]
      %v3033 = vld [vmem:[%s2682 + $0x90] sm:$0xf]
      %v3034 = vld [vmem:[%s2682 + $0x94] sm:$0xf]
      %v3035 = vld [vmem:[%s2682 + $0x98] sm:$0x1]
      %v3036 = vld [vmem:[%s2682 + $0x9c] sm:$0xf]
      %v3037 = vld [vmem:[%s2682 + $0xa0] sm:$0xf]
      %v3038 = vld [vmem:[%s2682 + $0xa4] sm:$0x1]
      %v3039 = vld [vmem:[%s2682 + $0xa8] sm:$0xf]
      %v3040 = vld [vmem:[%s2682 + $0xac] sm:$0xf]
      %v3041 = vld [vmem:[%s2682 + $0xb0] sm:$0x1]
      %v3042 = vld [vmem:[%s2682 + $0xb4] sm:$0xf]
      %v3043 = vld [vmem:[%s2682 + $0xb8] sm:$0xf]
      %v3044 = vld [vmem:[%s2682 + $0xbc] sm:$0x1]
      %v3046 = vshrl.u32 %v2997, 16
      %v3048 = vrot.slane %v3046, 4
      %v3049 = vshll.u32 %v2997, 16
      %v3051 = vrot.slane %v3049, 5
      %v3052 = vor.u32 %v3048, %v3051
      %v3053 = vrot.slane %v3052, 4
      %v3055 = vshll.u32 %v2998, 16
      %v3057 = vrot.slane %v3055, 5
      %v3058 = vsel %vm1430, %v3053, %v3057
      %v3059 = vshrl.u32 %v2998, 16
      %v3061 = vrot.slane %v3059, 4
      %v3062 = vor.u32 %v3061, %v3057
      %v3063 = vrot.slane %v3062, 4
      %v3065 = vshll.u32 %v2999, 16
      %v3067 = vrot.slane %v3065, 5
      %v3068 = vsel %vm1430, %v3063, %v3067
      %v3070 = vshrl.u32 %v3000, 16
      %v3072 = vrot.slane %v3070, 4
      %v3073 = vshll.u32 %v3000, 16
      %v3075 = vrot.slane %v3073, 5
      %v3076 = vor.u32 %v3072, %v3075
      %v3077 = vrot.slane %v3076, 4
      %v3079 = vshll.u32 %v3001, 16
      %v3081 = vrot.slane %v3079, 5
      %v3082 = vsel %vm1430, %v3077, %v3081
      %v3083 = vshrl.u32 %v3001, 16
      %v3085 = vrot.slane %v3083, 4
      %v3086 = vor.u32 %v3085, %v3081
      %v3087 = vrot.slane %v3086, 4
      %v3089 = vshll.u32 %v3002, 16
      %v3091 = vrot.slane %v3089, 5
      %v3092 = vsel %vm1430, %v3087, %v3091
      %v3094 = vshrl.u32 %v3003, 16
      %v3096 = vrot.slane %v3094, 4
      %v3097 = vshll.u32 %v3003, 16
      %v3099 = vrot.slane %v3097, 5
      %v3100 = vor.u32 %v3096, %v3099
      %v3101 = vrot.slane %v3100, 4
      %v3103 = vshll.u32 %v3004, 16
      %v3105 = vrot.slane %v3103, 5
      %v3106 = vsel %vm1430, %v3101, %v3105
      %v3107 = vshrl.u32 %v3004, 16
      %v3109 = vrot.slane %v3107, 4
      %v3110 = vor.u32 %v3109, %v3105
      %v3111 = vrot.slane %v3110, 4
      %v3113 = vshll.u32 %v3005, 16
      %v3115 = vrot.slane %v3113, 5
      %v3116 = vsel %vm1430, %v3111, %v3115
      %v3118 = vshrl.u32 %v3006, 16
      %v3120 = vrot.slane %v3118, 4
      %v3121 = vshll.u32 %v3006, 16
      %v3123 = vrot.slane %v3121, 5
      %v3124 = vor.u32 %v3120, %v3123
      %v3125 = vrot.slane %v3124, 4
      %v3127 = vshll.u32 %v3007, 16
      %v3129 = vrot.slane %v3127, 5
      %v3130 = vsel %vm1430, %v3125, %v3129
      %v3131 = vshrl.u32 %v3007, 16
      %v3133 = vrot.slane %v3131, 4
      %v3134 = vor.u32 %v3133, %v3129
      %v3135 = vrot.slane %v3134, 4
      %v3137 = vshll.u32 %v3008, 16
      %v3139 = vrot.slane %v3137, 5
      %v3140 = vsel %vm1430, %v3135, %v3139
      %v3142 = vshrl.u32 %v3009, 16
      %v3144 = vrot.slane %v3142, 4
      %v3145 = vshll.u32 %v3009, 16
      %v3147 = vrot.slane %v3145, 5
      %v3148 = vor.u32 %v3144, %v3147
      %v3149 = vrot.slane %v3148, 4
      %v3151 = vshll.u32 %v3010, 16
      %v3153 = vrot.slane %v3151, 5
      %v3154 = vsel %vm1430, %v3149, %v3153
      %v3155 = vshrl.u32 %v3010, 16
      %v3157 = vrot.slane %v3155, 4
      %v3158 = vor.u32 %v3157, %v3153
      %v3159 = vrot.slane %v3158, 4
      %v3161 = vshll.u32 %v3011, 16
      %v3163 = vrot.slane %v3161, 5
      %v3164 = vsel %vm1430, %v3159, %v3163
      %v3166 = vshrl.u32 %v3012, 16
      %v3168 = vrot.slane %v3166, 4
      %v3169 = vshll.u32 %v3012, 16
      %v3171 = vrot.slane %v3169, 5
      %v3172 = vor.u32 %v3168, %v3171
      %v3173 = vrot.slane %v3172, 4
      %v3175 = vshll.u32 %v3013, 16
      %v3177 = vrot.slane %v3175, 5
      %v3178 = vsel %vm1430, %v3173, %v3177
      %v3179 = vshrl.u32 %v3013, 16
      %v3181 = vrot.slane %v3179, 4
      %v3182 = vor.u32 %v3181, %v3177
      %v3183 = vrot.slane %v3182, 4
      %v3185 = vshll.u32 %v3014, 16
      %v3187 = vrot.slane %v3185, 5
      %v3188 = vsel %vm1430, %v3183, %v3187
      %v3190 = vshrl.u32 %v3015, 16
      %v3192 = vrot.slane %v3190, 4
      %v3193 = vshll.u32 %v3015, 16
      %v3195 = vrot.slane %v3193, 5
      %v3196 = vor.u32 %v3192, %v3195
      %v3197 = vrot.slane %v3196, 4
      %v3199 = vshll.u32 %v3016, 16
      %v3201 = vrot.slane %v3199, 5
      %v3202 = vsel %vm1430, %v3197, %v3201
      %v3203 = vshrl.u32 %v3016, 16
      %v3205 = vrot.slane %v3203, 4
      %v3206 = vor.u32 %v3205, %v3201
      %v3207 = vrot.slane %v3206, 4
      %v3209 = vshll.u32 %v3017, 16
      %v3211 = vrot.slane %v3209, 5
      %v3212 = vsel %vm1430, %v3207, %v3211
      %v3214 = vshrl.u32 %v3018, 16
      %v3216 = vrot.slane %v3214, 4
      %v3217 = vshll.u32 %v3018, 16
      %v3219 = vrot.slane %v3217, 5
      %v3220 = vor.u32 %v3216, %v3219
      %v3221 = vrot.slane %v3220, 4
      %v3223 = vshll.u32 %v3019, 16
      %v3225 = vrot.slane %v3223, 5
      %v3226 = vsel %vm1430, %v3221, %v3225
      %v3227 = vshrl.u32 %v3019, 16
      %v3229 = vrot.slane %v3227, 4
      %v3230 = vor.u32 %v3229, %v3225
      %v3231 = vrot.slane %v3230, 4
      %v3233 = vshll.u32 %v3020, 16
      %v3235 = vrot.slane %v3233, 5
      %v3236 = vsel %vm1430, %v3231, %v3235
      %v3238 = vshrl.u32 %v3021, 16
      %v3240 = vrot.slane %v3238, 4
      %v3241 = vshll.u32 %v3021, 16
      %v3243 = vrot.slane %v3241, 5
      %v3244 = vor.u32 %v3240, %v3243
      %v3245 = vrot.slane %v3244, 4
      %v3247 = vshll.u32 %v3022, 16
      %v3249 = vrot.slane %v3247, 5
      %v3250 = vsel %vm1430, %v3245, %v3249
      %v3251 = vshrl.u32 %v3022, 16
      %v3253 = vrot.slane %v3251, 4
      %v3254 = vor.u32 %v3253, %v3249
      %v3255 = vrot.slane %v3254, 4
      %v3257 = vshll.u32 %v3023, 16
      %v3259 = vrot.slane %v3257, 5
      %v3260 = vsel %vm1430, %v3255, %v3259
      %v3262 = vshrl.u32 %v3024, 16
      %v3264 = vrot.slane %v3262, 4
      %v3265 = vshll.u32 %v3024, 16
      %v3267 = vrot.slane %v3265, 5
      %v3268 = vor.u32 %v3264, %v3267
      %v3269 = vrot.slane %v3268, 4
      %v3271 = vshll.u32 %v3025, 16
      %v3273 = vrot.slane %v3271, 5
      %v3274 = vsel %vm1430, %v3269, %v3273
      %v3275 = vshrl.u32 %v3025, 16
      %v3277 = vrot.slane %v3275, 4
      %v3278 = vor.u32 %v3277, %v3273
      %v3279 = vrot.slane %v3278, 4
      %v3281 = vshll.u32 %v3026, 16
      %v3283 = vrot.slane %v3281, 5
      %v3284 = vsel %vm1430, %v3279, %v3283
      %v3286 = vshrl.u32 %v3027, 16
      %v3288 = vrot.slane %v3286, 4
      %v3289 = vshll.u32 %v3027, 16
      %v3291 = vrot.slane %v3289, 5
      %v3292 = vor.u32 %v3288, %v3291
      %v3293 = vrot.slane %v3292, 4
      %v3295 = vshll.u32 %v3028, 16
      %v3297 = vrot.slane %v3295, 5
      %v3298 = vsel %vm1430, %v3293, %v3297
      %v3299 = vshrl.u32 %v3028, 16
      %v3301 = vrot.slane %v3299, 4
      %v3302 = vor.u32 %v3301, %v3297
      %v3303 = vrot.slane %v3302, 4
      %v3305 = vshll.u32 %v3029, 16
      %v3307 = vrot.slane %v3305, 5
      %v3308 = vsel %vm1430, %v3303, %v3307
      %v3310 = vshrl.u32 %v3030, 16
      %v3312 = vrot.slane %v3310, 4
      %v3313 = vshll.u32 %v3030, 16
      %v3315 = vrot.slane %v3313, 5
      %v3316 = vor.u32 %v3312, %v3315
      %v3317 = vrot.slane %v3316, 4
      %v3319 = vshll.u32 %v3031, 16
      %v3321 = vrot.slane %v3319, 5
      %v3322 = vsel %vm1430, %v3317, %v3321
      %v3323 = vshrl.u32 %v3031, 16
      %v3325 = vrot.slane %v3323, 4
      %v3326 = vor.u32 %v3325, %v3321
      %v3327 = vrot.slane %v3326, 4
      %v3329 = vshll.u32 %v3032, 16
      %v3331 = vrot.slane %v3329, 5
      %v3332 = vsel %vm1430, %v3327, %v3331
      %v3334 = vshrl.u32 %v3033, 16
      %v3336 = vrot.slane %v3334, 4
      %v3337 = vshll.u32 %v3033, 16
      %v3339 = vrot.slane %v3337, 5
      %v3340 = vor.u32 %v3336, %v3339
      %v3341 = vrot.slane %v3340, 4
      %v3343 = vshll.u32 %v3034, 16
      %v3345 = vrot.slane %v3343, 5
      %v3346 = vsel %vm1430, %v3341, %v3345
      %v3347 = vshrl.u32 %v3034, 16
      %v3349 = vrot.slane %v3347, 4
      %v3350 = vor.u32 %v3349, %v3345
      %v3351 = vrot.slane %v3350, 4
      %v3353 = vshll.u32 %v3035, 16
      %v3355 = vrot.slane %v3353, 5
      %v3356 = vsel %vm1430, %v3351, %v3355
      %v3358 = vshrl.u32 %v3036, 16
      %v3360 = vrot.slane %v3358, 4
      %v3361 = vshll.u32 %v3036, 16
      %v3363 = vrot.slane %v3361, 5
      %v3364 = vor.u32 %v3360, %v3363
      %v3365 = vrot.slane %v3364, 4
      %v3367 = vshll.u32 %v3037, 16
      %v3369 = vrot.slane %v3367, 5
      %v3370 = vsel %vm1430, %v3365, %v3369
      %v3371 = vshrl.u32 %v3037, 16
      %v3373 = vrot.slane %v3371, 4
      %v3374 = vor.u32 %v3373, %v3369
      %v3375 = vrot.slane %v3374, 4
      %v3377 = vshll.u32 %v3038, 16
      %v3379 = vrot.slane %v3377, 5
      %v3380 = vsel %vm1430, %v3375, %v3379
      %v3382 = vshrl.u32 %v3039, 16
      %v3384 = vrot.slane %v3382, 4
      %v3385 = vshll.u32 %v3039, 16
      %v3387 = vrot.slane %v3385, 5
      %v3388 = vor.u32 %v3384, %v3387
      %v3389 = vrot.slane %v3388, 4
      %v3391 = vshll.u32 %v3040, 16
      %v3393 = vrot.slane %v3391, 5
      %v3394 = vsel %vm1430, %v3389, %v3393
      %v3395 = vshrl.u32 %v3040, 16
      %v3397 = vrot.slane %v3395, 4
      %v3398 = vor.u32 %v3397, %v3393
      %v3399 = vrot.slane %v3398, 4
      %v3401 = vshll.u32 %v3041, 16
      %v3403 = vrot.slane %v3401, 5
      %v3404 = vsel %vm1430, %v3399, %v3403
      %v3406 = vshrl.u32 %v3042, 16
      %v3408 = vrot.slane %v3406, 4
      %v3409 = vshll.u32 %v3042, 16
      %v3411 = vrot.slane %v3409, 5
      %v3412 = vor.u32 %v3408, %v3411
      %v3413 = vrot.slane %v3412, 4
      %v3415 = vshll.u32 %v3043, 16
      %v3417 = vrot.slane %v3415, 5
      %v3418 = vsel %vm1430, %v3413, %v3417
      %v3419 = vshrl.u32 %v3043, 16
      %v3421 = vrot.slane %v3419, 4
      %v3422 = vor.u32 %v3421, %v3417
      %v3423 = vrot.slane %v3422, 4
      %v3425 = vshll.u32 %v3044, 16
      %v3427 = vrot.slane %v3425, 5
      %v3428 = vsel %vm1430, %v3423, %v3427
      %s3429 = scalar_lea.vmem %s4, 256
      %v3430 = vld [vmem:[%s3429] sm:$0xf]
      %v3431 = vld [vmem:[%s3429 + $0x4] sm:$0xf]
      %v3432 = vld [vmem:[%s3429 + $0x8] sm:$0xf]
      %v3433 = vld [vmem:[%s3429 + $0xc] sm:$0xf]
      %v3434 = vld [vmem:[%s3429 + $0x10] sm:$0xf]
      %v3435 = vld [vmem:[%s3429 + $0x14] sm:$0xf]
      %v3436 = vld [vmem:[%s3429 + $0x18] sm:$0xf]
      %v3437 = vld [vmem:[%s3429 + $0x1c] sm:$0xf]
      %v3438 = vld [vmem:[%s3429 + $0x20] sm:$0xf]
      %v3439 = vld [vmem:[%s3429 + $0x24] sm:$0xf]
      %v3440 = vld [vmem:[%s3429 + $0x28] sm:$0xf]
      %v3441 = vld [vmem:[%s3429 + $0x2c] sm:$0xf]
      %v3442 = vld [vmem:[%s3429 + $0x30] sm:$0xf]
      %v3443 = vld [vmem:[%s3429 + $0x34] sm:$0xf]
      %v3444 = vld [vmem:[%s3429 + $0x38] sm:$0xf]
      %v3445 = vld [vmem:[%s3429 + $0x3c] sm:$0xf]
      %v3446 = vunpack.c.l.b16 %v3058
      %v3447 = vunpack.c.l.b16 %v3068
      %v3448 = vunpack.c.l.b16 %v3082
      %v3449 = vunpack.c.l.b16 %v3092
      %v3450 = vunpack.c.l.b16 %v3106
      %v3451 = vunpack.c.l.b16 %v3116
      %v3452 = vunpack.c.l.b16 %v3130
      %v3453 = vunpack.c.l.b16 %v3140
      %v3454 = vunpack.c.l.b16 %v3154
      %v3455 = vunpack.c.l.b16 %v3164
      %v3456 = vunpack.c.l.b16 %v3178
      %v3457 = vunpack.c.l.b16 %v3188
      %v3458 = vunpack.c.l.b16 %v3202
      %v3459 = vunpack.c.l.b16 %v3212
      %v3460 = vunpack.c.l.b16 %v3226
      %v3461 = vunpack.c.l.b16 %v3236
      %v3462 = vunpack.c.l.b16 %v3250
      %v3463 = vunpack.c.l.b16 %v3260
      %v3464 = vunpack.c.l.b16 %v3274
      %v3465 = vunpack.c.l.b16 %v3284
      %v3466 = vunpack.c.l.b16 %v3298
      %v3467 = vunpack.c.l.b16 %v3308
      %v3468 = vunpack.c.l.b16 %v3322
      %v3469 = vunpack.c.l.b16 %v3332
      %v3470 = vunpack.c.l.b16 %v3346
      %v3471 = vunpack.c.l.b16 %v3356
      %v3472 = vunpack.c.l.b16 %v3370
      %v3473 = vunpack.c.l.b16 %v3380
      %v3474 = vunpack.c.l.b16 %v3394
      %v3475 = vunpack.c.l.b16 %v3404
      %v3476 = vunpack.c.l.b16 %v3418
      %v3477 = vunpack.c.l.b16 %v3428
      %v3478 = vpack.c.b16 %v3447, %v3446
      %v3479 = vpack.c.b16 %v3449, %v3448
      %v3480 = vpack.c.b16 %v3451, %v3450
      %v3481 = vpack.c.b16 %v3453, %v3452
      %v3482 = vpack.c.b16 %v3455, %v3454
      %v3483 = vpack.c.b16 %v3457, %v3456
      %v3484 = vpack.c.b16 %v3459, %v3458
      %v3485 = vpack.c.b16 %v3461, %v3460
      %v3486 = vpack.c.b16 %v3463, %v3462
      %v3487 = vpack.c.b16 %v3465, %v3464
      %v3488 = vpack.c.b16 %v3467, %v3466
      %v3489 = vpack.c.b16 %v3469, %v3468
      %v3490 = vpack.c.b16 %v3471, %v3470
      %v3491 = vpack.c.b16 %v3473, %v3472
      %v3492 = vpack.c.b16 %v3475, %v3474
      %v3493 = vpack.c.b16 %v3477, %v3476
      %v3526 = vunpack.c.l.b16 %v3430
      %v3527 = vunpack.c.l.b16 %v3431
      %v3528 = vunpack.c.l.b16 %v3432
      %v3529 = vunpack.c.l.b16 %v3433
      %v3530 = vunpack.c.l.b16 %v3434
      %v3531 = vunpack.c.l.b16 %v3435
      %v3532 = vunpack.c.l.b16 %v3436
      %v3533 = vunpack.c.l.b16 %v3437
      %v3534 = vunpack.c.l.b16 %v3438
      %v3535 = vunpack.c.l.b16 %v3439
      %v3536 = vunpack.c.l.b16 %v3440
      %v3537 = vunpack.c.l.b16 %v3441
      %v3538 = vunpack.c.l.b16 %v3442
      %v3539 = vunpack.c.l.b16 %v3443
      %v3540 = vunpack.c.l.b16 %v3444
      %v3541 = vunpack.c.l.b16 %v3445
      %v3542 = vpack.c.b16 %v3527, %v3526
      %v3543 = vpack.c.b16 %v3529, %v3528
      %v3544 = vpack.c.b16 %v3531, %v3530
      %v3545 = vpack.c.b16 %v3533, %v3532
      %v3546 = vpack.c.b16 %v3535, %v3534
      %v3547 = vpack.c.b16 %v3537, %v3536
      %v3548 = vpack.c.b16 %v3539, %v3538
      %v3549 = vpack.c.b16 %v3541, %v3540
      %3558 = vmatpush.bf16.msra.mxu0 %v3549
      %3559 = vmatpush.bf16.msra.mxu0 %v3548
      %3560 = vmatpush.bf16.msra.mxu0 %v3547
      %3561 = vmatpush.bf16.msra.mxu0 %v3546
      %3562 = vmatpush.bf16.msra.mxu0 %v3545
      %3563 = vmatpush.bf16.msra.mxu0 %v3544
      %3564 = vmatpush.bf16.msra.mxu0 %v3543
      %3565 = vmatpush.bf16.msra.mxu0 %v3542
      %3566 = vmatmul.bf16.gmra.mxu0 %v3478
      %v3567 = vpop.f32.mrf.mxu0
      %v3568 = vadd.f32 0.0, %v3567
      %v3569 = vpop.f32.mrf.mxu0
      %v3570 = vadd.f32 0.0, %v3569
      %3571 = vmatmul.bf16.gmra.mxu0 %v3479
      %v3572 = vpop.f32.mrf.mxu0
      %v3573 = vadd.f32 0.0, %v3572
      %v3574 = vpop.f32.mrf.mxu0
      %v3575 = vadd.f32 0.0, %v3574
      %3576 = vmatmul.bf16.gmra.mxu0 %v3480
      %v3577 = vpop.f32.mrf.mxu0
      %v3578 = vadd.f32 0.0, %v3577
      %v3579 = vpop.f32.mrf.mxu0
      %v3580 = vadd.f32 0.0, %v3579
      %3581 = vmatmul.bf16.gmra.mxu0 %v3481
      %v3582 = vpop.f32.mrf.mxu0
      %v3583 = vadd.f32 0.0, %v3582
      %v3584 = vpop.f32.mrf.mxu0
      %v3585 = vadd.f32 0.0, %v3584
      %3586 = vmatmul.bf16.gmra.mxu0 %v3482
      %v3587 = vpop.f32.mrf.mxu0
      %v3588 = vadd.f32 0.0, %v3587
      %v3589 = vpop.f32.mrf.mxu0
      %v3590 = vadd.f32 0.0, %v3589
      %3591 = vmatmul.bf16.gmra.mxu0 %v3483
      %v3592 = vpop.f32.mrf.mxu0
      %v3593 = vadd.f32 0.0, %v3592
      %v3594 = vpop.f32.mrf.mxu0
      %v3595 = vadd.f32 0.0, %v3594
      %3596 = vmatmul.bf16.gmra.mxu0 %v3484
      %v3597 = vpop.f32.mrf.mxu0
      %v3598 = vadd.f32 0.0, %v3597
      %v3599 = vpop.f32.mrf.mxu0
      %v3600 = vadd.f32 0.0, %v3599
      %3601 = vmatmul.bf16.gmra.mxu0 %v3485
      %v3602 = vpop.f32.mrf.mxu0
      %v3603 = vadd.f32 0.0, %v3602
      %v3604 = vpop.f32.mrf.mxu0
      %v3605 = vadd.f32 0.0, %v3604
      %3606 = vmatmul.bf16.gmra.mxu0 %v3486
      %v3607 = vpop.f32.mrf.mxu0
      %v3608 = vadd.f32 0.0, %v3607
      %v3609 = vpop.f32.mrf.mxu0
      %v3610 = vadd.f32 0.0, %v3609
      %3611 = vmatmul.bf16.gmra.mxu0 %v3487
      %v3612 = vpop.f32.mrf.mxu0
      %v3613 = vadd.f32 0.0, %v3612
      %v3614 = vpop.f32.mrf.mxu0
      %v3615 = vadd.f32 0.0, %v3614
      %3616 = vmatmul.bf16.gmra.mxu0 %v3488
      %v3617 = vpop.f32.mrf.mxu0
      %v3618 = vadd.f32 0.0, %v3617
      %v3619 = vpop.f32.mrf.mxu0
      %v3620 = vadd.f32 0.0, %v3619
      %3621 = vmatmul.bf16.gmra.mxu0 %v3489
      %v3622 = vpop.f32.mrf.mxu0
      %v3623 = vadd.f32 0.0, %v3622
      %v3624 = vpop.f32.mrf.mxu0
      %v3625 = vadd.f32 0.0, %v3624
      %3626 = vmatmul.bf16.gmra.mxu0 %v3490
      %v3627 = vpop.f32.mrf.mxu0
      %v3628 = vadd.f32 0.0, %v3627
      %v3629 = vpop.f32.mrf.mxu0
      %v3630 = vadd.f32 0.0, %v3629
      %3631 = vmatmul.bf16.gmra.mxu0 %v3491
      %v3632 = vpop.f32.mrf.mxu0
      %v3633 = vadd.f32 0.0, %v3632
      %v3634 = vpop.f32.mrf.mxu0
      %v3635 = vadd.f32 0.0, %v3634
      %3636 = vmatmul.bf16.gmra.mxu0 %v3492
      %v3637 = vpop.f32.mrf.mxu0
      %v3638 = vadd.f32 0.0, %v3637
      %v3639 = vpop.f32.mrf.mxu0
      %v3640 = vadd.f32 0.0, %v3639
      %3641 = vmatmul.bf16.gmra.mxu0 %v3493
      %v3642 = vpop.f32.mrf.mxu0
      %v3643 = vadd.f32 0.0, %v3642
      %v3644 = vpop.f32.mrf.mxu0
      %v3645 = vadd.f32 0.0, %v3644
      %3646 = vdwg.mxu0
      %v3647 = vadd.f32 %v2965, %v3568
      %v3648 = vadd.f32 %v2966, %v3570
      %v3649 = vadd.f32 %v2967, %v3573
      %v3650 = vadd.f32 %v2968, %v3575
      %v3651 = vadd.f32 %v2969, %v3578
      %v3652 = vadd.f32 %v2970, %v3580
      %v3653 = vadd.f32 %v2971, %v3583
      %v3654 = vadd.f32 %v2972, %v3585
      %v3655 = vadd.f32 %v2973, %v3588
      %v3656 = vadd.f32 %v2974, %v3590
      %v3657 = vadd.f32 %v2975, %v3593
      %v3658 = vadd.f32 %v2976, %v3595
      %v3659 = vadd.f32 %v2977, %v3598
      %v3660 = vadd.f32 %v2978, %v3600
      %v3661 = vadd.f32 %v2979, %v3603
      %v3662 = vadd.f32 %v2980, %v3605
      %v3663 = vadd.f32 %v2981, %v3608
      %v3664 = vadd.f32 %v2982, %v3610
      %v3665 = vadd.f32 %v2983, %v3613
      %v3666 = vadd.f32 %v2984, %v3615
      %v3667 = vadd.f32 %v2985, %v3618
      %v3668 = vadd.f32 %v2986, %v3620
      %v3669 = vadd.f32 %v2987, %v3623
      %v3670 = vadd.f32 %v2988, %v3625
      %v3671 = vadd.f32 %v2989, %v3628
      %v3672 = vadd.f32 %v2990, %v3630
      %v3673 = vadd.f32 %v2991, %v3633
      %v3674 = vadd.f32 %v2992, %v3635
      %v3675 = vadd.f32 %v2993, %v3638
      %v3676 = vadd.f32 %v2994, %v3640
      %v3677 = vadd.f32 %v2995, %v3643
      %v3678 = vadd.f32 %v2996, %v3645
      %v3679 = vld [vmem:[%s2682] sm:$0xe]
      %v3680 = vld [vmem:[%s2682 + $0xc] sm:$0xe]
      %v3681 = vld [vmem:[%s2682 + $0x18] sm:$0xe]
      %v3682 = vld [vmem:[%s2682 + $0x24] sm:$0xe]
      %v3683 = vld [vmem:[%s2682 + $0x30] sm:$0xe]
      %v3684 = vld [vmem:[%s2682 + $0x3c] sm:$0xe]
      %v3685 = vld [vmem:[%s2682 + $0x48] sm:$0xe]
      %v3686 = vld [vmem:[%s2682 + $0x54] sm:$0xe]
      %v3687 = vld [vmem:[%s2682 + $0x60] sm:$0xe]
      %v3688 = vld [vmem:[%s2682 + $0x6c] sm:$0xe]
      %v3689 = vld [vmem:[%s2682 + $0x78] sm:$0xe]
      %v3690 = vld [vmem:[%s2682 + $0x84] sm:$0xe]
      %v3691 = vld [vmem:[%s2682 + $0x90] sm:$0xe]
      %v3692 = vld [vmem:[%s2682 + $0x9c] sm:$0xe]
      %v3693 = vld [vmem:[%s2682 + $0xa8] sm:$0xe]
      %v3694 = vld [vmem:[%s2682 + $0xb4] sm:$0xe]
      %v3743 = vrot.slane %v3679, 5
      %v3744 = vrot.slane %v3743, 4
      %v3745 = vrot.slane %v2998, 5
      %v3746 = vsel %vm2316, %v3744, %v3745
      %v3747 = vrot.slane %v3745, 4
      %v3748 = vrot.slane %v2999, 5
      %v3749 = vsel %vm2316, %v3747, %v3748
      %v3750 = vrot.slane %v3680, 5
      %v3751 = vrot.slane %v3750, 4
      %v3752 = vrot.slane %v3001, 5
      %v3753 = vsel %vm2316, %v3751, %v3752
      %v3754 = vrot.slane %v3752, 4
      %v3755 = vrot.slane %v3002, 5
      %v3756 = vsel %vm2316, %v3754, %v3755
      %v3757 = vrot.slane %v3681, 5
      %v3758 = vrot.slane %v3757, 4
      %v3759 = vrot.slane %v3004, 5
      %v3760 = vsel %vm2316, %v3758, %v3759
      %v3761 = vrot.slane %v3759, 4
      %v3762 = vrot.slane %v3005, 5
      %v3763 = vsel %vm2316, %v3761, %v3762
      %v3764 = vrot.slane %v3682, 5
      %v3765 = vrot.slane %v3764, 4
      %v3766 = vrot.slane %v3007, 5
      %v3767 = vsel %vm2316, %v3765, %v3766
      %v3768 = vrot.slane %v3766, 4
      %v3769 = vrot.slane %v3008, 5
      %v3770 = vsel %vm2316, %v3768, %v3769
      %v3771 = vrot.slane %v3683, 5
      %v3772 = vrot.slane %v3771, 4
      %v3773 = vrot.slane %v3010, 5
      %v3774 = vsel %vm2316, %v3772, %v3773
      %v3775 = vrot.slane %v3773, 4
      %v3776 = vrot.slane %v3011, 5
      %v3777 = vsel %vm2316, %v3775, %v3776
      %v3778 = vrot.slane %v3684, 5
      %v3779 = vrot.slane %v3778, 4
      %v3780 = vrot.slane %v3013, 5
      %v3781 = vsel %vm2316, %v3779, %v3780
      %v3782 = vrot.slane %v3780, 4
      %v3783 = vrot.slane %v3014, 5
      %v3784 = vsel %vm2316, %v3782, %v3783
      %v3785 = vrot.slane %v3685, 5
      %v3786 = vrot.slane %v3785, 4
      %v3787 = vrot.slane %v3016, 5
      %v3788 = vsel %vm2316, %v3786, %v3787
      %v3789 = vrot.slane %v3787, 4
      %v3790 = vrot.slane %v3017, 5
      %v3791 = vsel %vm2316, %v3789, %v3790
      %v3792 = vrot.slane %v3686, 5
      %v3793 = vrot.slane %v3792, 4
      %v3794 = vrot.slane %v3019, 5
      %v3795 = vsel %vm2316, %v3793, %v3794
      %v3796 = vrot.slane %v3794, 4
      %v3797 = vrot.slane %v3020, 5
      %v3798 = vsel %vm2316, %v3796, %v3797
      %v3799 = vrot.slane %v3687, 5
      %v3800 = vrot.slane %v3799, 4
      %v3801 = vrot.slane %v3022, 5
      %v3802 = vsel %vm2316, %v3800, %v3801
      %v3803 = vrot.slane %v3801, 4
      %v3804 = vrot.slane %v3023, 5
      %v3805 = vsel %vm2316, %v3803, %v3804
      %v3806 = vrot.slane %v3688, 5
      %v3807 = vrot.slane %v3806, 4
      %v3808 = vrot.slane %v3025, 5
      %v3809 = vsel %vm2316, %v3807, %v3808
      %v3810 = vrot.slane %v3808, 4
      %v3811 = vrot.slane %v3026, 5
      %v3812 = vsel %vm2316, %v3810, %v3811
      %v3813 = vrot.slane %v3689, 5
      %v3814 = vrot.slane %v3813, 4
      %v3815 = vrot.slane %v3028, 5
      %v3816 = vsel %vm2316, %v3814, %v3815
      %v3817 = vrot.slane %v3815, 4
      %v3818 = vrot.slane %v3029, 5
      %v3819 = vsel %vm2316, %v3817, %v3818
      %v3820 = vrot.slane %v3690, 5
      %v3821 = vrot.slane %v3820, 4
      %v3822 = vrot.slane %v3031, 5
      %v3823 = vsel %vm2316, %v3821, %v3822
      %v3824 = vrot.slane %v3822, 4
      %v3825 = vrot.slane %v3032, 5
      %v3826 = vsel %vm2316, %v3824, %v3825
      %v3827 = vrot.slane %v3691, 5
      %v3828 = vrot.slane %v3827, 4
      %v3829 = vrot.slane %v3034, 5
      %v3830 = vsel %vm2316, %v3828, %v3829
      %v3831 = vrot.slane %v3829, 4
      %v3832 = vrot.slane %v3035, 5
      %v3833 = vsel %vm2316, %v3831, %v3832
      %v3834 = vrot.slane %v3692, 5
      %v3835 = vrot.slane %v3834, 4
      %v3836 = vrot.slane %v3037, 5
      %v3837 = vsel %vm2316, %v3835, %v3836
      %v3838 = vrot.slane %v3836, 4
      %v3839 = vrot.slane %v3038, 5
      %v3840 = vsel %vm2316, %v3838, %v3839
      %v3841 = vrot.slane %v3693, 5
      %v3842 = vrot.slane %v3841, 4
      %v3843 = vrot.slane %v3040, 5
      %v3844 = vsel %vm2316, %v3842, %v3843
      %v3845 = vrot.slane %v3843, 4
      %v3846 = vrot.slane %v3041, 5
      %v3847 = vsel %vm2316, %v3845, %v3846
      %v3848 = vrot.slane %v3694, 5
      %v3849 = vrot.slane %v3848, 4
      %v3850 = vrot.slane %v3043, 5
      %v3851 = vsel %vm2316, %v3849, %v3850
      %v3852 = vrot.slane %v3850, 4
      %v3853 = vrot.slane %v3044, 5
      %v3854 = vsel %vm2316, %v3852, %v3853
      %s3855 = scalar_lea.vmem %s4, 320
      %v3856 = vld [vmem:[%s3855] sm:$0xf]
      %v3857 = vld [vmem:[%s3855 + $0x4] sm:$0xf]
      %v3858 = vld [vmem:[%s3855 + $0x8] sm:$0xf]
      %v3859 = vld [vmem:[%s3855 + $0xc] sm:$0xf]
      %v3860 = vld [vmem:[%s3855 + $0x10] sm:$0xf]
      %v3861 = vld [vmem:[%s3855 + $0x14] sm:$0xf]
      %v3862 = vld [vmem:[%s3855 + $0x18] sm:$0xf]
      %v3863 = vld [vmem:[%s3855 + $0x1c] sm:$0xf]
      %v3864 = vld [vmem:[%s3855 + $0x20] sm:$0xf]
      %v3865 = vld [vmem:[%s3855 + $0x24] sm:$0xf]
      %v3866 = vld [vmem:[%s3855 + $0x28] sm:$0xf]
      %v3867 = vld [vmem:[%s3855 + $0x2c] sm:$0xf]
      %v3868 = vld [vmem:[%s3855 + $0x30] sm:$0xf]
      %v3869 = vld [vmem:[%s3855 + $0x34] sm:$0xf]
      %v3870 = vld [vmem:[%s3855 + $0x38] sm:$0xf]
      %v3871 = vld [vmem:[%s3855 + $0x3c] sm:$0xf]
      %v3872 = vunpack.c.l.b16 %v3746
      %v3873 = vunpack.c.l.b16 %v3749
      %v3874 = vunpack.c.l.b16 %v3753
      %v3875 = vunpack.c.l.b16 %v3756
      %v3876 = vunpack.c.l.b16 %v3760
      %v3877 = vunpack.c.l.b16 %v3763
      %v3878 = vunpack.c.l.b16 %v3767
      %v3879 = vunpack.c.l.b16 %v3770
      %v3880 = vunpack.c.l.b16 %v3774
      %v3881 = vunpack.c.l.b16 %v3777
      %v3882 = vunpack.c.l.b16 %v3781
      %v3883 = vunpack.c.l.b16 %v3784
      %v3884 = vunpack.c.l.b16 %v3788
      %v3885 = vunpack.c.l.b16 %v3791
      %v3886 = vunpack.c.l.b16 %v3795
      %v3887 = vunpack.c.l.b16 %v3798
      %v3888 = vunpack.c.l.b16 %v3802
      %v3889 = vunpack.c.l.b16 %v3805
      %v3890 = vunpack.c.l.b16 %v3809
      %v3891 = vunpack.c.l.b16 %v3812
      %v3892 = vunpack.c.l.b16 %v3816
      %v3893 = vunpack.c.l.b16 %v3819
      %v3894 = vunpack.c.l.b16 %v3823
      %v3895 = vunpack.c.l.b16 %v3826
      %v3896 = vunpack.c.l.b16 %v3830
      %v3897 = vunpack.c.l.b16 %v3833
      %v3898 = vunpack.c.l.b16 %v3837
      %v3899 = vunpack.c.l.b16 %v3840
      %v3900 = vunpack.c.l.b16 %v3844
      %v3901 = vunpack.c.l.b16 %v3847
      %v3902 = vunpack.c.l.b16 %v3851
      %v3903 = vunpack.c.l.b16 %v3854
      %v3904 = vpack.c.b16 %v3873, %v3872
      %v3905 = vpack.c.b16 %v3875, %v3874
      %v3906 = vpack.c.b16 %v3877, %v3876
      %v3907 = vpack.c.b16 %v3879, %v3878
      %v3908 = vpack.c.b16 %v3881, %v3880
      %v3909 = vpack.c.b16 %v3883, %v3882
      %v3910 = vpack.c.b16 %v3885, %v3884
      %v3911 = vpack.c.b16 %v3887, %v3886
      %v3912 = vpack.c.b16 %v3889, %v3888
      %v3913 = vpack.c.b16 %v3891, %v3890
      %v3914 = vpack.c.b16 %v3893, %v3892
      %v3915 = vpack.c.b16 %v3895, %v3894
      %v3916 = vpack.c.b16 %v3897, %v3896
      %v3917 = vpack.c.b16 %v3899, %v3898
      %v3918 = vpack.c.b16 %v3901, %v3900
      %v3919 = vpack.c.b16 %v3903, %v3902
      %v3952 = vunpack.c.l.b16 %v3856
      %v3953 = vunpack.c.l.b16 %v3857
      %v3954 = vunpack.c.l.b16 %v3858
      %v3955 = vunpack.c.l.b16 %v3859
      %v3956 = vunpack.c.l.b16 %v3860
      %v3957 = vunpack.c.l.b16 %v3861
      %v3958 = vunpack.c.l.b16 %v3862
      %v3959 = vunpack.c.l.b16 %v3863
      %v3960 = vunpack.c.l.b16 %v3864
      %v3961 = vunpack.c.l.b16 %v3865
      %v3962 = vunpack.c.l.b16 %v3866
      %v3963 = vunpack.c.l.b16 %v3867
      %v3964 = vunpack.c.l.b16 %v3868
      %v3965 = vunpack.c.l.b16 %v3869
      %v3966 = vunpack.c.l.b16 %v3870
      %v3967 = vunpack.c.l.b16 %v3871
      %v3968 = vpack.c.b16 %v3953, %v3952
      %v3969 = vpack.c.b16 %v3955, %v3954
      %v3970 = vpack.c.b16 %v3957, %v3956
      %v3971 = vpack.c.b16 %v3959, %v3958
      %v3972 = vpack.c.b16 %v3961, %v3960
      %v3973 = vpack.c.b16 %v3963, %v3962
      %v3974 = vpack.c.b16 %v3965, %v3964
      %v3975 = vpack.c.b16 %v3967, %v3966
      %3984 = vmatpush.bf16.msra.mxu0 %v3975
      %3985 = vmatpush.bf16.msra.mxu0 %v3974
      %3986 = vmatpush.bf16.msra.mxu0 %v3973
      %3987 = vmatpush.bf16.msra.mxu0 %v3972
      %3988 = vmatpush.bf16.msra.mxu0 %v3971
      %3989 = vmatpush.bf16.msra.mxu0 %v3970
      %3990 = vmatpush.bf16.msra.mxu0 %v3969
      %3991 = vmatpush.bf16.msra.mxu0 %v3968
      %3992 = vmatmul.bf16.gmra.mxu0 %v3904
      %v3993 = vpop.f32.mrf.mxu0
      %v3994 = vadd.f32 0.0, %v3993
      %v3995 = vpop.f32.mrf.mxu0
      %v3996 = vadd.f32 0.0, %v3995
      %3997 = vmatmul.bf16.gmra.mxu0 %v3905
      %v3998 = vpop.f32.mrf.mxu0
      %v3999 = vadd.f32 0.0, %v3998
      %v4000 = vpop.f32.mrf.mxu0
      %v4001 = vadd.f32 0.0, %v4000
      %4002 = vmatmul.bf16.gmra.mxu0 %v3906
      %v4003 = vpop.f32.mrf.mxu0
      %v4004 = vadd.f32 0.0, %v4003
      %v4005 = vpop.f32.mrf.mxu0
      %v4006 = vadd.f32 0.0, %v4005
      %4007 = vmatmul.bf16.gmra.mxu0 %v3907
      %v4008 = vpop.f32.mrf.mxu0
      %v4009 = vadd.f32 0.0, %v4008
      %v4010 = vpop.f32.mrf.mxu0
      %v4011 = vadd.f32 0.0, %v4010
      %4012 = vmatmul.bf16.gmra.mxu0 %v3908
      %v4013 = vpop.f32.mrf.mxu0
      %v4014 = vadd.f32 0.0, %v4013
      %v4015 = vpop.f32.mrf.mxu0
      %v4016 = vadd.f32 0.0, %v4015
      %4017 = vmatmul.bf16.gmra.mxu0 %v3909
      %v4018 = vpop.f32.mrf.mxu0
      %v4019 = vadd.f32 0.0, %v4018
      %v4020 = vpop.f32.mrf.mxu0
      %v4021 = vadd.f32 0.0, %v4020
      %4022 = vmatmul.bf16.gmra.mxu0 %v3910
      %v4023 = vpop.f32.mrf.mxu0
      %v4024 = vadd.f32 0.0, %v4023
      %v4025 = vpop.f32.mrf.mxu0
      %v4026 = vadd.f32 0.0, %v4025
      %4027 = vmatmul.bf16.gmra.mxu0 %v3911
      %v4028 = vpop.f32.mrf.mxu0
      %v4029 = vadd.f32 0.0, %v4028
      %v4030 = vpop.f32.mrf.mxu0
      %v4031 = vadd.f32 0.0, %v4030
      %4032 = vmatmul.bf16.gmra.mxu0 %v3912
      %v4033 = vpop.f32.mrf.mxu0
      %v4034 = vadd.f32 0.0, %v4033
      %v4035 = vpop.f32.mrf.mxu0
      %v4036 = vadd.f32 0.0, %v4035
      %4037 = vmatmul.bf16.gmra.mxu0 %v3913
      %v4038 = vpop.f32.mrf.mxu0
      %v4039 = vadd.f32 0.0, %v4038
      %v4040 = vpop.f32.mrf.mxu0
      %v4041 = vadd.f32 0.0, %v4040
      %4042 = vmatmul.bf16.gmra.mxu0 %v3914
      %v4043 = vpop.f32.mrf.mxu0
      %v4044 = vadd.f32 0.0, %v4043
      %v4045 = vpop.f32.mrf.mxu0
      %v4046 = vadd.f32 0.0, %v4045
      %4047 = vmatmul.bf16.gmra.mxu0 %v3915
      %v4048 = vpop.f32.mrf.mxu0
      %v4049 = vadd.f32 0.0, %v4048
      %v4050 = vpop.f32.mrf.mxu0
      %v4051 = vadd.f32 0.0, %v4050
      %4052 = vmatmul.bf16.gmra.mxu0 %v3916
      %v4053 = vpop.f32.mrf.mxu0
      %v4054 = vadd.f32 0.0, %v4053
      %v4055 = vpop.f32.mrf.mxu0
      %v4056 = vadd.f32 0.0, %v4055
      %4057 = vmatmul.bf16.gmra.mxu0 %v3917
      %v4058 = vpop.f32.mrf.mxu0
      %v4059 = vadd.f32 0.0, %v4058
      %v4060 = vpop.f32.mrf.mxu0
      %v4061 = vadd.f32 0.0, %v4060
      %4062 = vmatmul.bf16.gmra.mxu0 %v3918
      %v4063 = vpop.f32.mrf.mxu0
      %v4064 = vadd.f32 0.0, %v4063
      %v4065 = vpop.f32.mrf.mxu0
      %v4066 = vadd.f32 0.0, %v4065
      %4067 = vmatmul.bf16.gmra.mxu0 %v3919
      %v4068 = vpop.f32.mrf.mxu0
      %v4069 = vadd.f32 0.0, %v4068
      %v4070 = vpop.f32.mrf.mxu0
      %v4071 = vadd.f32 0.0, %v4070
      %4072 = vdwg.mxu0
      %v4073 = vadd.f32 %v3647, %v3994
      %v4074 = vadd.f32 %v3648, %v3996
      %v4075 = vadd.f32 %v3649, %v3999
      %v4076 = vadd.f32 %v3650, %v4001
      %v4077 = vadd.f32 %v3651, %v4004
      %v4078 = vadd.f32 %v3652, %v4006
      %v4079 = vadd.f32 %v3653, %v4009
      %v4080 = vadd.f32 %v3654, %v4011
      %v4081 = vadd.f32 %v3655, %v4014
      %v4082 = vadd.f32 %v3656, %v4016
      %v4083 = vadd.f32 %v3657, %v4019
      %v4084 = vadd.f32 %v3658, %v4021
      %v4085 = vadd.f32 %v3659, %v4024
      %v4086 = vadd.f32 %v3660, %v4026
      %v4087 = vadd.f32 %v3661, %v4029
      %v4088 = vadd.f32 %v3662, %v4031
      %v4089 = vadd.f32 %v3663, %v4034
      %v4090 = vadd.f32 %v3664, %v4036
      %v4091 = vadd.f32 %v3665, %v4039
      %v4092 = vadd.f32 %v3666, %v4041
      %v4093 = vadd.f32 %v3667, %v4044
      %v4094 = vadd.f32 %v3668, %v4046
      %v4095 = vadd.f32 %v3669, %v4049
      %v4096 = vadd.f32 %v3670, %v4051
      %v4097 = vadd.f32 %v3671, %v4054
      %v4098 = vadd.f32 %v3672, %v4056
      %v4099 = vadd.f32 %v3673, %v4059
      %v4100 = vadd.f32 %v3674, %v4061
      %v4101 = vadd.f32 %v3675, %v4064
      %v4102 = vadd.f32 %v3676, %v4066
      %v4103 = vadd.f32 %v3677, %v4069
      %v4104 = vadd.f32 %v3678, %v4071
      %s4105 = sadd.s32 %s1360, 2
      %s4106 = smul.u32 %s4105, 3
      %s4107 = smul.addr %s4106, 4
      %s4108 = scalar_lea.vmem [#allocation2], %s4107
      %v4109 = vld [vmem:[%s4108] sm:$0xf]
      %v4110 = vld [vmem:[%s4108 + $0x4] sm:$0xf]
      %v4111 = vld [vmem:[%s4108 + $0xc] sm:$0xf]
      %v4112 = vld [vmem:[%s4108 + $0x10] sm:$0xf]
      %v4113 = vld [vmem:[%s4108 + $0x18] sm:$0xf]
      %v4114 = vld [vmem:[%s4108 + $0x1c] sm:$0xf]
      %v4115 = vld [vmem:[%s4108 + $0x24] sm:$0xf]
      %v4116 = vld [vmem:[%s4108 + $0x28] sm:$0xf]
      %v4117 = vld [vmem:[%s4108 + $0x30] sm:$0xf]
      %v4118 = vld [vmem:[%s4108 + $0x34] sm:$0xf]
      %v4119 = vld [vmem:[%s4108 + $0x3c] sm:$0xf]
      %v4120 = vld [vmem:[%s4108 + $0x40] sm:$0xf]
      %v4121 = vld [vmem:[%s4108 + $0x48] sm:$0xf]
      %v4122 = vld [vmem:[%s4108 + $0x4c] sm:$0xf]
      %v4123 = vld [vmem:[%s4108 + $0x54] sm:$0xf]
      %v4124 = vld [vmem:[%s4108 + $0x58] sm:$0xf]
      %v4125 = vld [vmem:[%s4108 + $0x60] sm:$0xf]
      %v4126 = vld [vmem:[%s4108 + $0x64] sm:$0xf]
      %v4127 = vld [vmem:[%s4108 + $0x6c] sm:$0xf]
      %v4128 = vld [vmem:[%s4108 + $0x70] sm:$0xf]
      %v4129 = vld [vmem:[%s4108 + $0x78] sm:$0xf]
      %v4130 = vld [vmem:[%s4108 + $0x7c] sm:$0xf]
      %v4131 = vld [vmem:[%s4108 + $0x84] sm:$0xf]
      %v4132 = vld [vmem:[%s4108 + $0x88] sm:$0xf]
      %v4133 = vld [vmem:[%s4108 + $0x90] sm:$0xf]
      %v4134 = vld [vmem:[%s4108 + $0x94] sm:$0xf]
      %v4135 = vld [vmem:[%s4108 + $0x9c] sm:$0xf]
      %v4136 = vld [vmem:[%s4108 + $0xa0] sm:$0xf]
      %v4137 = vld [vmem:[%s4108 + $0xa8] sm:$0xf]
      %v4138 = vld [vmem:[%s4108 + $0xac] sm:$0xf]
      %v4139 = vld [vmem:[%s4108 + $0xb4] sm:$0xf]
      %v4140 = vld [vmem:[%s4108 + $0xb8] sm:$0xf]
      %s4141 = scalar_lea.vmem %s4, 384
      %v4142 = vld [vmem:[%s4141] sm:$0xf]
      %v4143 = vld [vmem:[%s4141 + $0x4] sm:$0xf]
      %v4144 = vld [vmem:[%s4141 + $0x8] sm:$0xf]
      %v4145 = vld [vmem:[%s4141 + $0xc] sm:$0xf]
      %v4146 = vld [vmem:[%s4141 + $0x10] sm:$0xf]
      %v4147 = vld [vmem:[%s4141 + $0x14] sm:$0xf]
      %v4148 = vld [vmem:[%s4141 + $0x18] sm:$0xf]
      %v4149 = vld [vmem:[%s4141 + $0x1c] sm:$0xf]
      %v4150 = vld [vmem:[%s4141 + $0x20] sm:$0xf]
      %v4151 = vld [vmem:[%s4141 + $0x24] sm:$0xf]
      %v4152 = vld [vmem:[%s4141 + $0x28] sm:$0xf]
      %v4153 = vld [vmem:[%s4141 + $0x2c] sm:$0xf]
      %v4154 = vld [vmem:[%s4141 + $0x30] sm:$0xf]
      %v4155 = vld [vmem:[%s4141 + $0x34] sm:$0xf]
      %v4156 = vld [vmem:[%s4141 + $0x38] sm:$0xf]
      %v4157 = vld [vmem:[%s4141 + $0x3c] sm:$0xf]
      %v4190 = vunpack.c.l.b16 %v4109
      %v4191 = vunpack.c.l.b16 %v4110
      %v4192 = vunpack.c.l.b16 %v4111
      %v4193 = vunpack.c.l.b16 %v4112
      %v4194 = vunpack.c.l.b16 %v4113
      %v4195 = vunpack.c.l.b16 %v4114
      %v4196 = vunpack.c.l.b16 %v4115
      %v4197 = vunpack.c.l.b16 %v4116
      %v4198 = vunpack.c.l.b16 %v4117
      %v4199 = vunpack.c.l.b16 %v4118
      %v4200 = vunpack.c.l.b16 %v4119
      %v4201 = vunpack.c.l.b16 %v4120
      %v4202 = vunpack.c.l.b16 %v4121
      %v4203 = vunpack.c.l.b16 %v4122
      %v4204 = vunpack.c.l.b16 %v4123
      %v4205 = vunpack.c.l.b16 %v4124
      %v4206 = vunpack.c.l.b16 %v4125
      %v4207 = vunpack.c.l.b16 %v4126
      %v4208 = vunpack.c.l.b16 %v4127
      %v4209 = vunpack.c.l.b16 %v4128
      %v4210 = vunpack.c.l.b16 %v4129
      %v4211 = vunpack.c.l.b16 %v4130
      %v4212 = vunpack.c.l.b16 %v4131
      %v4213 = vunpack.c.l.b16 %v4132
      %v4214 = vunpack.c.l.b16 %v4133
      %v4215 = vunpack.c.l.b16 %v4134
      %v4216 = vunpack.c.l.b16 %v4135
      %v4217 = vunpack.c.l.b16 %v4136
      %v4218 = vunpack.c.l.b16 %v4137
      %v4219 = vunpack.c.l.b16 %v4138
      %v4220 = vunpack.c.l.b16 %v4139
      %v4221 = vunpack.c.l.b16 %v4140
      %v4222 = vpack.c.b16 %v4191, %v4190
      %v4223 = vpack.c.b16 %v4193, %v4192
      %v4224 = vpack.c.b16 %v4195, %v4194
      %v4225 = vpack.c.b16 %v4197, %v4196
      %v4226 = vpack.c.b16 %v4199, %v4198
      %v4227 = vpack.c.b16 %v4201, %v4200
      %v4228 = vpack.c.b16 %v4203, %v4202
      %v4229 = vpack.c.b16 %v4205, %v4204
      %v4230 = vpack.c.b16 %v4207, %v4206
      %v4231 = vpack.c.b16 %v4209, %v4208
      %v4232 = vpack.c.b16 %v4211, %v4210
      %v4233 = vpack.c.b16 %v4213, %v4212
      %v4234 = vpack.c.b16 %v4215, %v4214
      %v4235 = vpack.c.b16 %v4217, %v4216
      %v4236 = vpack.c.b16 %v4219, %v4218
      %v4237 = vpack.c.b16 %v4221, %v4220
      %v4270 = vunpack.c.l.b16 %v4142
      %v4271 = vunpack.c.l.b16 %v4143
      %v4272 = vunpack.c.l.b16 %v4144
      %v4273 = vunpack.c.l.b16 %v4145
      %v4274 = vunpack.c.l.b16 %v4146
      %v4275 = vunpack.c.l.b16 %v4147
      %v4276 = vunpack.c.l.b16 %v4148
      %v4277 = vunpack.c.l.b16 %v4149
      %v4278 = vunpack.c.l.b16 %v4150
      %v4279 = vunpack.c.l.b16 %v4151
      %v4280 = vunpack.c.l.b16 %v4152
      %v4281 = vunpack.c.l.b16 %v4153
      %v4282 = vunpack.c.l.b16 %v4154
      %v4283 = vunpack.c.l.b16 %v4155
      %v4284 = vunpack.c.l.b16 %v4156
      %v4285 = vunpack.c.l.b16 %v4157
      %v4286 = vpack.c.b16 %v4271, %v4270
      %v4287 = vpack.c.b16 %v4273, %v4272
      %v4288 = vpack.c.b16 %v4275, %v4274
      %v4289 = vpack.c.b16 %v4277, %v4276
      %v4290 = vpack.c.b16 %v4279, %v4278
      %v4291 = vpack.c.b16 %v4281, %v4280
      %v4292 = vpack.c.b16 %v4283, %v4282
      %v4293 = vpack.c.b16 %v4285, %v4284
      %4302 = vmatpush.bf16.msra.mxu0 %v4293
      %4303 = vmatpush.bf16.msra.mxu0 %v4292
      %4304 = vmatpush.bf16.msra.mxu0 %v4291
      %4305 = vmatpush.bf16.msra.mxu0 %v4290
      %4306 = vmatpush.bf16.msra.mxu0 %v4289
      %4307 = vmatpush.bf16.msra.mxu0 %v4288
      %4308 = vmatpush.bf16.msra.mxu0 %v4287
      %4309 = vmatpush.bf16.msra.mxu0 %v4286
      %4310 = vmatmul.bf16.gmra.mxu0 %v4222
      %v4311 = vpop.f32.mrf.mxu0
      %v4312 = vadd.f32 0.0, %v4311
      %v4313 = vpop.f32.mrf.mxu0
      %v4314 = vadd.f32 0.0, %v4313
      %4315 = vmatmul.bf16.gmra.mxu0 %v4223
      %v4316 = vpop.f32.mrf.mxu0
      %v4317 = vadd.f32 0.0, %v4316
      %v4318 = vpop.f32.mrf.mxu0
      %v4319 = vadd.f32 0.0, %v4318
      %4320 = vmatmul.bf16.gmra.mxu0 %v4224
      %v4321 = vpop.f32.mrf.mxu0
      %v4322 = vadd.f32 0.0, %v4321
      %v4323 = vpop.f32.mrf.mxu0
      %v4324 = vadd.f32 0.0, %v4323
      %4325 = vmatmul.bf16.gmra.mxu0 %v4225
      %v4326 = vpop.f32.mrf.mxu0
      %v4327 = vadd.f32 0.0, %v4326
      %v4328 = vpop.f32.mrf.mxu0
      %v4329 = vadd.f32 0.0, %v4328
      %4330 = vmatmul.bf16.gmra.mxu0 %v4226
      %v4331 = vpop.f32.mrf.mxu0
      %v4332 = vadd.f32 0.0, %v4331
      %v4333 = vpop.f32.mrf.mxu0
      %v4334 = vadd.f32 0.0, %v4333
      %4335 = vmatmul.bf16.gmra.mxu0 %v4227
      %v4336 = vpop.f32.mrf.mxu0
      %v4337 = vadd.f32 0.0, %v4336
      %v4338 = vpop.f32.mrf.mxu0
      %v4339 = vadd.f32 0.0, %v4338
      %4340 = vmatmul.bf16.gmra.mxu0 %v4228
      %v4341 = vpop.f32.mrf.mxu0
      %v4342 = vadd.f32 0.0, %v4341
      %v4343 = vpop.f32.mrf.mxu0
      %v4344 = vadd.f32 0.0, %v4343
      %4345 = vmatmul.bf16.gmra.mxu0 %v4229
      %v4346 = vpop.f32.mrf.mxu0
      %v4347 = vadd.f32 0.0, %v4346
      %v4348 = vpop.f32.mrf.mxu0
      %v4349 = vadd.f32 0.0, %v4348
      %4350 = vmatmul.bf16.gmra.mxu0 %v4230
      %v4351 = vpop.f32.mrf.mxu0
      %v4352 = vadd.f32 0.0, %v4351
      %v4353 = vpop.f32.mrf.mxu0
      %v4354 = vadd.f32 0.0, %v4353
      %4355 = vmatmul.bf16.gmra.mxu0 %v4231
      %v4356 = vpop.f32.mrf.mxu0
      %v4357 = vadd.f32 0.0, %v4356
      %v4358 = vpop.f32.mrf.mxu0
      %v4359 = vadd.f32 0.0, %v4358
      %4360 = vmatmul.bf16.gmra.mxu0 %v4232
      %v4361 = vpop.f32.mrf.mxu0
      %v4362 = vadd.f32 0.0, %v4361
      %v4363 = vpop.f32.mrf.mxu0
      %v4364 = vadd.f32 0.0, %v4363
      %4365 = vmatmul.bf16.gmra.mxu0 %v4233
      %v4366 = vpop.f32.mrf.mxu0
      %v4367 = vadd.f32 0.0, %v4366
      %v4368 = vpop.f32.mrf.mxu0
      %v4369 = vadd.f32 0.0, %v4368
      %4370 = vmatmul.bf16.gmra.mxu0 %v4234
      %v4371 = vpop.f32.mrf.mxu0
      %v4372 = vadd.f32 0.0, %v4371
      %v4373 = vpop.f32.mrf.mxu0
      %v4374 = vadd.f32 0.0, %v4373
      %4375 = vmatmul.bf16.gmra.mxu0 %v4235
      %v4376 = vpop.f32.mrf.mxu0
      %v4377 = vadd.f32 0.0, %v4376
      %v4378 = vpop.f32.mrf.mxu0
      %v4379 = vadd.f32 0.0, %v4378
      %4380 = vmatmul.bf16.gmra.mxu0 %v4236
      %v4381 = vpop.f32.mrf.mxu0
      %v4382 = vadd.f32 0.0, %v4381
      %v4383 = vpop.f32.mrf.mxu0
      %v4384 = vadd.f32 0.0, %v4383
      %4385 = vmatmul.bf16.gmra.mxu0 %v4237
      %v4386 = vpop.f32.mrf.mxu0
      %v4387 = vadd.f32 0.0, %v4386
      %v4388 = vpop.f32.mrf.mxu0
      %v4389 = vadd.f32 0.0, %v4388
      %4390 = vdwg.mxu0
      %v4391 = vadd.f32 %v4073, %v4312
      %v4392 = vadd.f32 %v4074, %v4314
      %v4393 = vadd.f32 %v4075, %v4317
      %v4394 = vadd.f32 %v4076, %v4319
      %v4395 = vadd.f32 %v4077, %v4322
      %v4396 = vadd.f32 %v4078, %v4324
      %v4397 = vadd.f32 %v4079, %v4327
      %v4398 = vadd.f32 %v4080, %v4329
      %v4399 = vadd.f32 %v4081, %v4332
      %v4400 = vadd.f32 %v4082, %v4334
      %v4401 = vadd.f32 %v4083, %v4337
      %v4402 = vadd.f32 %v4084, %v4339
      %v4403 = vadd.f32 %v4085, %v4342
      %v4404 = vadd.f32 %v4086, %v4344
      %v4405 = vadd.f32 %v4087, %v4347
      %v4406 = vadd.f32 %v4088, %v4349
      %v4407 = vadd.f32 %v4089, %v4352
      %v4408 = vadd.f32 %v4090, %v4354
      %v4409 = vadd.f32 %v4091, %v4357
      %v4410 = vadd.f32 %v4092, %v4359
      %v4411 = vadd.f32 %v4093, %v4362
      %v4412 = vadd.f32 %v4094, %v4364
      %v4413 = vadd.f32 %v4095, %v4367
      %v4414 = vadd.f32 %v4096, %v4369
      %v4415 = vadd.f32 %v4097, %v4372
      %v4416 = vadd.f32 %v4098, %v4374
      %v4417 = vadd.f32 %v4099, %v4377
      %v4418 = vadd.f32 %v4100, %v4379
      %v4419 = vadd.f32 %v4101, %v4382
      %v4420 = vadd.f32 %v4102, %v4384
      %v4421 = vadd.f32 %v4103, %v4387
      %v4422 = vadd.f32 %v4104, %v4389
      %v4423 = vld [vmem:[%s4108] sm:$0xf]
      %v4424 = vld [vmem:[%s4108 + $0x4] sm:$0xf]
      %v4425 = vld [vmem:[%s4108 + $0x8] sm:$0x1]
      %v4426 = vld [vmem:[%s4108 + $0xc] sm:$0xf]
      %v4427 = vld [vmem:[%s4108 + $0x10] sm:$0xf]
      %v4428 = vld [vmem:[%s4108 + $0x14] sm:$0x1]
      %v4429 = vld [vmem:[%s4108 + $0x18] sm:$0xf]
      %v4430 = vld [vmem:[%s4108 + $0x1c] sm:$0xf]
      %v4431 = vld [vmem:[%s4108 + $0x20] sm:$0x1]
      %v4432 = vld [vmem:[%s4108 + $0x24] sm:$0xf]
      %v4433 = vld [vmem:[%s4108 + $0x28] sm:$0xf]
      %v4434 = vld [vmem:[%s4108 + $0x2c] sm:$0x1]
      %v4435 = vld [vmem:[%s4108 + $0x30] sm:$0xf]
      %v4436 = vld [vmem:[%s4108 + $0x34] sm:$0xf]
      %v4437 = vld [vmem:[%s4108 + $0x38] sm:$0x1]
      %v4438 = vld [vmem:[%s4108 + $0x3c] sm:$0xf]
      %v4439 = vld [vmem:[%s4108 + $0x40] sm:$0xf]
      %v4440 = vld [vmem:[%s4108 + $0x44] sm:$0x1]
      %v4441 = vld [vmem:[%s4108 + $0x48] sm:$0xf]
      %v4442 = vld [vmem:[%s4108 + $0x4c] sm:$0xf]
      %v4443 = vld [vmem:[%s4108 + $0x50] sm:$0x1]
      %v4444 = vld [vmem:[%s4108 + $0x54] sm:$0xf]
      %v4445 = vld [vmem:[%s4108 + $0x58] sm:$0xf]
      %v4446 = vld [vmem:[%s4108 + $0x5c] sm:$0x1]
      %v4447 = vld [vmem:[%s4108 + $0x60] sm:$0xf]
      %v4448 = vld [vmem:[%s4108 + $0x64] sm:$0xf]
      %v4449 = vld [vmem:[%s4108 + $0x68] sm:$0x1]
      %v4450 = vld [vmem:[%s4108 + $0x6c] sm:$0xf]
      %v4451 = vld [vmem:[%s4108 + $0x70] sm:$0xf]
      %v4452 = vld [vmem:[%s4108 + $0x74] sm:$0x1]
      %v4453 = vld [vmem:[%s4108 + $0x78] sm:$0xf]
      %v4454 = vld [vmem:[%s4108 + $0x7c] sm:$0xf]
      %v4455 = vld [vmem:[%s4108 + $0x80] sm:$0x1]
      %v4456 = vld [vmem:[%s4108 + $0x84] sm:$0xf]
      %v4457 = vld [vmem:[%s4108 + $0x88] sm:$0xf]
      %v4458 = vld [vmem:[%s4108 + $0x8c] sm:$0x1]
      %v4459 = vld [vmem:[%s4108 + $0x90] sm:$0xf]
      %v4460 = vld [vmem:[%s4108 + $0x94] sm:$0xf]
      %v4461 = vld [vmem:[%s4108 + $0x98] sm:$0x1]
      %v4462 = vld [vmem:[%s4108 + $0x9c] sm:$0xf]
      %v4463 = vld [vmem:[%s4108 + $0xa0] sm:$0xf]
      %v4464 = vld [vmem:[%s4108 + $0xa4] sm:$0x1]
      %v4465 = vld [vmem:[%s4108 + $0xa8] sm:$0xf]
      %v4466 = vld [vmem:[%s4108 + $0xac] sm:$0xf]
      %v4467 = vld [vmem:[%s4108 + $0xb0] sm:$0x1]
      %v4468 = vld [vmem:[%s4108 + $0xb4] sm:$0xf]
      %v4469 = vld [vmem:[%s4108 + $0xb8] sm:$0xf]
      %v4470 = vld [vmem:[%s4108 + $0xbc] sm:$0x1]
      %v4472 = vshrl.u32 %v4423, 16
      %v4474 = vrot.slane %v4472, 4
      %v4475 = vshll.u32 %v4423, 16
      %v4477 = vrot.slane %v4475, 5
      %v4478 = vor.u32 %v4474, %v4477
      %v4479 = vrot.slane %v4478, 4
      %v4481 = vshll.u32 %v4424, 16
      %v4483 = vrot.slane %v4481, 5
      %v4484 = vsel %vm1430, %v4479, %v4483
      %v4485 = vshrl.u32 %v4424, 16
      %v4487 = vrot.slane %v4485, 4
      %v4488 = vor.u32 %v4487, %v4483
      %v4489 = vrot.slane %v4488, 4
      %v4491 = vshll.u32 %v4425, 16
      %v4493 = vrot.slane %v4491, 5
      %v4494 = vsel %vm1430, %v4489, %v4493
      %v4496 = vshrl.u32 %v4426, 16
      %v4498 = vrot.slane %v4496, 4
      %v4499 = vshll.u32 %v4426, 16
      %v4501 = vrot.slane %v4499, 5
      %v4502 = vor.u32 %v4498, %v4501
      %v4503 = vrot.slane %v4502, 4
      %v4505 = vshll.u32 %v4427, 16
      %v4507 = vrot.slane %v4505, 5
      %v4508 = vsel %vm1430, %v4503, %v4507
      %v4509 = vshrl.u32 %v4427, 16
      %v4511 = vrot.slane %v4509, 4
      %v4512 = vor.u32 %v4511, %v4507
      %v4513 = vrot.slane %v4512, 4
      %v4515 = vshll.u32 %v4428, 16
      %v4517 = vrot.slane %v4515, 5
      %v4518 = vsel %vm1430, %v4513, %v4517
      %v4520 = vshrl.u32 %v4429, 16
      %v4522 = vrot.slane %v4520, 4
      %v4523 = vshll.u32 %v4429, 16
      %v4525 = vrot.slane %v4523, 5
      %v4526 = vor.u32 %v4522, %v4525
      %v4527 = vrot.slane %v4526, 4
      %v4529 = vshll.u32 %v4430, 16
      %v4531 = vrot.slane %v4529, 5
      %v4532 = vsel %vm1430, %v4527, %v4531
      %v4533 = vshrl.u32 %v4430, 16
      %v4535 = vrot.slane %v4533, 4
      %v4536 = vor.u32 %v4535, %v4531
      %v4537 = vrot.slane %v4536, 4
      %v4539 = vshll.u32 %v4431, 16
      %v4541 = vrot.slane %v4539, 5
      %v4542 = vsel %vm1430, %v4537, %v4541
      %v4544 = vshrl.u32 %v4432, 16
      %v4546 = vrot.slane %v4544, 4
      %v4547 = vshll.u32 %v4432, 16
      %v4549 = vrot.slane %v4547, 5
      %v4550 = vor.u32 %v4546, %v4549
      %v4551 = vrot.slane %v4550, 4
      %v4553 = vshll.u32 %v4433, 16
      %v4555 = vrot.slane %v4553, 5
      %v4556 = vsel %vm1430, %v4551, %v4555
      %v4557 = vshrl.u32 %v4433, 16
      %v4559 = vrot.slane %v4557, 4
      %v4560 = vor.u32 %v4559, %v4555
      %v4561 = vrot.slane %v4560, 4
      %v4563 = vshll.u32 %v4434, 16
      %v4565 = vrot.slane %v4563, 5
      %v4566 = vsel %vm1430, %v4561, %v4565
      %v4568 = vshrl.u32 %v4435, 16
      %v4570 = vrot.slane %v4568, 4
      %v4571 = vshll.u32 %v4435, 16
      %v4573 = vrot.slane %v4571, 5
      %v4574 = vor.u32 %v4570, %v4573
      %v4575 = vrot.slane %v4574, 4
      %v4577 = vshll.u32 %v4436, 16
      %v4579 = vrot.slane %v4577, 5
      %v4580 = vsel %vm1430, %v4575, %v4579
      %v4581 = vshrl.u32 %v4436, 16
      %v4583 = vrot.slane %v4581, 4
      %v4584 = vor.u32 %v4583, %v4579
      %v4585 = vrot.slane %v4584, 4
      %v4587 = vshll.u32 %v4437, 16
      %v4589 = vrot.slane %v4587, 5
      %v4590 = vsel %vm1430, %v4585, %v4589
      %v4592 = vshrl.u32 %v4438, 16
      %v4594 = vrot.slane %v4592, 4
      %v4595 = vshll.u32 %v4438, 16
      %v4597 = vrot.slane %v4595, 5
      %v4598 = vor.u32 %v4594, %v4597
      %v4599 = vrot.slane %v4598, 4
      %v4601 = vshll.u32 %v4439, 16
      %v4603 = vrot.slane %v4601, 5
      %v4604 = vsel %vm1430, %v4599, %v4603
      %v4605 = vshrl.u32 %v4439, 16
      %v4607 = vrot.slane %v4605, 4
      %v4608 = vor.u32 %v4607, %v4603
      %v4609 = vrot.slane %v4608, 4
      %v4611 = vshll.u32 %v4440, 16
      %v4613 = vrot.slane %v4611, 5
      %v4614 = vsel %vm1430, %v4609, %v4613
      %v4616 = vshrl.u32 %v4441, 16
      %v4618 = vrot.slane %v4616, 4
      %v4619 = vshll.u32 %v4441, 16
      %v4621 = vrot.slane %v4619, 5
      %v4622 = vor.u32 %v4618, %v4621
      %v4623 = vrot.slane %v4622, 4
      %v4625 = vshll.u32 %v4442, 16
      %v4627 = vrot.slane %v4625, 5
      %v4628 = vsel %vm1430, %v4623, %v4627
      %v4629 = vshrl.u32 %v4442, 16
      %v4631 = vrot.slane %v4629, 4
      %v4632 = vor.u32 %v4631, %v4627
      %v4633 = vrot.slane %v4632, 4
      %v4635 = vshll.u32 %v4443, 16
      %v4637 = vrot.slane %v4635, 5
      %v4638 = vsel %vm1430, %v4633, %v4637
      %v4640 = vshrl.u32 %v4444, 16
      %v4642 = vrot.slane %v4640, 4
      %v4643 = vshll.u32 %v4444, 16
      %v4645 = vrot.slane %v4643, 5
      %v4646 = vor.u32 %v4642, %v4645
      %v4647 = vrot.slane %v4646, 4
      %v4649 = vshll.u32 %v4445, 16
      %v4651 = vrot.slane %v4649, 5
      %v4652 = vsel %vm1430, %v4647, %v4651
      %v4653 = vshrl.u32 %v4445, 16
      %v4655 = vrot.slane %v4653, 4
      %v4656 = vor.u32 %v4655, %v4651
      %v4657 = vrot.slane %v4656, 4
      %v4659 = vshll.u32 %v4446, 16
      %v4661 = vrot.slane %v4659, 5
      %v4662 = vsel %vm1430, %v4657, %v4661
      %v4664 = vshrl.u32 %v4447, 16
      %v4666 = vrot.slane %v4664, 4
      %v4667 = vshll.u32 %v4447, 16
      %v4669 = vrot.slane %v4667, 5
      %v4670 = vor.u32 %v4666, %v4669
      %v4671 = vrot.slane %v4670, 4
      %v4673 = vshll.u32 %v4448, 16
      %v4675 = vrot.slane %v4673, 5
      %v4676 = vsel %vm1430, %v4671, %v4675
      %v4677 = vshrl.u32 %v4448, 16
      %v4679 = vrot.slane %v4677, 4
      %v4680 = vor.u32 %v4679, %v4675
      %v4681 = vrot.slane %v4680, 4
      %v4683 = vshll.u32 %v4449, 16
      %v4685 = vrot.slane %v4683, 5
      %v4686 = vsel %vm1430, %v4681, %v4685
      %v4688 = vshrl.u32 %v4450, 16
      %v4690 = vrot.slane %v4688, 4
      %v4691 = vshll.u32 %v4450, 16
      %v4693 = vrot.slane %v4691, 5
      %v4694 = vor.u32 %v4690, %v4693
      %v4695 = vrot.slane %v4694, 4
      %v4697 = vshll.u32 %v4451, 16
      %v4699 = vrot.slane %v4697, 5
      %v4700 = vsel %vm1430, %v4695, %v4699
      %v4701 = vshrl.u32 %v4451, 16
      %v4703 = vrot.slane %v4701, 4
      %v4704 = vor.u32 %v4703, %v4699
      %v4705 = vrot.slane %v4704, 4
      %v4707 = vshll.u32 %v4452, 16
      %v4709 = vrot.slane %v4707, 5
      %v4710 = vsel %vm1430, %v4705, %v4709
      %v4712 = vshrl.u32 %v4453, 16
      %v4714 = vrot.slane %v4712, 4
      %v4715 = vshll.u32 %v4453, 16
      %v4717 = vrot.slane %v4715, 5
      %v4718 = vor.u32 %v4714, %v4717
      %v4719 = vrot.slane %v4718, 4
      %v4721 = vshll.u32 %v4454, 16
      %v4723 = vrot.slane %v4721, 5
      %v4724 = vsel %vm1430, %v4719, %v4723
      %v4725 = vshrl.u32 %v4454, 16
      %v4727 = vrot.slane %v4725, 4
      %v4728 = vor.u32 %v4727, %v4723
      %v4729 = vrot.slane %v4728, 4
      %v4731 = vshll.u32 %v4455, 16
      %v4733 = vrot.slane %v4731, 5
      %v4734 = vsel %vm1430, %v4729, %v4733
      %v4736 = vshrl.u32 %v4456, 16
      %v4738 = vrot.slane %v4736, 4
      %v4739 = vshll.u32 %v4456, 16
      %v4741 = vrot.slane %v4739, 5
      %v4742 = vor.u32 %v4738, %v4741
      %v4743 = vrot.slane %v4742, 4
      %v4745 = vshll.u32 %v4457, 16
      %v4747 = vrot.slane %v4745, 5
      %v4748 = vsel %vm1430, %v4743, %v4747
      %v4749 = vshrl.u32 %v4457, 16
      %v4751 = vrot.slane %v4749, 4
      %v4752 = vor.u32 %v4751, %v4747
      %v4753 = vrot.slane %v4752, 4
      %v4755 = vshll.u32 %v4458, 16
      %v4757 = vrot.slane %v4755, 5
      %v4758 = vsel %vm1430, %v4753, %v4757
      %v4760 = vshrl.u32 %v4459, 16
      %v4762 = vrot.slane %v4760, 4
      %v4763 = vshll.u32 %v4459, 16
      %v4765 = vrot.slane %v4763, 5
      %v4766 = vor.u32 %v4762, %v4765
      %v4767 = vrot.slane %v4766, 4
      %v4769 = vshll.u32 %v4460, 16
      %v4771 = vrot.slane %v4769, 5
      %v4772 = vsel %vm1430, %v4767, %v4771
      %v4773 = vshrl.u32 %v4460, 16
      %v4775 = vrot.slane %v4773, 4
      %v4776 = vor.u32 %v4775, %v4771
      %v4777 = vrot.slane %v4776, 4
      %v4779 = vshll.u32 %v4461, 16
      %v4781 = vrot.slane %v4779, 5
      %v4782 = vsel %vm1430, %v4777, %v4781
      %v4784 = vshrl.u32 %v4462, 16
      %v4786 = vrot.slane %v4784, 4
      %v4787 = vshll.u32 %v4462, 16
      %v4789 = vrot.slane %v4787, 5
      %v4790 = vor.u32 %v4786, %v4789
      %v4791 = vrot.slane %v4790, 4
      %v4793 = vshll.u32 %v4463, 16
      %v4795 = vrot.slane %v4793, 5
      %v4796 = vsel %vm1430, %v4791, %v4795
      %v4797 = vshrl.u32 %v4463, 16
      %v4799 = vrot.slane %v4797, 4
      %v4800 = vor.u32 %v4799, %v4795
      %v4801 = vrot.slane %v4800, 4
      %v4803 = vshll.u32 %v4464, 16
      %v4805 = vrot.slane %v4803, 5
      %v4806 = vsel %vm1430, %v4801, %v4805
      %v4808 = vshrl.u32 %v4465, 16
      %v4810 = vrot.slane %v4808, 4
      %v4811 = vshll.u32 %v4465, 16
      %v4813 = vrot.slane %v4811, 5
      %v4814 = vor.u32 %v4810, %v4813
      %v4815 = vrot.slane %v4814, 4
      %v4817 = vshll.u32 %v4466, 16
      %v4819 = vrot.slane %v4817, 5
      %v4820 = vsel %vm1430, %v4815, %v4819
      %v4821 = vshrl.u32 %v4466, 16
      %v4823 = vrot.slane %v4821, 4
      %v4824 = vor.u32 %v4823, %v4819
      %v4825 = vrot.slane %v4824, 4
      %v4827 = vshll.u32 %v4467, 16
      %v4829 = vrot.slane %v4827, 5
      %v4830 = vsel %vm1430, %v4825, %v4829
      %v4832 = vshrl.u32 %v4468, 16
      %v4834 = vrot.slane %v4832, 4
      %v4835 = vshll.u32 %v4468, 16
      %v4837 = vrot.slane %v4835, 5
      %v4838 = vor.u32 %v4834, %v4837
      %v4839 = vrot.slane %v4838, 4
      %v4841 = vshll.u32 %v4469, 16
      %v4843 = vrot.slane %v4841, 5
      %v4844 = vsel %vm1430, %v4839, %v4843
      %v4845 = vshrl.u32 %v4469, 16
      %v4847 = vrot.slane %v4845, 4
      %v4848 = vor.u32 %v4847, %v4843
      %v4849 = vrot.slane %v4848, 4
      %v4851 = vshll.u32 %v4470, 16
      %v4853 = vrot.slane %v4851, 5
      %v4854 = vsel %vm1430, %v4849, %v4853
      %s4855 = scalar_lea.vmem %s4, 448
      %v4856 = vld [vmem:[%s4855] sm:$0xf]
      %v4857 = vld [vmem:[%s4855 + $0x4] sm:$0xf]
      %v4858 = vld [vmem:[%s4855 + $0x8] sm:$0xf]
      %v4859 = vld [vmem:[%s4855 + $0xc] sm:$0xf]
      %v4860 = vld [vmem:[%s4855 + $0x10] sm:$0xf]
      %v4861 = vld [vmem:[%s4855 + $0x14] sm:$0xf]
      %v4862 = vld [vmem:[%s4855 + $0x18] sm:$0xf]
      %v4863 = vld [vmem:[%s4855 + $0x1c] sm:$0xf]
      %v4864 = vld [vmem:[%s4855 + $0x20] sm:$0xf]
      %v4865 = vld [vmem:[%s4855 + $0x24] sm:$0xf]
      %v4866 = vld [vmem:[%s4855 + $0x28] sm:$0xf]
      %v4867 = vld [vmem:[%s4855 + $0x2c] sm:$0xf]
      %v4868 = vld [vmem:[%s4855 + $0x30] sm:$0xf]
      %v4869 = vld [vmem:[%s4855 + $0x34] sm:$0xf]
      %v4870 = vld [vmem:[%s4855 + $0x38] sm:$0xf]
      %v4871 = vld [vmem:[%s4855 + $0x3c] sm:$0xf]
      %v4872 = vunpack.c.l.b16 %v4484
      %v4873 = vunpack.c.l.b16 %v4494
      %v4874 = vunpack.c.l.b16 %v4508
      %v4875 = vunpack.c.l.b16 %v4518
      %v4876 = vunpack.c.l.b16 %v4532
      %v4877 = vunpack.c.l.b16 %v4542
      %v4878 = vunpack.c.l.b16 %v4556
      %v4879 = vunpack.c.l.b16 %v4566
      %v4880 = vunpack.c.l.b16 %v4580
      %v4881 = vunpack.c.l.b16 %v4590
      %v4882 = vunpack.c.l.b16 %v4604
      %v4883 = vunpack.c.l.b16 %v4614
      %v4884 = vunpack.c.l.b16 %v4628
      %v4885 = vunpack.c.l.b16 %v4638
      %v4886 = vunpack.c.l.b16 %v4652
      %v4887 = vunpack.c.l.b16 %v4662
      %v4888 = vunpack.c.l.b16 %v4676
      %v4889 = vunpack.c.l.b16 %v4686
      %v4890 = vunpack.c.l.b16 %v4700
      %v4891 = vunpack.c.l.b16 %v4710
      %v4892 = vunpack.c.l.b16 %v4724
      %v4893 = vunpack.c.l.b16 %v4734
      %v4894 = vunpack.c.l.b16 %v4748
      %v4895 = vunpack.c.l.b16 %v4758
      %v4896 = vunpack.c.l.b16 %v4772
      %v4897 = vunpack.c.l.b16 %v4782
      %v4898 = vunpack.c.l.b16 %v4796
      %v4899 = vunpack.c.l.b16 %v4806
      %v4900 = vunpack.c.l.b16 %v4820
      %v4901 = vunpack.c.l.b16 %v4830
      %v4902 = vunpack.c.l.b16 %v4844
      %v4903 = vunpack.c.l.b16 %v4854
      %v4904 = vpack.c.b16 %v4873, %v4872
      %v4905 = vpack.c.b16 %v4875, %v4874
      %v4906 = vpack.c.b16 %v4877, %v4876
      %v4907 = vpack.c.b16 %v4879, %v4878
      %v4908 = vpack.c.b16 %v4881, %v4880
      %v4909 = vpack.c.b16 %v4883, %v4882
      %v4910 = vpack.c.b16 %v4885, %v4884
      %v4911 = vpack.c.b16 %v4887, %v4886
      %v4912 = vpack.c.b16 %v4889, %v4888
      %v4913 = vpack.c.b16 %v4891, %v4890
      %v4914 = vpack.c.b16 %v4893, %v4892
      %v4915 = vpack.c.b16 %v4895, %v4894
      %v4916 = vpack.c.b16 %v4897, %v4896
      %v4917 = vpack.c.b16 %v4899, %v4898
      %v4918 = vpack.c.b16 %v4901, %v4900
      %v4919 = vpack.c.b16 %v4903, %v4902
      %v4952 = vunpack.c.l.b16 %v4856
      %v4953 = vunpack.c.l.b16 %v4857
      %v4954 = vunpack.c.l.b16 %v4858
      %v4955 = vunpack.c.l.b16 %v4859
      %v4956 = vunpack.c.l.b16 %v4860
      %v4957 = vunpack.c.l.b16 %v4861
      %v4958 = vunpack.c.l.b16 %v4862
      %v4959 = vunpack.c.l.b16 %v4863
      %v4960 = vunpack.c.l.b16 %v4864
      %v4961 = vunpack.c.l.b16 %v4865
      %v4962 = vunpack.c.l.b16 %v4866
      %v4963 = vunpack.c.l.b16 %v4867
      %v4964 = vunpack.c.l.b16 %v4868
      %v4965 = vunpack.c.l.b16 %v4869
      %v4966 = vunpack.c.l.b16 %v4870
      %v4967 = vunpack.c.l.b16 %v4871
      %v4968 = vpack.c.b16 %v4953, %v4952
      %v4969 = vpack.c.b16 %v4955, %v4954
      %v4970 = vpack.c.b16 %v4957, %v4956
      %v4971 = vpack.c.b16 %v4959, %v4958
      %v4972 = vpack.c.b16 %v4961, %v4960
      %v4973 = vpack.c.b16 %v4963, %v4962
      %v4974 = vpack.c.b16 %v4965, %v4964
      %v4975 = vpack.c.b16 %v4967, %v4966
      %4984 = vmatpush.bf16.msra.mxu0 %v4975
      %4985 = vmatpush.bf16.msra.mxu0 %v4974
      %4986 = vmatpush.bf16.msra.mxu0 %v4973
      %4987 = vmatpush.bf16.msra.mxu0 %v4972
      %4988 = vmatpush.bf16.msra.mxu0 %v4971
      %4989 = vmatpush.bf16.msra.mxu0 %v4970
      %4990 = vmatpush.bf16.msra.mxu0 %v4969
      %4991 = vmatpush.bf16.msra.mxu0 %v4968
      %4992 = vmatmul.bf16.gmra.mxu0 %v4904
      %v4993 = vpop.f32.mrf.mxu0
      %v4994 = vadd.f32 0.0, %v4993
      %v4995 = vpop.f32.mrf.mxu0
      %v4996 = vadd.f32 0.0, %v4995
      %4997 = vmatmul.bf16.gmra.mxu0 %v4905
      %v4998 = vpop.f32.mrf.mxu0
      %v4999 = vadd.f32 0.0, %v4998
      %v5000 = vpop.f32.mrf.mxu0
      %v5001 = vadd.f32 0.0, %v5000
      %5002 = vmatmul.bf16.gmra.mxu0 %v4906
      %v5003 = vpop.f32.mrf.mxu0
      %v5004 = vadd.f32 0.0, %v5003
      %v5005 = vpop.f32.mrf.mxu0
      %v5006 = vadd.f32 0.0, %v5005
      %5007 = vmatmul.bf16.gmra.mxu0 %v4907
      %v5008 = vpop.f32.mrf.mxu0
      %v5009 = vadd.f32 0.0, %v5008
      %v5010 = vpop.f32.mrf.mxu0
      %v5011 = vadd.f32 0.0, %v5010
      %5012 = vmatmul.bf16.gmra.mxu0 %v4908
      %v5013 = vpop.f32.mrf.mxu0
      %v5014 = vadd.f32 0.0, %v5013
      %v5015 = vpop.f32.mrf.mxu0
      %v5016 = vadd.f32 0.0, %v5015
      %5017 = vmatmul.bf16.gmra.mxu0 %v4909
      %v5018 = vpop.f32.mrf.mxu0
      %v5019 = vadd.f32 0.0, %v5018
      %v5020 = vpop.f32.mrf.mxu0
      %v5021 = vadd.f32 0.0, %v5020
      %5022 = vmatmul.bf16.gmra.mxu0 %v4910
      %v5023 = vpop.f32.mrf.mxu0
      %v5024 = vadd.f32 0.0, %v5023
      %v5025 = vpop.f32.mrf.mxu0
      %v5026 = vadd.f32 0.0, %v5025
      %5027 = vmatmul.bf16.gmra.mxu0 %v4911
      %v5028 = vpop.f32.mrf.mxu0
      %v5029 = vadd.f32 0.0, %v5028
      %v5030 = vpop.f32.mrf.mxu0
      %v5031 = vadd.f32 0.0, %v5030
      %5032 = vmatmul.bf16.gmra.mxu0 %v4912
      %v5033 = vpop.f32.mrf.mxu0
      %v5034 = vadd.f32 0.0, %v5033
      %v5035 = vpop.f32.mrf.mxu0
      %v5036 = vadd.f32 0.0, %v5035
      %5037 = vmatmul.bf16.gmra.mxu0 %v4913
      %v5038 = vpop.f32.mrf.mxu0
      %v5039 = vadd.f32 0.0, %v5038
      %v5040 = vpop.f32.mrf.mxu0
      %v5041 = vadd.f32 0.0, %v5040
      %5042 = vmatmul.bf16.gmra.mxu0 %v4914
      %v5043 = vpop.f32.mrf.mxu0
      %v5044 = vadd.f32 0.0, %v5043
      %v5045 = vpop.f32.mrf.mxu0
      %v5046 = vadd.f32 0.0, %v5045
      %5047 = vmatmul.bf16.gmra.mxu0 %v4915
      %v5048 = vpop.f32.mrf.mxu0
      %v5049 = vadd.f32 0.0, %v5048
      %v5050 = vpop.f32.mrf.mxu0
      %v5051 = vadd.f32 0.0, %v5050
      %5052 = vmatmul.bf16.gmra.mxu0 %v4916
      %v5053 = vpop.f32.mrf.mxu0
      %v5054 = vadd.f32 0.0, %v5053
      %v5055 = vpop.f32.mrf.mxu0
      %v5056 = vadd.f32 0.0, %v5055
      %5057 = vmatmul.bf16.gmra.mxu0 %v4917
      %v5058 = vpop.f32.mrf.mxu0
      %v5059 = vadd.f32 0.0, %v5058
      %v5060 = vpop.f32.mrf.mxu0
      %v5061 = vadd.f32 0.0, %v5060
      %5062 = vmatmul.bf16.gmra.mxu0 %v4918
      %v5063 = vpop.f32.mrf.mxu0
      %v5064 = vadd.f32 0.0, %v5063
      %v5065 = vpop.f32.mrf.mxu0
      %v5066 = vadd.f32 0.0, %v5065
      %5067 = vmatmul.bf16.gmra.mxu0 %v4919
      %v5068 = vpop.f32.mrf.mxu0
      %v5069 = vadd.f32 0.0, %v5068
      %v5070 = vpop.f32.mrf.mxu0
      %v5071 = vadd.f32 0.0, %v5070
      %5072 = vdwg.mxu0
      %v5073 = vadd.f32 %v4391, %v4994
      %v5074 = vadd.f32 %v4392, %v4996
      %v5075 = vadd.f32 %v4393, %v4999
      %v5076 = vadd.f32 %v4394, %v5001
      %v5077 = vadd.f32 %v4395, %v5004
      %v5078 = vadd.f32 %v4396, %v5006
      %v5079 = vadd.f32 %v4397, %v5009
      %v5080 = vadd.f32 %v4398, %v5011
      %v5081 = vadd.f32 %v4399, %v5014
      %v5082 = vadd.f32 %v4400, %v5016
      %v5083 = vadd.f32 %v4401, %v5019
      %v5084 = vadd.f32 %v4402, %v5021
      %v5085 = vadd.f32 %v4403, %v5024
      %v5086 = vadd.f32 %v4404, %v5026
      %v5087 = vadd.f32 %v4405, %v5029
      %v5088 = vadd.f32 %v4406, %v5031
      %v5089 = vadd.f32 %v4407, %v5034
      %v5090 = vadd.f32 %v4408, %v5036
      %v5091 = vadd.f32 %v4409, %v5039
      %v5092 = vadd.f32 %v4410, %v5041
      %v5093 = vadd.f32 %v4411, %v5044
      %v5094 = vadd.f32 %v4412, %v5046
      %v5095 = vadd.f32 %v4413, %v5049
      %v5096 = vadd.f32 %v4414, %v5051
      %v5097 = vadd.f32 %v4415, %v5054
      %v5098 = vadd.f32 %v4416, %v5056
      %v5099 = vadd.f32 %v4417, %v5059
      %v5100 = vadd.f32 %v4418, %v5061
      %v5101 = vadd.f32 %v4419, %v5064
      %v5102 = vadd.f32 %v4420, %v5066
      %v5103 = vadd.f32 %v4421, %v5069
      %v5104 = vadd.f32 %v4422, %v5071
      %v5105 = vld [vmem:[%s4108] sm:$0xe]
      %v5106 = vld [vmem:[%s4108 + $0xc] sm:$0xe]
      %v5107 = vld [vmem:[%s4108 + $0x18] sm:$0xe]
      %v5108 = vld [vmem:[%s4108 + $0x24] sm:$0xe]
      %v5109 = vld [vmem:[%s4108 + $0x30] sm:$0xe]
      %v5110 = vld [vmem:[%s4108 + $0x3c] sm:$0xe]
      %v5111 = vld [vmem:[%s4108 + $0x48] sm:$0xe]
      %v5112 = vld [vmem:[%s4108 + $0x54] sm:$0xe]
      %v5113 = vld [vmem:[%s4108 + $0x60] sm:$0xe]
      %v5114 = vld [vmem:[%s4108 + $0x6c] sm:$0xe]
      %v5115 = vld [vmem:[%s4108 + $0x78] sm:$0xe]
      %v5116 = vld [vmem:[%s4108 + $0x84] sm:$0xe]
      %v5117 = vld [vmem:[%s4108 + $0x90] sm:$0xe]
      %v5118 = vld [vmem:[%s4108 + $0x9c] sm:$0xe]
      %v5119 = vld [vmem:[%s4108 + $0xa8] sm:$0xe]
      %v5120 = vld [vmem:[%s4108 + $0xb4] sm:$0xe]
      %v5169 = vrot.slane %v5105, 5
      %v5170 = vrot.slane %v5169, 4
      %v5171 = vrot.slane %v4424, 5
      %v5172 = vsel %vm2316, %v5170, %v5171
      %v5173 = vrot.slane %v5171, 4
      %v5174 = vrot.slane %v4425, 5
      %v5175 = vsel %vm2316, %v5173, %v5174
      %v5176 = vrot.slane %v5106, 5
      %v5177 = vrot.slane %v5176, 4
      %v5178 = vrot.slane %v4427, 5
      %v5179 = vsel %vm2316, %v5177, %v5178
      %v5180 = vrot.slane %v5178, 4
      %v5181 = vrot.slane %v4428, 5
      %v5182 = vsel %vm2316, %v5180, %v5181
      %v5183 = vrot.slane %v5107, 5
      %v5184 = vrot.slane %v5183, 4
      %v5185 = vrot.slane %v4430, 5
      %v5186 = vsel %vm2316, %v5184, %v5185
      %v5187 = vrot.slane %v5185, 4
      %v5188 = vrot.slane %v4431, 5
      %v5189 = vsel %vm2316, %v5187, %v5188
      %v5190 = vrot.slane %v5108, 5
      %v5191 = vrot.slane %v5190, 4
      %v5192 = vrot.slane %v4433, 5
      %v5193 = vsel %vm2316, %v5191, %v5192
      %v5194 = vrot.slane %v5192, 4
      %v5195 = vrot.slane %v4434, 5
      %v5196 = vsel %vm2316, %v5194, %v5195
      %v5197 = vrot.slane %v5109, 5
      %v5198 = vrot.slane %v5197, 4
      %v5199 = vrot.slane %v4436, 5
      %v5200 = vsel %vm2316, %v5198, %v5199
      %v5201 = vrot.slane %v5199, 4
      %v5202 = vrot.slane %v4437, 5
      %v5203 = vsel %vm2316, %v5201, %v5202
      %v5204 = vrot.slane %v5110, 5
      %v5205 = vrot.slane %v5204, 4
      %v5206 = vrot.slane %v4439, 5
      %v5207 = vsel %vm2316, %v5205, %v5206
      %v5208 = vrot.slane %v5206, 4
      %v5209 = vrot.slane %v4440, 5
      %v5210 = vsel %vm2316, %v5208, %v5209
      %v5211 = vrot.slane %v5111, 5
      %v5212 = vrot.slane %v5211, 4
      %v5213 = vrot.slane %v4442, 5
      %v5214 = vsel %vm2316, %v5212, %v5213
      %v5215 = vrot.slane %v5213, 4
      %v5216 = vrot.slane %v4443, 5
      %v5217 = vsel %vm2316, %v5215, %v5216
      %v5218 = vrot.slane %v5112, 5
      %v5219 = vrot.slane %v5218, 4
      %v5220 = vrot.slane %v4445, 5
      %v5221 = vsel %vm2316, %v5219, %v5220
      %v5222 = vrot.slane %v5220, 4
      %v5223 = vrot.slane %v4446, 5
      %v5224 = vsel %vm2316, %v5222, %v5223
      %v5225 = vrot.slane %v5113, 5
      %v5226 = vrot.slane %v5225, 4
      %v5227 = vrot.slane %v4448, 5
      %v5228 = vsel %vm2316, %v5226, %v5227
      %v5229 = vrot.slane %v5227, 4
      %v5230 = vrot.slane %v4449, 5
      %v5231 = vsel %vm2316, %v5229, %v5230
      %v5232 = vrot.slane %v5114, 5
      %v5233 = vrot.slane %v5232, 4
      %v5234 = vrot.slane %v4451, 5
      %v5235 = vsel %vm2316, %v5233, %v5234
      %v5236 = vrot.slane %v5234, 4
      %v5237 = vrot.slane %v4452, 5
      %v5238 = vsel %vm2316, %v5236, %v5237
      %v5239 = vrot.slane %v5115, 5
      %v5240 = vrot.slane %v5239, 4
      %v5241 = vrot.slane %v4454, 5
      %v5242 = vsel %vm2316, %v5240, %v5241
      %v5243 = vrot.slane %v5241, 4
      %v5244 = vrot.slane %v4455, 5
      %v5245 = vsel %vm2316, %v5243, %v5244
      %v5246 = vrot.slane %v5116, 5
      %v5247 = vrot.slane %v5246, 4
      %v5248 = vrot.slane %v4457, 5
      %v5249 = vsel %vm2316, %v5247, %v5248
      %v5250 = vrot.slane %v5248, 4
      %v5251 = vrot.slane %v4458, 5
      %v5252 = vsel %vm2316, %v5250, %v5251
      %v5253 = vrot.slane %v5117, 5
      %v5254 = vrot.slane %v5253, 4
      %v5255 = vrot.slane %v4460, 5
      %v5256 = vsel %vm2316, %v5254, %v5255
      %v5257 = vrot.slane %v5255, 4
      %v5258 = vrot.slane %v4461, 5
      %v5259 = vsel %vm2316, %v5257, %v5258
      %v5260 = vrot.slane %v5118, 5
      %v5261 = vrot.slane %v5260, 4
      %v5262 = vrot.slane %v4463, 5
      %v5263 = vsel %vm2316, %v5261, %v5262
      %v5264 = vrot.slane %v5262, 4
      %v5265 = vrot.slane %v4464, 5
      %v5266 = vsel %vm2316, %v5264, %v5265
      %v5267 = vrot.slane %v5119, 5
      %v5268 = vrot.slane %v5267, 4
      %v5269 = vrot.slane %v4466, 5
      %v5270 = vsel %vm2316, %v5268, %v5269
      %v5271 = vrot.slane %v5269, 4
      %v5272 = vrot.slane %v4467, 5
      %v5273 = vsel %vm2316, %v5271, %v5272
      %v5274 = vrot.slane %v5120, 5
      %v5275 = vrot.slane %v5274, 4
      %v5276 = vrot.slane %v4469, 5
      %v5277 = vsel %vm2316, %v5275, %v5276
      %v5278 = vrot.slane %v5276, 4
      %v5279 = vrot.slane %v4470, 5
      %v5280 = vsel %vm2316, %v5278, %v5279
      %s5281 = scalar_lea.vmem %s4, 512
      %v5282 = vld [vmem:[%s5281] sm:$0xf]
      %v5283 = vld [vmem:[%s5281 + $0x4] sm:$0xf]
      %v5284 = vld [vmem:[%s5281 + $0x8] sm:$0xf]
      %v5285 = vld [vmem:[%s5281 + $0xc] sm:$0xf]
      %v5286 = vld [vmem:[%s5281 + $0x10] sm:$0xf]
      %v5287 = vld [vmem:[%s5281 + $0x14] sm:$0xf]
      %v5288 = vld [vmem:[%s5281 + $0x18] sm:$0xf]
      %v5289 = vld [vmem:[%s5281 + $0x1c] sm:$0xf]
      %v5290 = vld [vmem:[%s5281 + $0x20] sm:$0xf]
      %v5291 = vld [vmem:[%s5281 + $0x24] sm:$0xf]
      %v5292 = vld [vmem:[%s5281 + $0x28] sm:$0xf]
      %v5293 = vld [vmem:[%s5281 + $0x2c] sm:$0xf]
      %v5294 = vld [vmem:[%s5281 + $0x30] sm:$0xf]
      %v5295 = vld [vmem:[%s5281 + $0x34] sm:$0xf]
      %v5296 = vld [vmem:[%s5281 + $0x38] sm:$0xf]
      %v5297 = vld [vmem:[%s5281 + $0x3c] sm:$0xf]
      %v5298 = vunpack.c.l.b16 %v5172
      %v5299 = vunpack.c.l.b16 %v5175
      %v5300 = vunpack.c.l.b16 %v5179
      %v5301 = vunpack.c.l.b16 %v5182
      %v5302 = vunpack.c.l.b16 %v5186
      %v5303 = vunpack.c.l.b16 %v5189
      %v5304 = vunpack.c.l.b16 %v5193
      %v5305 = vunpack.c.l.b16 %v5196
      %v5306 = vunpack.c.l.b16 %v5200
      %v5307 = vunpack.c.l.b16 %v5203
      %v5308 = vunpack.c.l.b16 %v5207
      %v5309 = vunpack.c.l.b16 %v5210
      %v5310 = vunpack.c.l.b16 %v5214
      %v5311 = vunpack.c.l.b16 %v5217
      %v5312 = vunpack.c.l.b16 %v5221
      %v5313 = vunpack.c.l.b16 %v5224
      %v5314 = vunpack.c.l.b16 %v5228
      %v5315 = vunpack.c.l.b16 %v5231
      %v5316 = vunpack.c.l.b16 %v5235
      %v5317 = vunpack.c.l.b16 %v5238
      %v5318 = vunpack.c.l.b16 %v5242
      %v5319 = vunpack.c.l.b16 %v5245
      %v5320 = vunpack.c.l.b16 %v5249
      %v5321 = vunpack.c.l.b16 %v5252
      %v5322 = vunpack.c.l.b16 %v5256
      %v5323 = vunpack.c.l.b16 %v5259
      %v5324 = vunpack.c.l.b16 %v5263
      %v5325 = vunpack.c.l.b16 %v5266
      %v5326 = vunpack.c.l.b16 %v5270
      %v5327 = vunpack.c.l.b16 %v5273
      %v5328 = vunpack.c.l.b16 %v5277
      %v5329 = vunpack.c.l.b16 %v5280
      %v5330 = vpack.c.b16 %v5299, %v5298
      %v5331 = vpack.c.b16 %v5301, %v5300
      %v5332 = vpack.c.b16 %v5303, %v5302
      %v5333 = vpack.c.b16 %v5305, %v5304
      %v5334 = vpack.c.b16 %v5307, %v5306
      %v5335 = vpack.c.b16 %v5309, %v5308
      %v5336 = vpack.c.b16 %v5311, %v5310
      %v5337 = vpack.c.b16 %v5313, %v5312
      %v5338 = vpack.c.b16 %v5315, %v5314
      %v5339 = vpack.c.b16 %v5317, %v5316
      %v5340 = vpack.c.b16 %v5319, %v5318
      %v5341 = vpack.c.b16 %v5321, %v5320
      %v5342 = vpack.c.b16 %v5323, %v5322
      %v5343 = vpack.c.b16 %v5325, %v5324
      %v5344 = vpack.c.b16 %v5327, %v5326
      %v5345 = vpack.c.b16 %v5329, %v5328
      %v5378 = vunpack.c.l.b16 %v5282
      %v5379 = vunpack.c.l.b16 %v5283
      %v5380 = vunpack.c.l.b16 %v5284
      %v5381 = vunpack.c.l.b16 %v5285
      %v5382 = vunpack.c.l.b16 %v5286
      %v5383 = vunpack.c.l.b16 %v5287
      %v5384 = vunpack.c.l.b16 %v5288
      %v5385 = vunpack.c.l.b16 %v5289
      %v5386 = vunpack.c.l.b16 %v5290
      %v5387 = vunpack.c.l.b16 %v5291
      %v5388 = vunpack.c.l.b16 %v5292
      %v5389 = vunpack.c.l.b16 %v5293
      %v5390 = vunpack.c.l.b16 %v5294
      %v5391 = vunpack.c.l.b16 %v5295
      %v5392 = vunpack.c.l.b16 %v5296
      %v5393 = vunpack.c.l.b16 %v5297
      %v5394 = vpack.c.b16 %v5379, %v5378
      %v5395 = vpack.c.b16 %v5381, %v5380
      %v5396 = vpack.c.b16 %v5383, %v5382
      %v5397 = vpack.c.b16 %v5385, %v5384
      %v5398 = vpack.c.b16 %v5387, %v5386
      %v5399 = vpack.c.b16 %v5389, %v5388
      %v5400 = vpack.c.b16 %v5391, %v5390
      %v5401 = vpack.c.b16 %v5393, %v5392
      %5410 = vmatpush.bf16.msra.mxu0 %v5401
      %5411 = vmatpush.bf16.msra.mxu0 %v5400
      %5412 = vmatpush.bf16.msra.mxu0 %v5399
      %5413 = vmatpush.bf16.msra.mxu0 %v5398
      %5414 = vmatpush.bf16.msra.mxu0 %v5397
      %5415 = vmatpush.bf16.msra.mxu0 %v5396
      %5416 = vmatpush.bf16.msra.mxu0 %v5395
      %5417 = vmatpush.bf16.msra.mxu0 %v5394
      %5418 = vmatmul.bf16.gmra.mxu0 %v5330
      %v5419 = vpop.f32.mrf.mxu0
      %v5420 = vadd.f32 0.0, %v5419
      %v5421 = vpop.f32.mrf.mxu0
      %v5422 = vadd.f32 0.0, %v5421
      %5423 = vmatmul.bf16.gmra.mxu0 %v5331
      %v5424 = vpop.f32.mrf.mxu0
      %v5425 = vadd.f32 0.0, %v5424
      %v5426 = vpop.f32.mrf.mxu0
      %v5427 = vadd.f32 0.0, %v5426
      %5428 = vmatmul.bf16.gmra.mxu0 %v5332
      %v5429 = vpop.f32.mrf.mxu0
      %v5430 = vadd.f32 0.0, %v5429
      %v5431 = vpop.f32.mrf.mxu0
      %v5432 = vadd.f32 0.0, %v5431
      %5433 = vmatmul.bf16.gmra.mxu0 %v5333
      %v5434 = vpop.f32.mrf.mxu0
      %v5435 = vadd.f32 0.0, %v5434
      %v5436 = vpop.f32.mrf.mxu0
      %v5437 = vadd.f32 0.0, %v5436
      %5438 = vmatmul.bf16.gmra.mxu0 %v5334
      %v5439 = vpop.f32.mrf.mxu0
      %v5440 = vadd.f32 0.0, %v5439
      %v5441 = vpop.f32.mrf.mxu0
      %v5442 = vadd.f32 0.0, %v5441
      %5443 = vmatmul.bf16.gmra.mxu0 %v5335
      %v5444 = vpop.f32.mrf.mxu0
      %v5445 = vadd.f32 0.0, %v5444
      %v5446 = vpop.f32.mrf.mxu0
      %v5447 = vadd.f32 0.0, %v5446
      %5448 = vmatmul.bf16.gmra.mxu0 %v5336
      %v5449 = vpop.f32.mrf.mxu0
      %v5450 = vadd.f32 0.0, %v5449
      %v5451 = vpop.f32.mrf.mxu0
      %v5452 = vadd.f32 0.0, %v5451
      %5453 = vmatmul.bf16.gmra.mxu0 %v5337
      %v5454 = vpop.f32.mrf.mxu0
      %v5455 = vadd.f32 0.0, %v5454
      %v5456 = vpop.f32.mrf.mxu0
      %v5457 = vadd.f32 0.0, %v5456
      %5458 = vmatmul.bf16.gmra.mxu0 %v5338
      %v5459 = vpop.f32.mrf.mxu0
      %v5460 = vadd.f32 0.0, %v5459
      %v5461 = vpop.f32.mrf.mxu0
      %v5462 = vadd.f32 0.0, %v5461
      %5463 = vmatmul.bf16.gmra.mxu0 %v5339
      %v5464 = vpop.f32.mrf.mxu0
      %v5465 = vadd.f32 0.0, %v5464
      %v5466 = vpop.f32.mrf.mxu0
      %v5467 = vadd.f32 0.0, %v5466
      %5468 = vmatmul.bf16.gmra.mxu0 %v5340
      %v5469 = vpop.f32.mrf.mxu0
      %v5470 = vadd.f32 0.0, %v5469
      %v5471 = vpop.f32.mrf.mxu0
      %v5472 = vadd.f32 0.0, %v5471
      %5473 = vmatmul.bf16.gmra.mxu0 %v5341
      %v5474 = vpop.f32.mrf.mxu0
      %v5475 = vadd.f32 0.0, %v5474
      %v5476 = vpop.f32.mrf.mxu0
      %v5477 = vadd.f32 0.0, %v5476
      %5478 = vmatmul.bf16.gmra.mxu0 %v5342
      %v5479 = vpop.f32.mrf.mxu0
      %v5480 = vadd.f32 0.0, %v5479
      %v5481 = vpop.f32.mrf.mxu0
      %v5482 = vadd.f32 0.0, %v5481
      %5483 = vmatmul.bf16.gmra.mxu0 %v5343
      %v5484 = vpop.f32.mrf.mxu0
      %v5485 = vadd.f32 0.0, %v5484
      %v5486 = vpop.f32.mrf.mxu0
      %v5487 = vadd.f32 0.0, %v5486
      %5488 = vmatmul.bf16.gmra.mxu0 %v5344
      %v5489 = vpop.f32.mrf.mxu0
      %v5490 = vadd.f32 0.0, %v5489
      %v5491 = vpop.f32.mrf.mxu0
      %v5492 = vadd.f32 0.0, %v5491
      %5493 = vmatmul.bf16.gmra.mxu0 %v5345
      %v5494 = vpop.f32.mrf.mxu0
      %v5495 = vadd.f32 0.0, %v5494
      %v5496 = vpop.f32.mrf.mxu0
      %v5497 = vadd.f32 0.0, %v5496
      %5498 = vdwg.mxu0
      %v5499 = vadd.f32 %v5073, %v5420
      %v5500 = vadd.f32 %v5074, %v5422
      %v5501 = vadd.f32 %v5075, %v5425
      %v5502 = vadd.f32 %v5076, %v5427
      %v5503 = vadd.f32 %v5077, %v5430
      %v5504 = vadd.f32 %v5078, %v5432
      %v5505 = vadd.f32 %v5079, %v5435
      %v5506 = vadd.f32 %v5080, %v5437
      %v5507 = vadd.f32 %v5081, %v5440
      %v5508 = vadd.f32 %v5082, %v5442
      %v5509 = vadd.f32 %v5083, %v5445
      %v5510 = vadd.f32 %v5084, %v5447
      %v5511 = vadd.f32 %v5085, %v5450
      %v5512 = vadd.f32 %v5086, %v5452
      %v5513 = vadd.f32 %v5087, %v5455
      %v5514 = vadd.f32 %v5088, %v5457
      %v5515 = vadd.f32 %v5089, %v5460
      %v5516 = vadd.f32 %v5090, %v5462
      %v5517 = vadd.f32 %v5091, %v5465
      %v5518 = vadd.f32 %v5092, %v5467
      %v5519 = vadd.f32 %v5093, %v5470
      %v5520 = vadd.f32 %v5094, %v5472
      %v5521 = vadd.f32 %v5095, %v5475
      %v5522 = vadd.f32 %v5096, %v5477
      %v5523 = vadd.f32 %v5097, %v5480
      %v5524 = vadd.f32 %v5098, %v5482
      %v5525 = vadd.f32 %v5099, %v5485
      %v5526 = vadd.f32 %v5100, %v5487
      %v5527 = vadd.f32 %v5101, %v5490
      %v5528 = vadd.f32 %v5102, %v5492
      %v5529 = vadd.f32 %v5103, %v5495
      %v5530 = vadd.f32 %v5104, %v5497
      %v5531 = vld [vmem:[%s5] sm:$0x1]
      %v5533 = vperm.slane %v5531, 0
      %v5535 = vmul.f32 %v5499, %v5533
      %v5536 = vmul.f32 %v5500, %v5533
      %v5537 = vmul.f32 %v5501, %v5533
      %v5538 = vmul.f32 %v5502, %v5533
      %v5539 = vmul.f32 %v5503, %v5533
      %v5540 = vmul.f32 %v5504, %v5533
      %v5541 = vmul.f32 %v5505, %v5533
      %v5542 = vmul.f32 %v5506, %v5533
      %v5543 = vmul.f32 %v5507, %v5533
      %v5544 = vmul.f32 %v5508, %v5533
      %v5545 = vmul.f32 %v5509, %v5533
      %v5546 = vmul.f32 %v5510, %v5533
      %v5547 = vmul.f32 %v5511, %v5533
      %v5548 = vmul.f32 %v5512, %v5533
      %v5549 = vmul.f32 %v5513, %v5533
      %v5550 = vmul.f32 %v5514, %v5533
      %v5551 = vmul.f32 %v5515, %v5533
      %v5552 = vmul.f32 %v5516, %v5533
      %v5553 = vmul.f32 %v5517, %v5533
      %v5554 = vmul.f32 %v5518, %v5533
      %v5555 = vmul.f32 %v5519, %v5533
      %v5556 = vmul.f32 %v5520, %v5533
      %v5557 = vmul.f32 %v5521, %v5533
      %v5558 = vmul.f32 %v5522, %v5533
      %v5559 = vmul.f32 %v5523, %v5533
      %v5560 = vmul.f32 %v5524, %v5533
      %v5561 = vmul.f32 %v5525, %v5533
      %v5562 = vmul.f32 %v5526, %v5533
      %v5563 = vmul.f32 %v5527, %v5533
      %v5564 = vmul.f32 %v5528, %v5533
      %v5565 = vmul.f32 %v5529, %v5533
      %v5566 = vmul.f32 %v5530, %v5533
      %v5567 = vld [vmem:[%s6] sm:$0x1]
      %v5569 = vperm.slane %v5567, 0
      %v5571 = vadd.f32 %v5535, %v5569
      %v5572 = vadd.f32 %v5536, %v5569
      %v5573 = vadd.f32 %v5537, %v5569
      %v5574 = vadd.f32 %v5538, %v5569
      %v5575 = vadd.f32 %v5539, %v5569
      %v5576 = vadd.f32 %v5540, %v5569
      %v5577 = vadd.f32 %v5541, %v5569
      %v5578 = vadd.f32 %v5542, %v5569
      %v5579 = vadd.f32 %v5543, %v5569
      %v5580 = vadd.f32 %v5544, %v5569
      %v5581 = vadd.f32 %v5545, %v5569
      %v5582 = vadd.f32 %v5546, %v5569
      %v5583 = vadd.f32 %v5547, %v5569
      %v5584 = vadd.f32 %v5548, %v5569
      %v5585 = vadd.f32 %v5549, %v5569
      %v5586 = vadd.f32 %v5550, %v5569
      %v5587 = vadd.f32 %v5551, %v5569
      %v5588 = vadd.f32 %v5552, %v5569
      %v5589 = vadd.f32 %v5553, %v5569
      %v5590 = vadd.f32 %v5554, %v5569
      %v5591 = vadd.f32 %v5555, %v5569
      %v5592 = vadd.f32 %v5556, %v5569
      %v5593 = vadd.f32 %v5557, %v5569
      %v5594 = vadd.f32 %v5558, %v5569
      %v5595 = vadd.f32 %v5559, %v5569
      %v5596 = vadd.f32 %v5560, %v5569
      %v5597 = vadd.f32 %v5561, %v5569
      %v5598 = vadd.f32 %v5562, %v5569
      %v5599 = vadd.f32 %v5563, %v5569
      %v5600 = vadd.f32 %v5564, %v5569
      %v5601 = vadd.f32 %v5565, %v5569
      %v5602 = vadd.f32 %v5566, %v5569
      %v5603 = vmax.f32 %v5571, 0.0
      %v5604 = vmax.f32 %v5572, 0.0
      %v5605 = vmax.f32 %v5573, 0.0
      %v5606 = vmax.f32 %v5574, 0.0
      %v5607 = vmax.f32 %v5575, 0.0
      %v5608 = vmax.f32 %v5576, 0.0
      %v5609 = vmax.f32 %v5577, 0.0
      %v5610 = vmax.f32 %v5578, 0.0
      %v5611 = vmax.f32 %v5579, 0.0
      %v5612 = vmax.f32 %v5580, 0.0
      %v5613 = vmax.f32 %v5581, 0.0
      %v5614 = vmax.f32 %v5582, 0.0
      %v5615 = vmax.f32 %v5583, 0.0
      %v5616 = vmax.f32 %v5584, 0.0
      %v5617 = vmax.f32 %v5585, 0.0
      %v5618 = vmax.f32 %v5586, 0.0
      %v5619 = vmax.f32 %v5587, 0.0
      %v5620 = vmax.f32 %v5588, 0.0
      %v5621 = vmax.f32 %v5589, 0.0
      %v5622 = vmax.f32 %v5590, 0.0
      %v5623 = vmax.f32 %v5591, 0.0
      %v5624 = vmax.f32 %v5592, 0.0
      %v5625 = vmax.f32 %v5593, 0.0
      %v5626 = vmax.f32 %v5594, 0.0
      %v5627 = vmax.f32 %v5595, 0.0
      %v5628 = vmax.f32 %v5596, 0.0
      %v5629 = vmax.f32 %v5597, 0.0
      %v5630 = vmax.f32 %v5598, 0.0
      %v5631 = vmax.f32 %v5599, 0.0
      %v5632 = vmax.f32 %v5600, 0.0
      %v5633 = vmax.f32 %v5601, 0.0
      %v5634 = vmax.f32 %v5602, 0.0
      %v5635 = vpack.c.bf16 %v5604, %v5603
      %v5636 = vpack.c.bf16 %v5606, %v5605
      %v5637 = vpack.c.bf16 %v5608, %v5607
      %v5638 = vpack.c.bf16 %v5610, %v5609
      %v5639 = vpack.c.bf16 %v5612, %v5611
      %v5640 = vpack.c.bf16 %v5614, %v5613
      %v5641 = vpack.c.bf16 %v5616, %v5615
      %v5642 = vpack.c.bf16 %v5618, %v5617
      %v5643 = vpack.c.bf16 %v5620, %v5619
      %v5644 = vpack.c.bf16 %v5622, %v5621
      %v5645 = vpack.c.bf16 %v5624, %v5623
      %v5646 = vpack.c.bf16 %v5626, %v5625
      %v5647 = vpack.c.bf16 %v5628, %v5627
      %v5648 = vpack.c.bf16 %v5630, %v5629
      %v5649 = vpack.c.bf16 %v5632, %v5631
      %v5650 = vpack.c.bf16 %v5634, %v5633
      %v5651 = vld [vmem:[%s7] sm:$0xf]
      %v5652 = vld [vmem:[%s7 + $0x4] sm:$0xf]
      %v5653 = vld [vmem:[%s7 + $0x8] sm:$0xf]
      %v5654 = vld [vmem:[%s7 + $0xc] sm:$0xf]
      %v5655 = vld [vmem:[%s7 + $0x10] sm:$0xf]
      %v5656 = vld [vmem:[%s7 + $0x14] sm:$0xf]
      %v5657 = vld [vmem:[%s7 + $0x18] sm:$0xf]
      %v5658 = vld [vmem:[%s7 + $0x1c] sm:$0xf]
      %v5659 = vld [vmem:[%s7 + $0x20] sm:$0xf]
      %v5660 = vld [vmem:[%s7 + $0x24] sm:$0xf]
      %v5661 = vld [vmem:[%s7 + $0x28] sm:$0xf]
      %v5662 = vld [vmem:[%s7 + $0x2c] sm:$0xf]
      %v5663 = vld [vmem:[%s7 + $0x30] sm:$0xf]
      %v5664 = vld [vmem:[%s7 + $0x34] sm:$0xf]
      %v5665 = vld [vmem:[%s7 + $0x38] sm:$0xf]
      %v5666 = vld [vmem:[%s7 + $0x3c] sm:$0xf]
      %v5683 = vunpack.c.l.b16 %v5651
      %v5684 = vunpack.c.l.b16 %v5652
      %v5685 = vunpack.c.l.b16 %v5653
      %v5686 = vunpack.c.l.b16 %v5654
      %v5687 = vunpack.c.l.b16 %v5655
      %v5688 = vunpack.c.l.b16 %v5656
      %v5689 = vunpack.c.l.b16 %v5657
      %v5690 = vunpack.c.l.b16 %v5658
      %v5691 = vunpack.c.l.b16 %v5659
      %v5692 = vunpack.c.l.b16 %v5660
      %v5693 = vunpack.c.l.b16 %v5661
      %v5694 = vunpack.c.l.b16 %v5662
      %v5695 = vunpack.c.l.b16 %v5663
      %v5696 = vunpack.c.l.b16 %v5664
      %v5697 = vunpack.c.l.b16 %v5665
      %v5698 = vunpack.c.l.b16 %v5666
      %v5699 = vpack.c.b16 %v5684, %v5683
      %v5700 = vpack.c.b16 %v5686, %v5685
      %v5701 = vpack.c.b16 %v5688, %v5687
      %v5702 = vpack.c.b16 %v5690, %v5689
      %v5703 = vpack.c.b16 %v5692, %v5691
      %v5704 = vpack.c.b16 %v5694, %v5693
      %v5705 = vpack.c.b16 %v5696, %v5695
      %v5706 = vpack.c.b16 %v5698, %v5697
      %5715 = vmatpush.bf16.msra.mxu0 %v5706
      %5716 = vmatpush.bf16.msra.mxu0 %v5705
      %5717 = vmatpush.bf16.msra.mxu0 %v5704
      %5718 = vmatpush.bf16.msra.mxu0 %v5703
      %5719 = vmatpush.bf16.msra.mxu0 %v5702
      %5720 = vmatpush.bf16.msra.mxu0 %v5701
      %5721 = vmatpush.bf16.msra.mxu0 %v5700
      %5722 = vmatpush.bf16.msra.mxu0 %v5699
      %5723 = vmatmul.bf16.gmra.mxu0 %v5635
      %v5724 = vpop.f32.mrf.mxu0
      %v5725 = vadd.f32 0.0, %v5724
      %v5726 = vpop.f32.mrf.mxu0
      %v5727 = vadd.f32 0.0, %v5726
      %5728 = vmatmul.bf16.gmra.mxu0 %v5636
      %v5729 = vpop.f32.mrf.mxu0
      %v5730 = vadd.f32 0.0, %v5729
      %v5731 = vpop.f32.mrf.mxu0
      %v5732 = vadd.f32 0.0, %v5731
      %5733 = vmatmul.bf16.gmra.mxu0 %v5637
      %v5734 = vpop.f32.mrf.mxu0
      %v5735 = vadd.f32 0.0, %v5734
      %v5736 = vpop.f32.mrf.mxu0
      %v5737 = vadd.f32 0.0, %v5736
      %5738 = vmatmul.bf16.gmra.mxu0 %v5638
      %v5739 = vpop.f32.mrf.mxu0
      %v5740 = vadd.f32 0.0, %v5739
      %v5741 = vpop.f32.mrf.mxu0
      %v5742 = vadd.f32 0.0, %v5741
      %5743 = vmatmul.bf16.gmra.mxu0 %v5639
      %v5744 = vpop.f32.mrf.mxu0
      %v5745 = vadd.f32 0.0, %v5744
      %v5746 = vpop.f32.mrf.mxu0
      %v5747 = vadd.f32 0.0, %v5746
      %5748 = vmatmul.bf16.gmra.mxu0 %v5640
      %v5749 = vpop.f32.mrf.mxu0
      %v5750 = vadd.f32 0.0, %v5749
      %v5751 = vpop.f32.mrf.mxu0
      %v5752 = vadd.f32 0.0, %v5751
      %5753 = vmatmul.bf16.gmra.mxu0 %v5641
      %v5754 = vpop.f32.mrf.mxu0
      %v5755 = vadd.f32 0.0, %v5754
      %v5756 = vpop.f32.mrf.mxu0
      %v5757 = vadd.f32 0.0, %v5756
      %5758 = vmatmul.bf16.gmra.mxu0 %v5642
      %v5759 = vpop.f32.mrf.mxu0
      %v5760 = vadd.f32 0.0, %v5759
      %v5761 = vpop.f32.mrf.mxu0
      %v5762 = vadd.f32 0.0, %v5761
      %5763 = vmatmul.bf16.gmra.mxu0 %v5643
      %v5764 = vpop.f32.mrf.mxu0
      %v5765 = vadd.f32 0.0, %v5764
      %v5766 = vpop.f32.mrf.mxu0
      %v5767 = vadd.f32 0.0, %v5766
      %5768 = vmatmul.bf16.gmra.mxu0 %v5644
      %v5769 = vpop.f32.mrf.mxu0
      %v5770 = vadd.f32 0.0, %v5769
      %v5771 = vpop.f32.mrf.mxu0
      %v5772 = vadd.f32 0.0, %v5771
      %5773 = vmatmul.bf16.gmra.mxu0 %v5645
      %v5774 = vpop.f32.mrf.mxu0
      %v5775 = vadd.f32 0.0, %v5774
      %v5776 = vpop.f32.mrf.mxu0
      %v5777 = vadd.f32 0.0, %v5776
      %5778 = vmatmul.bf16.gmra.mxu0 %v5646
      %v5779 = vpop.f32.mrf.mxu0
      %v5780 = vadd.f32 0.0, %v5779
      %v5781 = vpop.f32.mrf.mxu0
      %v5782 = vadd.f32 0.0, %v5781
      %5783 = vmatmul.bf16.gmra.mxu0 %v5647
      %v5784 = vpop.f32.mrf.mxu0
      %v5785 = vadd.f32 0.0, %v5784
      %v5786 = vpop.f32.mrf.mxu0
      %v5787 = vadd.f32 0.0, %v5786
      %5788 = vmatmul.bf16.gmra.mxu0 %v5648
      %v5789 = vpop.f32.mrf.mxu0
      %v5790 = vadd.f32 0.0, %v5789
      %v5791 = vpop.f32.mrf.mxu0
      %v5792 = vadd.f32 0.0, %v5791
      %5793 = vmatmul.bf16.gmra.mxu0 %v5649
      %v5794 = vpop.f32.mrf.mxu0
      %v5795 = vadd.f32 0.0, %v5794
      %v5796 = vpop.f32.mrf.mxu0
      %v5797 = vadd.f32 0.0, %v5796
      %5798 = vmatmul.bf16.gmra.mxu0 %v5650
      %v5799 = vpop.f32.mrf.mxu0
      %v5800 = vadd.f32 0.0, %v5799
      %v5801 = vpop.f32.mrf.mxu0
      %v5802 = vadd.f32 0.0, %v5801
      %5803 = vdwg.mxu0
      %s5804 = smul.u32 %s1360, 2
      %s5805 = smul.addr %s5804, 4
      %s5806 = scalar_lea.vmem %s373, %s5805
      %v5807 = vld [vmem:[%s5806] sm:$0xf]
      %v5808 = vld [vmem:[%s5806 + $0x4] sm:$0xf]
      %v5809 = vld [vmem:[%s5806 + $0x8] sm:$0xf]
      %v5810 = vld [vmem:[%s5806 + $0xc] sm:$0xf]
      %v5811 = vld [vmem:[%s5806 + $0x10] sm:$0xf]
      %v5812 = vld [vmem:[%s5806 + $0x14] sm:$0xf]
      %v5813 = vld [vmem:[%s5806 + $0x18] sm:$0xf]
      %v5814 = vld [vmem:[%s5806 + $0x1c] sm:$0xf]
      %v5815 = vld [vmem:[%s5806 + $0x20] sm:$0xf]
      %v5816 = vld [vmem:[%s5806 + $0x24] sm:$0xf]
      %v5817 = vld [vmem:[%s5806 + $0x28] sm:$0xf]
      %v5818 = vld [vmem:[%s5806 + $0x2c] sm:$0xf]
      %v5819 = vld [vmem:[%s5806 + $0x30] sm:$0xf]
      %v5820 = vld [vmem:[%s5806 + $0x34] sm:$0xf]
      %v5821 = vld [vmem:[%s5806 + $0x38] sm:$0xf]
      %v5822 = vld [vmem:[%s5806 + $0x3c] sm:$0xf]
      %v5823 = vld [vmem:[%s5806 + $0x40] sm:$0xf]
      %v5824 = vld [vmem:[%s5806 + $0x44] sm:$0xf]
      %v5825 = vld [vmem:[%s5806 + $0x48] sm:$0xf]
      %v5826 = vld [vmem:[%s5806 + $0x4c] sm:$0xf]
      %v5827 = vld [vmem:[%s5806 + $0x50] sm:$0xf]
      %v5828 = vld [vmem:[%s5806 + $0x54] sm:$0xf]
      %v5829 = vld [vmem:[%s5806 + $0x58] sm:$0xf]
      %v5830 = vld [vmem:[%s5806 + $0x5c] sm:$0xf]
      %v5831 = vld [vmem:[%s5806 + $0x60] sm:$0xf]
      %v5832 = vld [vmem:[%s5806 + $0x64] sm:$0xf]
      %v5833 = vld [vmem:[%s5806 + $0x68] sm:$0xf]
      %v5834 = vld [vmem:[%s5806 + $0x6c] sm:$0xf]
      %v5835 = vld [vmem:[%s5806 + $0x70] sm:$0xf]
      %v5836 = vld [vmem:[%s5806 + $0x74] sm:$0xf]
      %v5837 = vld [vmem:[%s5806 + $0x78] sm:$0xf]
      %v5838 = vld [vmem:[%s5806 + $0x7c] sm:$0xf]
      %v5839 = vunpack.c.l.bf16 %v5807
      %v5840 = vunpack.c.l.bf16 %v5808
      %v5841 = vunpack.c.l.bf16 %v5809
      %v5842 = vunpack.c.l.bf16 %v5810
      %v5843 = vunpack.c.l.bf16 %v5811
      %v5844 = vunpack.c.l.bf16 %v5812
      %v5845 = vunpack.c.l.bf16 %v5813
      %v5846 = vunpack.c.l.bf16 %v5814
      %v5847 = vunpack.c.l.bf16 %v5815
      %v5848 = vunpack.c.l.bf16 %v5816
      %v5849 = vunpack.c.l.bf16 %v5817
      %v5850 = vunpack.c.l.bf16 %v5818
      %v5851 = vunpack.c.l.bf16 %v5819
      %v5852 = vunpack.c.l.bf16 %v5820
      %v5853 = vunpack.c.l.bf16 %v5821
      %v5854 = vunpack.c.l.bf16 %v5822
      %v5855 = vunpack.c.l.bf16 %v5823
      %v5856 = vunpack.c.l.bf16 %v5824
      %v5857 = vunpack.c.l.bf16 %v5825
      %v5858 = vunpack.c.l.bf16 %v5826
      %v5859 = vunpack.c.l.bf16 %v5827
      %v5860 = vunpack.c.l.bf16 %v5828
      %v5861 = vunpack.c.l.bf16 %v5829
      %v5862 = vunpack.c.l.bf16 %v5830
      %v5863 = vunpack.c.l.bf16 %v5831
      %v5864 = vunpack.c.l.bf16 %v5832
      %v5865 = vunpack.c.l.bf16 %v5833
      %v5866 = vunpack.c.l.bf16 %v5834
      %v5867 = vunpack.c.l.bf16 %v5835
      %v5868 = vunpack.c.l.bf16 %v5836
      %v5869 = vunpack.c.l.bf16 %v5837
      %v5870 = vunpack.c.l.bf16 %v5838
      %v5871 = vld [vmem:[%s8] sm:$0x1]
      %v5873 = vperm.slane %v5871, 0
      %v5875 = vmul.f32 %v5725, %v5873
      %v5876 = vmul.f32 %v5727, %v5873
      %v5877 = vmul.f32 %v5730, %v5873
      %v5878 = vmul.f32 %v5732, %v5873
      %v5879 = vmul.f32 %v5735, %v5873
      %v5880 = vmul.f32 %v5737, %v5873
      %v5881 = vmul.f32 %v5740, %v5873
      %v5882 = vmul.f32 %v5742, %v5873
      %v5883 = vmul.f32 %v5745, %v5873
      %v5884 = vmul.f32 %v5747, %v5873
      %v5885 = vmul.f32 %v5750, %v5873
      %v5886 = vmul.f32 %v5752, %v5873
      %v5887 = vmul.f32 %v5755, %v5873
      %v5888 = vmul.f32 %v5757, %v5873
      %v5889 = vmul.f32 %v5760, %v5873
      %v5890 = vmul.f32 %v5762, %v5873
      %v5891 = vmul.f32 %v5765, %v5873
      %v5892 = vmul.f32 %v5767, %v5873
      %v5893 = vmul.f32 %v5770, %v5873
      %v5894 = vmul.f32 %v5772, %v5873
      %v5895 = vmul.f32 %v5775, %v5873
      %v5896 = vmul.f32 %v5777, %v5873
      %v5897 = vmul.f32 %v5780, %v5873
      %v5898 = vmul.f32 %v5782, %v5873
      %v5899 = vmul.f32 %v5785, %v5873
      %v5900 = vmul.f32 %v5787, %v5873
      %v5901 = vmul.f32 %v5790, %v5873
      %v5902 = vmul.f32 %v5792, %v5873
      %v5903 = vmul.f32 %v5795, %v5873
      %v5904 = vmul.f32 %v5797, %v5873
      %v5905 = vmul.f32 %v5800, %v5873
      %v5906 = vmul.f32 %v5802, %v5873
      %v5907 = vld [vmem:[%s9] sm:$0x1]
      %v5909 = vperm.slane %v5907, 0
      %v5911 = vadd.f32 %v5875, %v5909
      %v5912 = vadd.f32 %v5876, %v5909
      %v5913 = vadd.f32 %v5877, %v5909
      %v5914 = vadd.f32 %v5878, %v5909
      %v5915 = vadd.f32 %v5879, %v5909
      %v5916 = vadd.f32 %v5880, %v5909
      %v5917 = vadd.f32 %v5881, %v5909
      %v5918 = vadd.f32 %v5882, %v5909
      %v5919 = vadd.f32 %v5883, %v5909
      %v5920 = vadd.f32 %v5884, %v5909
      %v5921 = vadd.f32 %v5885, %v5909
      %v5922 = vadd.f32 %v5886, %v5909
      %v5923 = vadd.f32 %v5887, %v5909
      %v5924 = vadd.f32 %v5888, %v5909
      %v5925 = vadd.f32 %v5889, %v5909
      %v5926 = vadd.f32 %v5890, %v5909
      %v5927 = vadd.f32 %v5891, %v5909
      %v5928 = vadd.f32 %v5892, %v5909
      %v5929 = vadd.f32 %v5893, %v5909
      %v5930 = vadd.f32 %v5894, %v5909
      %v5931 = vadd.f32 %v5895, %v5909
      %v5932 = vadd.f32 %v5896, %v5909
      %v5933 = vadd.f32 %v5897, %v5909
      %v5934 = vadd.f32 %v5898, %v5909
      %v5935 = vadd.f32 %v5899, %v5909
      %v5936 = vadd.f32 %v5900, %v5909
      %v5937 = vadd.f32 %v5901, %v5909
      %v5938 = vadd.f32 %v5902, %v5909
      %v5939 = vadd.f32 %v5903, %v5909
      %v5940 = vadd.f32 %v5904, %v5909
      %v5941 = vadd.f32 %v5905, %v5909
      %v5942 = vadd.f32 %v5906, %v5909
      %v5943 = vadd.f32 %v5911, %v5839
      %v5944 = vadd.f32 %v5912, %v5840
      %v5945 = vadd.f32 %v5913, %v5841
      %v5946 = vadd.f32 %v5914, %v5842
      %v5947 = vadd.f32 %v5915, %v5843
      %v5948 = vadd.f32 %v5916, %v5844
      %v5949 = vadd.f32 %v5917, %v5845
      %v5950 = vadd.f32 %v5918, %v5846
      %v5951 = vadd.f32 %v5919, %v5847
      %v5952 = vadd.f32 %v5920, %v5848
      %v5953 = vadd.f32 %v5921, %v5849
      %v5954 = vadd.f32 %v5922, %v5850
      %v5955 = vadd.f32 %v5923, %v5851
      %v5956 = vadd.f32 %v5924, %v5852
      %v5957 = vadd.f32 %v5925, %v5853
      %v5958 = vadd.f32 %v5926, %v5854
      %v5959 = vadd.f32 %v5927, %v5855
      %v5960 = vadd.f32 %v5928, %v5856
      %v5961 = vadd.f32 %v5929, %v5857
      %v5962 = vadd.f32 %v5930, %v5858
      %v5963 = vadd.f32 %v5931, %v5859
      %v5964 = vadd.f32 %v5932, %v5860
      %v5965 = vadd.f32 %v5933, %v5861
      %v5966 = vadd.f32 %v5934, %v5862
      %v5967 = vadd.f32 %v5935, %v5863
      %v5968 = vadd.f32 %v5936, %v5864
      %v5969 = vadd.f32 %v5937, %v5865
      %v5970 = vadd.f32 %v5938, %v5866
      %v5971 = vadd.f32 %v5939, %v5867
      %v5972 = vadd.f32 %v5940, %v5868
      %v5973 = vadd.f32 %v5941, %v5869
      %v5974 = vadd.f32 %v5942, %v5870
      %v5975 = vmax.f32 %v5943, 0.0
      %v5976 = vmax.f32 %v5944, 0.0
      %v5977 = vmax.f32 %v5945, 0.0
      %v5978 = vmax.f32 %v5946, 0.0
      %v5979 = vmax.f32 %v5947, 0.0
      %v5980 = vmax.f32 %v5948, 0.0
      %v5981 = vmax.f32 %v5949, 0.0
      %v5982 = vmax.f32 %v5950, 0.0
      %v5983 = vmax.f32 %v5951, 0.0
      %v5984 = vmax.f32 %v5952, 0.0
      %v5985 = vmax.f32 %v5953, 0.0
      %v5986 = vmax.f32 %v5954, 0.0
      %v5987 = vmax.f32 %v5955, 0.0
      %v5988 = vmax.f32 %v5956, 0.0
      %v5989 = vmax.f32 %v5957, 0.0
      %v5990 = vmax.f32 %v5958, 0.0
      %v5991 = vmax.f32 %v5959, 0.0
      %v5992 = vmax.f32 %v5960, 0.0
      %v5993 = vmax.f32 %v5961, 0.0
      %v5994 = vmax.f32 %v5962, 0.0
      %v5995 = vmax.f32 %v5963, 0.0
      %v5996 = vmax.f32 %v5964, 0.0
      %v5997 = vmax.f32 %v5965, 0.0
      %v5998 = vmax.f32 %v5966, 0.0
      %v5999 = vmax.f32 %v5967, 0.0
      %v6000 = vmax.f32 %v5968, 0.0
      %v6001 = vmax.f32 %v5969, 0.0
      %v6002 = vmax.f32 %v5970, 0.0
      %v6003 = vmax.f32 %v5971, 0.0
      %v6004 = vmax.f32 %v5972, 0.0
      %v6005 = vmax.f32 %v5973, 0.0
      %v6006 = vmax.f32 %v5974, 0.0
      %v6007 = vpack.c.bf16 %v5975, %v5975
      %v6008 = vpack.c.bf16 %v5976, %v5976
      %v6009 = vpack.c.bf16 %v5977, %v5977
      %v6010 = vpack.c.bf16 %v5978, %v5978
      %v6011 = vpack.c.bf16 %v5979, %v5979
      %v6012 = vpack.c.bf16 %v5980, %v5980
      %v6013 = vpack.c.bf16 %v5981, %v5981
      %v6014 = vpack.c.bf16 %v5982, %v5982
      %v6015 = vpack.c.bf16 %v5983, %v5983
      %v6016 = vpack.c.bf16 %v5984, %v5984
      %v6017 = vpack.c.bf16 %v5985, %v5985
      %v6018 = vpack.c.bf16 %v5986, %v5986
      %v6019 = vpack.c.bf16 %v5987, %v5987
      %v6020 = vpack.c.bf16 %v5988, %v5988
      %v6021 = vpack.c.bf16 %v5989, %v5989
      %v6022 = vpack.c.bf16 %v5990, %v5990
      %v6023 = vpack.c.bf16 %v5991, %v5991
      %v6024 = vpack.c.bf16 %v5992, %v5992
      %v6025 = vpack.c.bf16 %v5993, %v5993
      %v6026 = vpack.c.bf16 %v5994, %v5994
      %v6027 = vpack.c.bf16 %v5995, %v5995
      %v6028 = vpack.c.bf16 %v5996, %v5996
      %v6029 = vpack.c.bf16 %v5997, %v5997
      %v6030 = vpack.c.bf16 %v5998, %v5998
      %v6031 = vpack.c.bf16 %v5999, %v5999
      %v6032 = vpack.c.bf16 %v6000, %v6000
      %v6033 = vpack.c.bf16 %v6001, %v6001
      %v6034 = vpack.c.bf16 %v6002, %v6002
      %v6035 = vpack.c.bf16 %v6003, %v6003
      %v6036 = vpack.c.bf16 %v6004, %v6004
      %v6037 = vpack.c.bf16 %v6005, %v6005
      %v6038 = vpack.c.bf16 %v6006, %v6006
      %6039 = vst [vmem:[%s383] sm:$0xf] %v6007
      %6040 = vst [vmem:[%s383 + $0x4] sm:$0xf] %v6008
      %6041 = vst [vmem:[%s383 + $0x8] sm:$0xf] %v6009
      %6042 = vst [vmem:[%s383 + $0xc] sm:$0xf] %v6010
      %6043 = vst [vmem:[%s383 + $0x10] sm:$0xf] %v6011
      %6044 = vst [vmem:[%s383 + $0x14] sm:$0xf] %v6012
      %6045 = vst [vmem:[%s383 + $0x18] sm:$0xf] %v6013
      %6046 = vst [vmem:[%s383 + $0x1c] sm:$0xf] %v6014
      %6047 = vst [vmem:[%s383 + $0x20] sm:$0xf] %v6015
      %6048 = vst [vmem:[%s383 + $0x24] sm:$0xf] %v6016
      %6049 = vst [vmem:[%s383 + $0x28] sm:$0xf] %v6017
      %6050 = vst [vmem:[%s383 + $0x2c] sm:$0xf] %v6018
      %6051 = vst [vmem:[%s383 + $0x30] sm:$0xf] %v6019
      %6052 = vst [vmem:[%s383 + $0x34] sm:$0xf] %v6020
      %6053 = vst [vmem:[%s383 + $0x38] sm:$0xf] %v6021
      %6054 = vst [vmem:[%s383 + $0x3c] sm:$0xf] %v6022
      %6055 = vst [vmem:[%s383 + $0x40] sm:$0xf] %v6023
      %6056 = vst [vmem:[%s383 + $0x44] sm:$0xf] %v6024
      %6057 = vst [vmem:[%s383 + $0x48] sm:$0xf] %v6025
      %6058 = vst [vmem:[%s383 + $0x4c] sm:$0xf] %v6026
      %6059 = vst [vmem:[%s383 + $0x50] sm:$0xf] %v6027
      %6060 = vst [vmem:[%s383 + $0x54] sm:$0xf] %v6028
      %6061 = vst [vmem:[%s383 + $0x58] sm:$0xf] %v6029
      %6062 = vst [vmem:[%s383 + $0x5c] sm:$0xf] %v6030
      %6063 = vst [vmem:[%s383 + $0x60] sm:$0xf] %v6031
      %6064 = vst [vmem:[%s383 + $0x64] sm:$0xf] %v6032
      %6065 = vst [vmem:[%s383 + $0x68] sm:$0xf] %v6033
      %6066 = vst [vmem:[%s383 + $0x6c] sm:$0xf] %v6034
      %6067 = vst [vmem:[%s383 + $0x70] sm:$0xf] %v6035
      %6068 = vst [vmem:[%s383 + $0x74] sm:$0xf] %v6036
      %6069 = vst [vmem:[%s383 + $0x78] sm:$0xf] %v6037
      %6070 = vst [vmem:[%s383 + $0x7c] sm:$0xf] %v6038
      %s6071 = smul.u32 16, %s26
      %p6072 = scmp.lt.s32.totalorder %s25, 1
      %s6073 = scalar_select %p6072, %s25, 1
      %p6074 = scmp.lt.s32.totalorder %s6071, 15
      %s6075 = scalar_select %p6074, %s6071, 15
      %s6076 = smul.addr %s6075, 2
      %s6077 = smul.addr %s6073, 32
      %s6078 = sadd.s32 %s6076, %s6077
      %s6079 = smul.addr %s6078, 4
      %s6080 = scalar_lea.vmem %s10, %s6079
      // Predicated region
      $region61: #{bottleneck_forward.1} parent=59 // pred_check
        %p6081 = pneg %p268
      $region62: #{bottleneck_forward.1} parent=59 // pred_check_branch
        %6083 = sbr.rel (%p6081) target = $region64
      $region63: #{bottleneck_forward.1} parent=59 // pred_region
        %s6084 = smul.u32 16, %s26
      $region64: #{bottleneck_forward.1} parent=59 // pred_fallthru
        _
    $region60: #{bottleneck_forward.1} parent=5 // pred_fallthru
      _
    %p6085 = scmp.le.s32.totalorder 2, %s16
    // Predicated region
    $region65: #{bottleneck_forward.1} parent=5 // pred_check
      %p6086 = pneg %p6085
    $region66: #{bottleneck_forward.1} parent=5 // pred_check_branch
      %6088 = sbr.rel (%p6086) target = $region68
    $region67: #{bottleneck_forward.1} parent=5 // pred_region
      %s6089 = ssub.s32 %s16, 2
      // Predicated region
      $region69: #{bottleneck_forward.1} parent=67 // pred_check
        %p6090 = pneg %p274
      $region70: #{bottleneck_forward.1} parent=67 // pred_check_branch
        %6092 = sbr.rel (%p6090) target = $region72
      $region71: #{bottleneck_forward.1} parent=67 // pred_region
        %s6093 = smul.u32 16, %s28
        %p6094 = scmp.lt.s32.totalorder %s27, 1
        %s6095 = scalar_select %p6094, %s27, 1
        %p6096 = scmp.lt.s32.totalorder %s6093, 15
        %s6097 = scalar_select %p6096, %s6093, 15
        %s6098 = smul.addr %s6097, 2
        %s6099 = smul.addr %s6095, 32
        %s6100 = sadd.s32 %s6098, %s6099
        %s6101 = smul.addr %s6100, 4
        %s6102 = scalar_lea.vmem %s10, %s6101
      $region72: #{bottleneck_forward.1} parent=67 // pred_fallthru
        _
    $region68: #{bottleneck_forward.1} parent=5 // pred_fallthru
      _
  $region6: #{bottleneck_forward.1} parent=0 // loop_footer
    %s20 = sadd.s32 1, %s16
  $region7: #{bottleneck_forward.1} parent=0 // loop_footer_branch
    %15 = sbr.rel target = $region3
  $region8: #{bottleneck_forward.1} parent=0 // loop_exit
    _

</llo_original>
